<compile_context>
chip_gen: v5e
topology: v5e:2x2
jax: 0.10.0
libtpu: 0.0.40
codegen_flags: <defaults>
</compile_context>

<pallas_src>
import functools

import jax
import jax.numpy as jnp
from jax.experimental import pallas as pl
from jax.experimental.pallas import tpu as pltpu

_EPS = 1e-5          # nn.BatchNorm2d default eps
_LANE = 128          # TPU lane width
_SUB = 8             # TPU sublane width
_VMEM_BUDGET = 32 * 1024 * 1024   # target double-buffered working set
_VMEM_CAP = 40 * 1024 * 1024      # keep headroom under v7x's 64 MiB / TC


def _ru(x, m):
    return (x + m - 1) // m * m


def _pad2(a, rows, cols):
    r, c = a.shape
    return jnp.pad(a, ((0, rows - r), (0, cols - c)))


def _pick_tm(m, kp, cp):
    """Largest M tile whose double-buffered bf16 working set fits the budget."""
    for tm in (1024, 512, 256, 128):
        if tm > _ru(m, 16):
            continue
        need = 2 * (tm * kp * 2 + kp * cp * 2 + tm * cp * 2 + _SUB * cp * 4)
        if need <= _VMEM_BUDGET:
            return tm
    return _ru(m, 16)     # small layers: one tile, 16-row aligned (bf16 packing)


def _bn_tile(mp):
    for tm in (1024, 512, 256, 128, 64, 32, 16):
        if mp % tm == 0:
            return tm
    return mp


def _vmem_limit(single_buffer_bytes):
    return int(min(max(2 * single_buffer_bytes + (2 << 20), 8 << 20), _VMEM_CAP))


# ---------------------------------------------------------------------------
# Pallas kernels
# ---------------------------------------------------------------------------
def _matmul_stats_kernel(x_ref, w_ref, y_ref, stats_ref):
    """y = x @ w (bf16 operands, f32 MXU accumulate), stored as bf16, plus
    per-tile per-channel sum / sum-of-squares in f32 (rows 0 and 1)."""
    y = jnp.dot(x_ref[...], w_ref[...], preferred_element_type=jnp.float32)
    y_ref[...] = y.astype(y_ref.dtype)
    s = jnp.sum(y, axis=0, keepdims=True)
    sq = jnp.sum(y * y, axis=0, keepdims=True)
    stats_ref[...] = jnp.concatenate(
        [s, sq, jnp.zeros((_SUB - 2, s.shape[1]), jnp.float32)], axis=0)


def _bn_act_kernel(y_ref, stats_ref, g_ref, b_ref, *rest,
                   inv_count, relu, has_skip):
    """out = act( (y - mean) * rsqrt(var + eps) * gamma + beta [+ skip] )."""
    o_ref = rest[-1]
    mean = stats_ref[0:1, :] * inv_count
    var = jnp.maximum(stats_ref[1:2, :] * inv_count - mean * mean, 0.0)
    scale = g_ref[...] * jax.lax.rsqrt(var + _EPS)
    shift = b_ref[...] - mean * scale
    y = y_ref[...].astype(jnp.float32) * scale + shift
    if has_skip:
        y = y + rest[0][...].astype(jnp.float32)
    if relu:
        y = jnp.maximum(y, 0.0)
    o_ref[...] = y.astype(o_ref.dtype)


def _matmul_bias_tanh_kernel(x_ref, w_ref, b_ref, o_ref):
    y = jnp.dot(x_ref[...], w_ref[...], preferred_element_type=jnp.float32)
    o_ref[...] = jnp.tanh(y + b_ref[...]).astype(o_ref.dtype)


# ---------------------------------------------------------------------------
# pallas_call wrappers (padding to lane-dense shapes, tiling over M)
# ---------------------------------------------------------------------------
def _matmul_stats(patches, w_mat):
    """Tiled (M,K)@(K,C) with fused per-channel sum/sumsq.

    Returns y_padded (Mp, Cp) bf16 and reduced stats (8, Cp) f32
    (row 0 = sum, row 1 = sumsq over all M rows; padded rows are zero)."""
    m, k = patches.shape
    cout = w_mat.shape[1]
    kp, cp = _ru(k, _LANE), _ru(cout, _LANE)
    tm = _pick_tm(m, kp, cp)
    mp = _ru(m, tm)
    nm = mp // tm
    x = _pad2(patches.astype(jnp.bfloat16), mp, kp)
    w = _pad2(w_mat.astype(jnp.bfloat16), kp, cp)
    blk = tm * kp * 2 + kp * cp * 2 + tm * cp * 2 + _SUB * cp * 4
    cost = pl.CostEstimate(
        flops=2 * mp * kp * cp, transcendentals=0,
        bytes_accessed=mp * kp * 2 + kp * cp * 2 + mp * cp * 2 + nm * _SUB * cp * 4)
    y, stats = pl.pallas_call(
        _matmul_stats_kernel,
        out_shape=(jax.ShapeDtypeStruct((mp, cp), jnp.bfloat16),
                   jax.ShapeDtypeStruct((nm, _SUB, cp), jnp.float32)),
        grid=(nm,),
        in_specs=[pl.BlockSpec((tm, kp), lambda i: (i, 0)),
                  pl.BlockSpec((kp, cp), lambda i: (0, 0))],
        out_specs=(pl.BlockSpec((tm, cp), lambda i: (i, 0)),
                   pl.BlockSpec((None, _SUB, cp), lambda i: (i, 0, 0))),
        compiler_params=pltpu.CompilerParams(
            dimension_semantics=("parallel",),     # per-tile stats -> no carry
            vmem_limit_bytes=_vmem_limit(blk)),
        cost_estimate=cost,
    )(x, w)
    return y, jnp.sum(stats, axis=0)


def _bn_act(y, stats, gamma, beta, *, count, m_true, cout, skip=None,
            relu=True, out_dtype=jnp.bfloat16):
    """BatchNorm (batch statistics) + optional residual add + optional ReLU."""
    mp, cp = y.shape
    tm = _bn_tile(mp)
    nm = mp // tm
    g2 = _pad2(gamma.reshape(1, -1).astype(jnp.float32), 1, cp)
    b2 = _pad2(beta.reshape(1, -1).astype(jnp.float32), 1, cp)
    args = [y, stats, g2, b2]
    in_specs = [pl.BlockSpec((tm, cp), lambda i: (i, 0)),
                pl.BlockSpec((_SUB, cp), lambda i: (0, 0)),
                pl.BlockSpec((1, cp), lambda i: (0, 0)),
                pl.BlockSpec((1, cp), lambda i: (0, 0))]
    if skip is not None:
        args.append(_pad2(skip.astype(jnp.bfloat16), mp, cp))
        in_specs.append(pl.BlockSpec((tm, cp), lambda i: (i, 0)))
    blk = (3 if skip is not None else 2) * tm * cp * 2 + _SUB * cp * 4 + 2 * cp * 4
    kern = functools.partial(_bn_act_kernel, inv_count=1.0 / count,
                             relu=relu, has_skip=skip is not None)
    out = pl.pallas_call(
        kern,
        out_shape=jax.ShapeDtypeStruct((mp, cp), out_dtype),
        grid=(nm,),
        in_specs=in_specs,
        out_specs=pl.BlockSpec((tm, cp), lambda i: (i, 0)),
        compiler_params=pltpu.CompilerParams(
            dimension_semantics=("parallel",),
            vmem_limit_bytes=_vmem_limit(blk)),
    )(*args)
    return out[:m_true, :cout]


def _matmul_bias_tanh(patches, w_mat, bias):
    m, k = patches.shape
    cout = w_mat.shape[1]
    kp, cp = _ru(k, _LANE), _ru(cout, _LANE)
    tm = _pick_tm(m, kp, cp)
    mp = _ru(m, tm)
    nm = mp // tm
    x = _pad2(patches.astype(jnp.bfloat16), mp, kp)
    w = _pad2(w_mat.astype(jnp.bfloat16), kp, cp)
    b2 = _pad2(bias.reshape(1, -1).astype(jnp.float32), 1, cp)
    blk = tm * kp * 2 + kp * cp * 2 + cp * 4 + tm * cp * 4
    cost = pl.CostEstimate(
        flops=2 * mp * kp * cp, transcendentals=mp * cp,
        bytes_accessed=mp * kp * 2 + kp * cp * 2 + mp * cp * 4)
    out = pl.pallas_call(
        _matmul_bias_tanh_kernel,
        out_shape=jax.ShapeDtypeStruct((mp, cp), jnp.float32),
        grid=(nm,),
        in_specs=[pl.BlockSpec((tm, kp), lambda i: (i, 0)),
                  pl.BlockSpec((kp, cp), lambda i: (0, 0)),
                  pl.BlockSpec((1, cp), lambda i: (0, 0))],
        out_specs=pl.BlockSpec((tm, cp), lambda i: (i, 0)),
        compiler_params=pltpu.CompilerParams(
            dimension_semantics=("parallel",),
            vmem_limit_bytes=_vmem_limit(blk)),
        cost_estimate=cost,
    )(x, w, b2)
    return out[:m, :cout]


# ---------------------------------------------------------------------------
# JAX glue: padding, im2col, weight reshaping, fused sub-pixel transposed conv
# TODO(synk): im2col / reflection pad still run in XLA (HBM read amplification);
# move patch formation into the kernel with haloed row tiles.
# ---------------------------------------------------------------------------
def _im2col(x, kh, kw, stride):
    n, h, w, c = x.shape
    ho = (h - kh) // stride + 1
    wo = (w - kw) // stride + 1
    cols = []
    for i in range(kh):
        for j in range(kw):
            cols.append(x[:, i:i + stride * (ho - 1) + 1:stride,
                            j:j + stride * (wo - 1) + 1:stride, :])
    p = jnp.stack(cols, axis=3)                      # (n, ho, wo, kh*kw, c)
    return p.reshape(n * ho * wo, kh * kw * c), (n, ho, wo)


def _w_conv_to_mat(w_oihw):
    co, ci, kh, kw = w_oihw.shape
    return w_oihw.transpose(2, 3, 1, 0).reshape(kh * kw * ci, co)


def conv_bn_relu(x, w, gamma, beta, *, stride=1, zero_pad=0, reflect_pad=0,
                 skip=None):
    if reflect_pad:
        x = jnp.pad(x, ((0, 0), (reflect_pad,) * 2, (reflect_pad,) * 2, (0, 0)),
                    mode="reflect")
    if zero_pad:
        x = jnp.pad(x, ((0, 0), (zero_pad,) * 2, (zero_pad,) * 2, (0, 0)))
    kh, kw = w.shape[2], w.shape[3]
    cout = w.shape[0]
    patches, (n, ho, wo) = _im2col(x, kh, kw, stride)
    m = n * ho * wo
    y, stats = _matmul_stats(patches, _w_conv_to_mat(w))
    skip_flat = None if skip is None else skip.reshape(m, cout)
    out = _bn_act(y, stats, gamma, beta, count=m, m_true=m, cout=cout,
                  skip=skip_flat, relu=True)
    return out.reshape(n, ho, wo, cout)


# Sub-pixel decomposition of ConvTranspose2d(k=3, stride=2, pad=1, out_pad=1):
# output pixel (2a+ph, 2b+pw) depends on input shifts {(0,0),(0,1),(1,0),(1,1)};
# all 4 phases are fused into one stride-1 GEMM with a zero-block weight matrix.
_TCONV_SHIFTS = ((0, 0), (0, 1), (1, 0), (1, 1))
_TCONV_PHASES = ((0, 0), (0, 1), (1, 0), (1, 1))     # output parity (ph, pw)


def _tconv_w_big(w):
    """(4*Cin, 4*Cout) block matrix: phase (ph,pw) with input shift (di,dj)
    uses tconv tap (1-2*di+ph, 1-2*dj+pw); out-of-range taps are zero blocks."""
    cin, cout = w.shape[0], w.shape[1]
    cols = []
    for ph, pw in _TCONV_PHASES:
        rows = []
        for di, dj in _TCONV_SHIFTS:
            ki, kj = 1 - 2 * di + ph, 1 - 2 * dj + pw
            if 0 <= ki <= 2 and 0 <= kj <= 2:
                rows.append(w[:, :, ki, kj])
            else:
                rows.append(jnp.zeros((cin, cout), w.dtype))
        cols.append(jnp.concatenate(rows, axis=0))    # (4*Cin, Cout)
    return jnp.concatenate(cols, axis=1)              # (4*Cin, 4*Cout)


def tconv_bn_relu(x, w, gamma, beta):
    """ConvTranspose2d(3, s=2, p=1, op=1) + BN + ReLU as one fused sub-pixel
    GEMM (lane-dense 4*Cout output) + one BN/ReLU pass."""
    n, h, wd, cin = x.shape
    cout = w.shape[1]                                  # w: (Cin, Cout, 3, 3)
    m = n * h * wd
    count = n * (2 * h) * (2 * wd)                     # BN count = full output
    xp = jnp.pad(x, ((0, 0), (0, 1), (0, 1), (0, 0)))  # bottom/right zero halo
    patches = jnp.concatenate(
        [xp[:, di:di + h, dj:dj + wd, :] for di, dj in _TCONV_SHIFTS],
        axis=-1).reshape(m, 4 * cin)
    y, stats = _matmul_stats(patches, _tconv_w_big(w))
    cpb = y.shape[1]
    # per-channel batch stats = sum over the 4 phase column groups, tiled back
    s4 = stats[:2, :4 * cout].reshape(2, 4, cout).sum(axis=1)       # (2, cout)
    stats_full = jnp.pad(jnp.tile(s4, (1, 4)),
                         ((0, _SUB - 2), (0, cpb - 4 * cout)))
    out = _bn_act(y, stats_full, jnp.tile(gamma, 4), jnp.tile(beta, 4),
                  count=count, m_true=m, cout=4 * cout, relu=True)
    # interleave phases: out[:, 2a+ph, 2b+pw, :] = out_flat[(n,a,b), (2ph+pw)*C+c]
    out = out.reshape(n, h, wd, 2, 2, cout)
    out = out.transpose(0, 1, 3, 2, 4, 5).reshape(n, 2 * h, 2 * wd, cout)
    return out


def out_conv_tanh(x, w, b):
    x = jnp.pad(x, ((0, 0), (3, 3), (3, 3), (0, 0)), mode="reflect")
    patches, (n, ho, wo) = _im2col(x, 7, 7, 1)
    out = _matmul_bias_tanh(patches, _w_conv_to_mat(w), b)
    return out.reshape(n, ho, wo, -1)


# ---------------------------------------------------------------------------
# Model: parameters + forward
# ---------------------------------------------------------------------------
def init_params(key, in_channels, out_channels, n_feats, n_blocks):
    keys = iter(jax.random.split(key, 256))

    def conv_w(co, ci, k):
        return 0.1 * jax.random.normal(next(keys), (co, ci, k, k), jnp.float32)

    def tconv_w(ci, co, k):
        return 0.1 * jax.random.normal(next(keys), (ci, co, k, k), jnp.float32)

    def bn(c):
        return (1.0 + 0.1 * jax.random.normal(next(keys), (c,), jnp.float32),
                0.1 * jax.random.normal(next(keys), (c,), jnp.float32))

    p = {
        "in_w": conv_w(n_feats, in_channels, 7), "in_bn": bn(n_feats),
        "d1_w": conv_w(2 * n_feats, n_feats, 3), "d1_bn": bn(2 * n_feats),
        "d2_w": conv_w(4 * n_feats, 2 * n_feats, 3), "d2_bn": bn(4 * n_feats),
        "blocks": [],
        "u1_w": tconv_w(4 * n_feats, 2 * n_feats, 3), "u1_bn": bn(2 * n_feats),
        "u2_w": tconv_w(2 * n_feats, n_feats, 3), "u2_bn": bn(n_feats),
        "out_w": conv_w(out_channels, n_feats, 7),
        "out_b": 0.1 * jax.random.normal(next(keys), (out_channels,), jnp.float32),
    }
    for _ in range(n_blocks):
        p["blocks"].append(dict(
            w1=conv_w(4 * n_feats, 4 * n_feats, 3), bn1=bn(4 * n_feats),
            w2=conv_w(4 * n_feats, 4 * n_feats, 3), bn2=bn(4 * n_feats)))
    return p


def resnet_generator_forward(params, x_nchw):
    # NCHW -> NHWC; cast to bf16 once so all patch glue moves 2-byte data.
    x = jnp.transpose(x_nchw, (0, 2, 3, 1)).astype(jnp.bfloat16)

    # in_conv: ReflectionPad2d(3) + Conv7x7 + BN + ReLU
    g, b = params["in_bn"]
    out = conv_bn_relu(x, params["in_w"], g, b, reflect_pad=3)

    # down: two stride-2 3x3 convs + BN + ReLU
    g, b = params["d1_bn"]
    out = conv_bn_relu(out, params["d1_w"], g, b, stride=2, zero_pad=1)
    g, b = params["d2_bn"]
    out = conv_bn_relu(out, params["d2_w"], g, b, stride=2, zero_pad=1)

    # body: ResBlocks — out = relu(x + BN(conv(relu(BN(conv(x))))))
    # (the reference ResBlock DOES apply ReLU after the residual add)
    for blk in params["blocks"]:
        g1, b1 = blk["bn1"]
        g2, b2 = blk["bn2"]
        h = conv_bn_relu(out, blk["w1"], g1, b1, reflect_pad=1)
        out = conv_bn_relu(h, blk["w2"], g2, b2, reflect_pad=1, skip=out)

    # up: two ConvTranspose2d(stride=2, pad=1, output_padding=1) + BN + ReLU
    g, b = params["u1_bn"]
    out = tconv_bn_relu(out, params["u1_w"], g, b)
    g, b = params["u2_bn"]
    out = tconv_bn_relu(out, params["u2_w"], g, b)

    # out_conv: ReflectionPad2d(3) + Conv7x7(bias) + Tanh
    out = out_conv_tanh(out, params["out_w"], params["out_b"])

    return jnp.transpose(out, (0, 3, 1, 2))                          # NHWC -> NCHW


if __name__ == "__main__":
    in_channels, out_channels, n_feats, n_blocks = 4, 3, 8, 9
    batch, spatial = 2, 16

    params = init_params(jax.random.PRNGKey(42),
                         in_channels, out_channels, n_feats, n_blocks)
    x = jax.random.normal(jax.random.PRNGKey(0),
                          (batch, in_channels, spatial, spatial), jnp.float32)

    fwd = jax.jit(resnet_generator_forward)
    y = jax.block_until_ready(fwd(params, x))

    assert y.shape == (batch, out_channels, spatial, spatial), y.shape
    assert bool(jnp.all(jnp.isfinite(y)))
    print("KERNEL_OK")
</pallas_src>

<mosaic_0001>
module attributes {stable_mosaic.version = 11 : i64} {
  func.func @_matmul_stats_kernel(%arg0: i32, %arg1: memref<512x256xbf16, #tpu.memory_space<vmem>>, %arg2: memref<256x128xbf16, #tpu.memory_space<vmem>>, %arg3: memref<512x128xbf16, #tpu.memory_space<vmem>>, %arg4: memref<1x8x128xf32, #tpu.memory_space<vmem>>) attributes {dimension_semantics = [#tpu.dimension_semantics<parallel>], iteration_bounds = array<i64: 1>, scalar_prefetch = 0 : i64, scratch_operands = 0 : i64, tpu.core_type = #tpu.core_type<tc>, window_params = [{transform_indices = @transform_0, window_bounds = array<i64: 512, 256>}, {pipeline_mode = #tpu.pipeline_mode<synchronous>, transform_indices = @transform_1, window_bounds = array<i64: 256, 128>}, {transform_indices = @transform_2, window_bounds = array<i64: 512, 128>}, {transform_indices = @transform_3, window_bounds = array<i64: 1, 8, 128>}]} {
    %c0 = arith.constant 0 : index
    %c0_0 = arith.constant 0 : index
    %0 = vector.load %arg1[%c0, %c0_0] : memref<512x256xbf16, #tpu.memory_space<vmem>>, vector<512x256xbf16>
    %c0_1 = arith.constant 0 : index
    %c0_2 = arith.constant 0 : index
    %1 = vector.load %arg2[%c0_1, %c0_2] : memref<256x128xbf16, #tpu.memory_space<vmem>>, vector<256x128xbf16>
    %cst = arith.constant dense<0.000000e+00> : vector<512x128xf32>
    %2 = tpu.matmul %0, %1, %cst {dimension_numbers = #tpu.dot_dimension_numbers<[1], [0], [0], [1], [0, 0, 1, 1], [], []>} : vector<512x256xbf16>, vector<256x128xbf16>, vector<512x128xf32> -> vector<512x128xf32>
    %3 = arith.truncf %2 : vector<512x128xf32> to vector<512x128xbf16>
    %c0_3 = arith.constant 0 : index
    %c0_4 = arith.constant 0 : index
    %4 = vector.load %arg3[%c0_3, %c0_4] : memref<512x128xbf16, #tpu.memory_space<vmem>>, vector<512x128xbf16>
    tpu.vector_store %arg3[%c0_3, %c0_4], %3 {strides = array<i32>} : memref<512x128xbf16, #tpu.memory_space<vmem>>, vector<512x128xbf16>,
    %cst_5 = arith.constant dense<0.000000e+00> : vector<128xf32>
    %5 = vector.multi_reduction <add>, %2, %cst_5 [0] : vector<512x128xf32> to vector<128xf32>
    %6 = vector.shape_cast %5 : vector<128xf32> to vector<1x128xf32>
    %7 = arith.mulf %2, %2 : vector<512x128xf32>
    %cst_6 = arith.constant dense<0.000000e+00> : vector<128xf32>
    %8 = vector.multi_reduction <add>, %7, %cst_6 [0] : vector<512x128xf32> to vector<128xf32>
    %9 = vector.shape_cast %8 : vector<128xf32> to vector<1x128xf32>
    %cst_7 = arith.constant 0.000000e+00 : f32
    %10 = vector.broadcast %cst_7 : f32 to vector<6x128xf32>
    %11 = tpu.concatenate %6, %9, %10 in 0 : vector<1x128xf32>, vector<1x128xf32>, vector<6x128xf32> -> vector<8x128xf32>
    %c0_8 = arith.constant 0 : index
    %c0_9 = arith.constant 0 : index
    %c0_10 = arith.constant 0 : index
    %12 = vector.load %arg4[%c0_8, %c0_9, %c0_10] : memref<1x8x128xf32, #tpu.memory_space<vmem>>, vector<1x8x128xf32>
    %13 = vector.shape_cast %12 : vector<1x8x128xf32> to vector<8x128xf32>
    %14 = vector.shape_cast %11 : vector<8x128xf32> to vector<1x8x128xf32>
    tpu.vector_store %arg4[%c0_8, %c0_9, %c0_10], %14 {strides = array<i32>} : memref<1x8x128xf32, #tpu.memory_space<vmem>>, vector<1x8x128xf32>,
    return
  }
  func.func @transform_0(%arg0: i32) -> (i32, i32) {
    %c0_i32 = arith.constant 0 : i32
    %c0_i32_0 = arith.constant 0 : i32
    return %arg0, %c0_i32 : i32, i32
  }
  func.func @transform_1(%arg0: i32) -> (i32, i32) {
    %c0_i32 = arith.constant 0 : i32
    %c0_i32_0 = arith.constant 0 : i32
    %c0_i32_1 = arith.constant 0 : i32
    return %c0_i32, %c0_i32_0 : i32, i32
  }
  func.func @transform_2(%arg0: i32) -> (i32, i32) {
    %c0_i32 = arith.constant 0 : i32
    %c0_i32_0 = arith.constant 0 : i32
    return %arg0, %c0_i32 : i32, i32
  }
  func.func @transform_3(%arg0: i32) -> (i32, i32, i32) {
    %c0_i32 = arith.constant 0 : i32
    %c0_i32_0 = arith.constant 0 : i32
    %c0_i32_1 = arith.constant 0 : i32
    return %arg0, %c0_i32, %c0_i32_0 : i32, i32, i32
  }
}

module attributes {stable_mosaic.version = 11 : i64} {
  func.func @_bn_act_kernel(%arg0: i32, %arg1: memref<512x128xbf16, #tpu.memory_space<vmem>>, %arg2: memref<8x128xf32, #tpu.memory_space<vmem>>, %arg3: memref<1x128xf32, #tpu.memory_space<vmem>>, %arg4: memref<1x128xf32, #tpu.memory_space<vmem>>, %arg5: memref<512x128xbf16, #tpu.memory_space<vmem>>) attributes {dimension_semantics = [#tpu.dimension_semantics<parallel>], iteration_bounds = array<i64: 1>, scalar_prefetch = 0 : i64, scratch_operands = 0 : i64, tpu.core_type = #tpu.core_type<tc>, window_params = [{transform_indices = @transform_0, window_bounds = array<i64: 512, 128>}, {pipeline_mode = #tpu.pipeline_mode<synchronous>, transform_indices = @transform_1, window_bounds = array<i64: 8, 128>}, {pipeline_mode = #tpu.pipeline_mode<synchronous>, transform_indices = @transform_2, window_bounds = array<i64: 1, 128>}, {pipeline_mode = #tpu.pipeline_mode<synchronous>, transform_indices = @transform_3, window_bounds = array<i64: 1, 128>}, {transform_indices = @transform_4, window_bounds = array<i64: 512, 128>}]} {
    %c0 = arith.constant 0 : index
    %c0_0 = arith.constant 0 : index
    %0 = vector.load %arg2[%c0, %c0_0] : memref<8x128xf32, #tpu.memory_space<vmem>>, vector<1x128xf32>
    %cst = arith.constant 0.001953125 : f32
    %1 = vector.broadcast %cst : f32 to vector<1x128xf32>
    %2 = arith.mulf %0, %1 : vector<1x128xf32>
    %c1 = arith.constant 1 : index
    %c0_1 = arith.constant 0 : index
    %3 = vector.load %arg2[%c1, %c0_1] : memref<8x128xf32, #tpu.memory_space<vmem>>, vector<1x128xf32>
    %cst_2 = arith.constant 0.001953125 : f32
    %4 = vector.broadcast %cst_2 : f32 to vector<1x128xf32>
    %5 = arith.mulf %3, %4 : vector<1x128xf32>
    %6 = arith.mulf %2, %2 : vector<1x128xf32>
    %7 = arith.subf %5, %6 : vector<1x128xf32>
    %cst_3 = arith.constant 0.000000e+00 : f32
    %8 = vector.broadcast %cst_3 : f32 to vector<1x128xf32>
    %9 = arith.maximumf %7, %8 : vector<1x128xf32>
    %c0_4 = arith.constant 0 : index
    %c0_5 = arith.constant 0 : index
    %10 = vector.load %arg3[%c0_4, %c0_5] : memref<1x128xf32, #tpu.memory_space<vmem>>, vector<1x128xf32>
    %cst_6 = arith.constant 9.99999974E-6 : f32
    %11 = vector.broadcast %cst_6 : f32 to vector<1x128xf32>
    %12 = arith.addf %9, %11 : vector<1x128xf32>
    %13 = math.rsqrt %12 : vector<1x128xf32>
    %14 = arith.mulf %10, %13 : vector<1x128xf32>
    %c0_7 = arith.constant 0 : index
    %c0_8 = arith.constant 0 : index
    %15 = vector.load %arg4[%c0_7, %c0_8] : memref<1x128xf32, #tpu.memory_space<vmem>>, vector<1x128xf32>
    %16 = arith.mulf %2, %14 : vector<1x128xf32>
    %17 = arith.subf %15, %16 : vector<1x128xf32>
    %c0_9 = arith.constant 0 : index
    %c0_10 = arith.constant 0 : index
    %18 = vector.load %arg1[%c0_9, %c0_10] : memref<512x128xbf16, #tpu.memory_space<vmem>>, vector<512x128xbf16>
    %19 = arith.extf %18 : vector<512x128xbf16> to vector<512x128xf32>
    %20 = vector.broadcast %14 : vector<1x128xf32> to vector<512x128xf32>
    %21 = arith.mulf %19, %20 : vector<512x128xf32>
    %22 = vector.broadcast %17 : vector<1x128xf32> to vector<512x128xf32>
    %23 = arith.addf %21, %22 : vector<512x128xf32>
    %cst_11 = arith.constant 0.000000e+00 : f32
    %24 = vector.broadcast %cst_11 : f32 to vector<512x128xf32>
    %25 = arith.maximumf %23, %24 : vector<512x128xf32>
    %26 = arith.truncf %25 : vector<512x128xf32> to vector<512x128xbf16>
    %c0_12 = arith.constant 0 : index
    %c0_13 = arith.constant 0 : index
    %27 = vector.load %arg5[%c0_12, %c0_13] : memref<512x128xbf16, #tpu.memory_space<vmem>>, vector<512x128xbf16>
    tpu.vector_store %arg5[%c0_12, %c0_13], %26 {strides = array<i32>} : memref<512x128xbf16, #tpu.memory_space<vmem>>, vector<512x128xbf16>,
    return
  }
  func.func @transform_0(%arg0: i32) -> (i32, i32) {
    %c0_i32 = arith.constant 0 : i32
    %c0_i32_0 = arith.constant 0 : i32
    return %arg0, %c0_i32 : i32, i32
  }
  func.func @transform_1(%arg0: i32) -> (i32, i32) {
    %c0_i32 = arith.constant 0 : i32
    %c0_i32_0 = arith.constant 0 : i32
    %c0_i32_1 = arith.constant 0 : i32
    return %c0_i32, %c0_i32_0 : i32, i32
  }
  func.func @transform_2(%arg0: i32) -> (i32, i32) {
    %c0_i32 = arith.constant 0 : i32
    %c0_i32_0 = arith.constant 0 : i32
    %c0_i32_1 = arith.constant 0 : i32
    return %c0_i32, %c0_i32_0 : i32, i32
  }
  func.func @transform_3(%arg0: i32) -> (i32, i32) {
    %c0_i32 = arith.constant 0 : i32
    %c0_i32_0 = arith.constant 0 : i32
    %c0_i32_1 = arith.constant 0 : i32
    return %c0_i32, %c0_i32_0 : i32, i32
  }
  func.func @transform_4(%arg0: i32) -> (i32, i32) {
    %c0_i32 = arith.constant 0 : i32
    %c0_i32_0 = arith.constant 0 : i32
    return %arg0, %c0_i32 : i32, i32
  }
}

module attributes {stable_mosaic.version = 11 : i64} {
  func.func @_matmul_stats_kernel(%arg0: i32, %arg1: memref<128x128xbf16, #tpu.memory_space<vmem>>, %arg2: memref<128x128xbf16, #tpu.memory_space<vmem>>, %arg3: memref<128x128xbf16, #tpu.memory_space<vmem>>, %arg4: memref<1x8x128xf32, #tpu.memory_space<vmem>>) attributes {dimension_semantics = [#tpu.dimension_semantics<parallel>], iteration_bounds = array<i64: 1>, scalar_prefetch = 0 : i64, scratch_operands = 0 : i64, tpu.core_type = #tpu.core_type<tc>, window_params = [{transform_indices = @transform_0, window_bounds = array<i64: 128, 128>}, {pipeline_mode = #tpu.pipeline_mode<synchronous>, transform_indices = @transform_1, window_bounds = array<i64: 128, 128>}, {transform_indices = @transform_2, window_bounds = array<i64: 128, 128>}, {transform_indices = @transform_3, window_bounds = array<i64: 1, 8, 128>}]} {
    %c0 = arith.constant 0 : index
    %c0_0 = arith.constant 0 : index
    %0 = vector.load %arg1[%c0, %c0_0] : memref<128x128xbf16, #tpu.memory_space<vmem>>, vector<128x128xbf16>
    %c0_1 = arith.constant 0 : index
    %c0_2 = arith.constant 0 : index
    %1 = vector.load %arg2[%c0_1, %c0_2] : memref<128x128xbf16, #tpu.memory_space<vmem>>, vector<128x128xbf16>
    %cst = arith.constant dense<0.000000e+00> : vector<128x128xf32>
    %2 = tpu.matmul %0, %1, %cst {dimension_numbers = #tpu.dot_dimension_numbers<[1], [0], [0], [1], [0, 0, 1, 1], [], []>} : vector<128x128xbf16>, vector<128x128xbf16>, vector<128x128xf32> -> vector<128x128xf32>
    %3 = arith.truncf %2 : vector<128x128xf32> to vector<128x128xbf16>
    %c0_3 = arith.constant 0 : index
    %c0_4 = arith.constant 0 : index
    %4 = vector.load %arg3[%c0_3, %c0_4] : memref<128x128xbf16, #tpu.memory_space<vmem>>, vector<128x128xbf16>
    tpu.vector_store %arg3[%c0_3, %c0_4], %3 {strides = array<i32>} : memref<128x128xbf16, #tpu.memory_space<vmem>>, vector<128x128xbf16>,
    %cst_5 = arith.constant dense<0.000000e+00> : vector<128xf32>
    %5 = vector.multi_reduction <add>, %2, %cst_5 [0] : vector<128x128xf32> to vector<128xf32>
    %6 = vector.shape_cast %5 : vector<128xf32> to vector<1x128xf32>
    %7 = arith.mulf %2, %2 : vector<128x128xf32>
    %cst_6 = arith.constant dense<0.000000e+00> : vector<128xf32>
    %8 = vector.multi_reduction <add>, %7, %cst_6 [0] : vector<128x128xf32> to vector<128xf32>
    %9 = vector.shape_cast %8 : vector<128xf32> to vector<1x128xf32>
    %cst_7 = arith.constant 0.000000e+00 : f32
    %10 = vector.broadcast %cst_7 : f32 to vector<6x128xf32>
    %11 = tpu.concatenate %6, %9, %10 in 0 : vector<1x128xf32>, vector<1x128xf32>, vector<6x128xf32> -> vector<8x128xf32>
    %c0_8 = arith.constant 0 : index
    %c0_9 = arith.constant 0 : index
    %c0_10 = arith.constant 0 : index
    %12 = vector.load %arg4[%c0_8, %c0_9, %c0_10] : memref<1x8x128xf32, #tpu.memory_space<vmem>>, vector<1x8x128xf32>
    %13 = vector.shape_cast %12 : vector<1x8x128xf32> to vector<8x128xf32>
    %14 = vector.shape_cast %11 : vector<8x128xf32> to vector<1x8x128xf32>
    tpu.vector_store %arg4[%c0_8, %c0_9, %c0_10], %14 {strides = array<i32>} : memref<1x8x128xf32, #tpu.memory_space<vmem>>, vector<1x8x128xf32>,
    return
  }
  func.func @transform_0(%arg0: i32) -> (i32, i32) {
    %c0_i32 = arith.constant 0 : i32
    %c0_i32_0 = arith.constant 0 : i32
    return %arg0, %c0_i32 : i32, i32
  }
  func.func @transform_1(%arg0: i32) -> (i32, i32) {
    %c0_i32 = arith.constant 0 : i32
    %c0_i32_0 = arith.constant 0 : i32
    %c0_i32_1 = arith.constant 0 : i32
    return %c0_i32, %c0_i32_0 : i32, i32
  }
  func.func @transform_2(%arg0: i32) -> (i32, i32) {
    %c0_i32 = arith.constant 0 : i32
    %c0_i32_0 = arith.constant 0 : i32
    return %arg0, %c0_i32 : i32, i32
  }
  func.func @transform_3(%arg0: i32) -> (i32, i32, i32) {
    %c0_i32 = arith.constant 0 : i32
    %c0_i32_0 = arith.constant 0 : i32
    %c0_i32_1 = arith.constant 0 : i32
    return %arg0, %c0_i32, %c0_i32_0 : i32, i32, i32
  }
}

module attributes {stable_mosaic.version = 11 : i64} {
  func.func @_bn_act_kernel(%arg0: i32, %arg1: memref<128x128xbf16, #tpu.memory_space<vmem>>, %arg2: memref<8x128xf32, #tpu.memory_space<vmem>>, %arg3: memref<1x128xf32, #tpu.memory_space<vmem>>, %arg4: memref<1x128xf32, #tpu.memory_space<vmem>>, %arg5: memref<128x128xbf16, #tpu.memory_space<vmem>>) attributes {dimension_semantics = [#tpu.dimension_semantics<parallel>], iteration_bounds = array<i64: 1>, scalar_prefetch = 0 : i64, scratch_operands = 0 : i64, tpu.core_type = #tpu.core_type<tc>, window_params = [{transform_indices = @transform_0, window_bounds = array<i64: 128, 128>}, {pipeline_mode = #tpu.pipeline_mode<synchronous>, transform_indices = @transform_1, window_bounds = array<i64: 8, 128>}, {pipeline_mode = #tpu.pipeline_mode<synchronous>, transform_indices = @transform_2, window_bounds = array<i64: 1, 128>}, {pipeline_mode = #tpu.pipeline_mode<synchronous>, transform_indices = @transform_3, window_bounds = array<i64: 1, 128>}, {transform_indices = @transform_4, window_bounds = array<i64: 128, 128>}]} {
    %c0 = arith.constant 0 : index
    %c0_0 = arith.constant 0 : index
    %0 = vector.load %arg2[%c0, %c0_0] : memref<8x128xf32, #tpu.memory_space<vmem>>, vector<1x128xf32>
    %cst = arith.constant 7.812500e-03 : f32
    %1 = vector.broadcast %cst : f32 to vector<1x128xf32>
    %2 = arith.mulf %0, %1 : vector<1x128xf32>
    %c1 = arith.constant 1 : index
    %c0_1 = arith.constant 0 : index
    %3 = vector.load %arg2[%c1, %c0_1] : memref<8x128xf32, #tpu.memory_space<vmem>>, vector<1x128xf32>
    %cst_2 = arith.constant 7.812500e-03 : f32
    %4 = vector.broadcast %cst_2 : f32 to vector<1x128xf32>
    %5 = arith.mulf %3, %4 : vector<1x128xf32>
    %6 = arith.mulf %2, %2 : vector<1x128xf32>
    %7 = arith.subf %5, %6 : vector<1x128xf32>
    %cst_3 = arith.constant 0.000000e+00 : f32
    %8 = vector.broadcast %cst_3 : f32 to vector<1x128xf32>
    %9 = arith.maximumf %7, %8 : vector<1x128xf32>
    %c0_4 = arith.constant 0 : index
    %c0_5 = arith.constant 0 : index
    %10 = vector.load %arg3[%c0_4, %c0_5] : memref<1x128xf32, #tpu.memory_space<vmem>>, vector<1x128xf32>
    %cst_6 = arith.constant 9.99999974E-6 : f32
    %11 = vector.broadcast %cst_6 : f32 to vector<1x128xf32>
    %12 = arith.addf %9, %11 : vector<1x128xf32>
    %13 = math.rsqrt %12 : vector<1x128xf32>
    %14 = arith.mulf %10, %13 : vector<1x128xf32>
    %c0_7 = arith.constant 0 : index
    %c0_8 = arith.constant 0 : index
    %15 = vector.load %arg4[%c0_7, %c0_8] : memref<1x128xf32, #tpu.memory_space<vmem>>, vector<1x128xf32>
    %16 = arith.mulf %2, %14 : vector<1x128xf32>
    %17 = arith.subf %15, %16 : vector<1x128xf32>
    %c0_9 = arith.constant 0 : index
    %c0_10 = arith.constant 0 : index
    %18 = vector.load %arg1[%c0_9, %c0_10] : memref<128x128xbf16, #tpu.memory_space<vmem>>, vector<128x128xbf16>
    %19 = arith.extf %18 : vector<128x128xbf16> to vector<128x128xf32>
    %20 = vector.broadcast %14 : vector<1x128xf32> to vector<128x128xf32>
    %21 = arith.mulf %19, %20 : vector<128x128xf32>
    %22 = vector.broadcast %17 : vector<1x128xf32> to vector<128x128xf32>
    %23 = arith.addf %21, %22 : vector<128x128xf32>
    %cst_11 = arith.constant 0.000000e+00 : f32
    %24 = vector.broadcast %cst_11 : f32 to vector<128x128xf32>
    %25 = arith.maximumf %23, %24 : vector<128x128xf32>
    %26 = arith.truncf %25 : vector<128x128xf32> to vector<128x128xbf16>
    %c0_12 = arith.constant 0 : index
    %c0_13 = arith.constant 0 : index
    %27 = vector.load %arg5[%c0_12, %c0_13] : memref<128x128xbf16, #tpu.memory_space<vmem>>, vector<128x128xbf16>
    tpu.vector_store %arg5[%c0_12, %c0_13], %26 {strides = array<i32>} : memref<128x128xbf16, #tpu.memory_space<vmem>>, vector<128x128xbf16>,
    return
  }
  func.func @transform_0(%arg0: i32) -> (i32, i32) {
    %c0_i32 = arith.constant 0 : i32
    %c0_i32_0 = arith.constant 0 : i32
    return %arg0, %c0_i32 : i32, i32
  }
  func.func @transform_1(%arg0: i32) -> (i32, i32) {
    %c0_i32 = arith.constant 0 : i32
    %c0_i32_0 = arith.constant 0 : i32
    %c0_i32_1 = arith.constant 0 : i32
    return %c0_i32, %c0_i32_0 : i32, i32
  }
  func.func @transform_2(%arg0: i32) -> (i32, i32) {
    %c0_i32 = arith.constant 0 : i32
    %c0_i32_0 = arith.constant 0 : i32
    %c0_i32_1 = arith.constant 0 : i32
    return %c0_i32, %c0_i32_0 : i32, i32
  }
  func.func @transform_3(%arg0: i32) -> (i32, i32) {
    %c0_i32 = arith.constant 0 : i32
    %c0_i32_0 = arith.constant 0 : i32
    %c0_i32_1 = arith.constant 0 : i32
    return %c0_i32, %c0_i32_0 : i32, i32
  }
  func.func @transform_4(%arg0: i32) -> (i32, i32) {
    %c0_i32 = arith.constant 0 : i32
    %c0_i32_0 = arith.constant 0 : i32
    return %arg0, %c0_i32 : i32, i32
  }
}

module attributes {stable_mosaic.version = 11 : i64} {
  func.func @_matmul_stats_kernel(%arg0: i32, %arg1: memref<32x256xbf16, #tpu.memory_space<vmem>>, %arg2: memref<256x128xbf16, #tpu.memory_space<vmem>>, %arg3: memref<32x128xbf16, #tpu.memory_space<vmem>>, %arg4: memref<1x8x128xf32, #tpu.memory_space<vmem>>) attributes {dimension_semantics = [#tpu.dimension_semantics<parallel>], iteration_bounds = array<i64: 1>, scalar_prefetch = 0 : i64, scratch_operands = 0 : i64, tpu.core_type = #tpu.core_type<tc>, window_params = [{transform_indices = @transform_0, window_bounds = array<i64: 32, 256>}, {pipeline_mode = #tpu.pipeline_mode<synchronous>, transform_indices = @transform_1, window_bounds = array<i64: 256, 128>}, {transform_indices = @transform_2, window_bounds = array<i64: 32, 128>}, {transform_indices = @transform_3, window_bounds = array<i64: 1, 8, 128>}]} {
    %c0 = arith.constant 0 : index
    %c0_0 = arith.constant 0 : index
    %0 = vector.load %arg1[%c0, %c0_0] : memref<32x256xbf16, #tpu.memory_space<vmem>>, vector<32x256xbf16>
    %c0_1 = arith.constant 0 : index
    %c0_2 = arith.constant 0 : index
    %1 = vector.load %arg2[%c0_1, %c0_2] : memref<256x128xbf16, #tpu.memory_space<vmem>>, vector<256x128xbf16>
    %cst = arith.constant dense<0.000000e+00> : vector<32x128xf32>
    %2 = tpu.matmul %0, %1, %cst {dimension_numbers = #tpu.dot_dimension_numbers<[1], [0], [0], [1], [0, 0, 1, 1], [], []>} : vector<32x256xbf16>, vector<256x128xbf16>, vector<32x128xf32> -> vector<32x128xf32>
    %3 = arith.truncf %2 : vector<32x128xf32> to vector<32x128xbf16>
    %c0_3 = arith.constant 0 : index
    %c0_4 = arith.constant 0 : index
    %4 = vector.load %arg3[%c0_3, %c0_4] : memref<32x128xbf16, #tpu.memory_space<vmem>>, vector<32x128xbf16>
    tpu.vector_store %arg3[%c0_3, %c0_4], %3 {strides = array<i32>} : memref<32x128xbf16, #tpu.memory_space<vmem>>, vector<32x128xbf16>,
    %cst_5 = arith.constant dense<0.000000e+00> : vector<128xf32>
    %5 = vector.multi_reduction <add>, %2, %cst_5 [0] : vector<32x128xf32> to vector<128xf32>
    %6 = vector.shape_cast %5 : vector<128xf32> to vector<1x128xf32>
    %7 = arith.mulf %2, %2 : vector<32x128xf32>
    %cst_6 = arith.constant dense<0.000000e+00> : vector<128xf32>
    %8 = vector.multi_reduction <add>, %7, %cst_6 [0] : vector<32x128xf32> to vector<128xf32>
    %9 = vector.shape_cast %8 : vector<128xf32> to vector<1x128xf32>
    %cst_7 = arith.constant 0.000000e+00 : f32
    %10 = vector.broadcast %cst_7 : f32 to vector<6x128xf32>
    %11 = tpu.concatenate %6, %9, %10 in 0 : vector<1x128xf32>, vector<1x128xf32>, vector<6x128xf32> -> vector<8x128xf32>
    %c0_8 = arith.constant 0 : index
    %c0_9 = arith.constant 0 : index
    %c0_10 = arith.constant 0 : index
    %12 = vector.load %arg4[%c0_8, %c0_9, %c0_10] : memref<1x8x128xf32, #tpu.memory_space<vmem>>, vector<1x8x128xf32>
    %13 = vector.shape_cast %12 : vector<1x8x128xf32> to vector<8x128xf32>
    %14 = vector.shape_cast %11 : vector<8x128xf32> to vector<1x8x128xf32>
    tpu.vector_store %arg4[%c0_8, %c0_9, %c0_10], %14 {strides = array<i32>} : memref<1x8x128xf32, #tpu.memory_space<vmem>>, vector<1x8x128xf32>,
    return
  }
  func.func @transform_0(%arg0: i32) -> (i32, i32) {
    %c0_i32 = arith.constant 0 : i32
    %c0_i32_0 = arith.constant 0 : i32
    return %arg0, %c0_i32 : i32, i32
  }
  func.func @transform_1(%arg0: i32) -> (i32, i32) {
    %c0_i32 = arith.constant 0 : i32
    %c0_i32_0 = arith.constant 0 : i32
    %c0_i32_1 = arith.constant 0 : i32
    return %c0_i32, %c0_i32_0 : i32, i32
  }
  func.func @transform_2(%arg0: i32) -> (i32, i32) {
    %c0_i32 = arith.constant 0 : i32
    %c0_i32_0 = arith.constant 0 : i32
    return %arg0, %c0_i32 : i32, i32
  }
  func.func @transform_3(%arg0: i32) -> (i32, i32, i32) {
    %c0_i32 = arith.constant 0 : i32
    %c0_i32_0 = arith.constant 0 : i32
    %c0_i32_1 = arith.constant 0 : i32
    return %arg0, %c0_i32, %c0_i32_0 : i32, i32, i32
  }
}

module attributes {stable_mosaic.version = 11 : i64} {
  func.func @_bn_act_kernel(%arg0: i32, %arg1: memref<32x128xbf16, #tpu.memory_space<vmem>>, %arg2: memref<8x128xf32, #tpu.memory_space<vmem>>, %arg3: memref<1x128xf32, #tpu.memory_space<vmem>>, %arg4: memref<1x128xf32, #tpu.memory_space<vmem>>, %arg5: memref<32x128xbf16, #tpu.memory_space<vmem>>) attributes {dimension_semantics = [#tpu.dimension_semantics<parallel>], iteration_bounds = array<i64: 1>, scalar_prefetch = 0 : i64, scratch_operands = 0 : i64, tpu.core_type = #tpu.core_type<tc>, window_params = [{transform_indices = @transform_0, window_bounds = array<i64: 32, 128>}, {pipeline_mode = #tpu.pipeline_mode<synchronous>, transform_indices = @transform_1, window_bounds = array<i64: 8, 128>}, {pipeline_mode = #tpu.pipeline_mode<synchronous>, transform_indices = @transform_2, window_bounds = array<i64: 1, 128>}, {pipeline_mode = #tpu.pipeline_mode<synchronous>, transform_indices = @transform_3, window_bounds = array<i64: 1, 128>}, {transform_indices = @transform_4, window_bounds = array<i64: 32, 128>}]} {
    %c0 = arith.constant 0 : index
    %c0_0 = arith.constant 0 : index
    %0 = vector.load %arg2[%c0, %c0_0] : memref<8x128xf32, #tpu.memory_space<vmem>>, vector<1x128xf32>
    %cst = arith.constant 3.125000e-02 : f32
    %1 = vector.broadcast %cst : f32 to vector<1x128xf32>
    %2 = arith.mulf %0, %1 : vector<1x128xf32>
    %c1 = arith.constant 1 : index
    %c0_1 = arith.constant 0 : index
    %3 = vector.load %arg2[%c1, %c0_1] : memref<8x128xf32, #tpu.memory_space<vmem>>, vector<1x128xf32>
    %cst_2 = arith.constant 3.125000e-02 : f32
    %4 = vector.broadcast %cst_2 : f32 to vector<1x128xf32>
    %5 = arith.mulf %3, %4 : vector<1x128xf32>
    %6 = arith.mulf %2, %2 : vector<1x128xf32>
    %7 = arith.subf %5, %6 : vector<1x128xf32>
    %cst_3 = arith.constant 0.000000e+00 : f32
    %8 = vector.broadcast %cst_3 : f32 to vector<1x128xf32>
    %9 = arith.maximumf %7, %8 : vector<1x128xf32>
    %c0_4 = arith.constant 0 : index
    %c0_5 = arith.constant 0 : index
    %10 = vector.load %arg3[%c0_4, %c0_5] : memref<1x128xf32, #tpu.memory_space<vmem>>, vector<1x128xf32>
    %cst_6 = arith.constant 9.99999974E-6 : f32
    %11 = vector.broadcast %cst_6 : f32 to vector<1x128xf32>
    %12 = arith.addf %9, %11 : vector<1x128xf32>
    %13 = math.rsqrt %12 : vector<1x128xf32>
    %14 = arith.mulf %10, %13 : vector<1x128xf32>
    %c0_7 = arith.constant 0 : index
    %c0_8 = arith.constant 0 : index
    %15 = vector.load %arg4[%c0_7, %c0_8] : memref<1x128xf32, #tpu.memory_space<vmem>>, vector<1x128xf32>
    %16 = arith.mulf %2, %14 : vector<1x128xf32>
    %17 = arith.subf %15, %16 : vector<1x128xf32>
    %c0_9 = arith.constant 0 : index
    %c0_10 = arith.constant 0 : index
    %18 = vector.load %arg1[%c0_9, %c0_10] : memref<32x128xbf16, #tpu.memory_space<vmem>>, vector<32x128xbf16>
    %19 = arith.extf %18 : vector<32x128xbf16> to vector<32x128xf32>
    %20 = vector.broadcast %14 : vector<1x128xf32> to vector<32x128xf32>
    %21 = arith.mulf %19, %20 : vector<32x128xf32>
    %22 = vector.broadcast %17 : vector<1x128xf32> to vector<32x128xf32>
    %23 = arith.addf %21, %22 : vector<32x128xf32>
    %cst_11 = arith.constant 0.000000e+00 : f32
    %24 = vector.broadcast %cst_11 : f32 to vector<32x128xf32>
    %25 = arith.maximumf %23, %24 : vector<32x128xf32>
    %26 = arith.truncf %25 : vector<32x128xf32> to vector<32x128xbf16>
    %c0_12 = arith.constant 0 : index
    %c0_13 = arith.constant 0 : index
    %27 = vector.load %arg5[%c0_12, %c0_13] : memref<32x128xbf16, #tpu.memory_space<vmem>>, vector<32x128xbf16>
    tpu.vector_store %arg5[%c0_12, %c0_13], %26 {strides = array<i32>} : memref<32x128xbf16, #tpu.memory_space<vmem>>, vector<32x128xbf16>,
    return
  }
  func.func @transform_0(%arg0: i32) -> (i32, i32) {
    %c0_i32 = arith.constant 0 : i32
    %c0_i32_0 = arith.constant 0 : i32
    return %arg0, %c0_i32 : i32, i32
  }
  func.func @transform_1(%arg0: i32) -> (i32, i32) {
    %c0_i32 = arith.constant 0 : i32
    %c0_i32_0 = arith.constant 0 : i32
    %c0_i32_1 = arith.constant 0 : i32
    return %c0_i32, %c0_i32_0 : i32, i32
  }
  func.func @transform_2(%arg0: i32) -> (i32, i32) {
    %c0_i32 = arith.constant 0 : i32
    %c0_i32_0 = arith.constant 0 : i32
    %c0_i32_1 = arith.constant 0 : i32
    return %c0_i32, %c0_i32_0 : i32, i32
  }
  func.func @transform_3(%arg0: i32) -> (i32, i32) {
    %c0_i32 = arith.constant 0 : i32
    %c0_i32_0 = arith.constant 0 : i32
    %c0_i32_1 = arith.constant 0 : i32
    return %c0_i32, %c0_i32_0 : i32, i32
  }
  func.func @transform_4(%arg0: i32) -> (i32, i32) {
    %c0_i32 = arith.constant 0 : i32
    %c0_i32_0 = arith.constant 0 : i32
    return %arg0, %c0_i32 : i32, i32
  }
}

module attributes {stable_mosaic.version = 11 : i64} {
  func.func @_matmul_stats_kernel(%arg0: i32, %arg1: memref<32x384xbf16, #tpu.memory_space<vmem>>, %arg2: memref<384x128xbf16, #tpu.memory_space<vmem>>, %arg3: memref<32x128xbf16, #tpu.memory_space<vmem>>, %arg4: memref<1x8x128xf32, #tpu.memory_space<vmem>>) attributes {dimension_semantics = [#tpu.dimension_semantics<parallel>], iteration_bounds = array<i64: 1>, scalar_prefetch = 0 : i64, scratch_operands = 0 : i64, tpu.core_type = #tpu.core_type<tc>, window_params = [{transform_indices = @transform_0, window_bounds = array<i64: 32, 384>}, {pipeline_mode = #tpu.pipeline_mode<synchronous>, transform_indices = @transform_1, window_bounds = array<i64: 384, 128>}, {transform_indices = @transform_2, window_bounds = array<i64: 32, 128>}, {transform_indices = @transform_3, window_bounds = array<i64: 1, 8, 128>}]} {
    %c0 = arith.constant 0 : index
    %c0_0 = arith.constant 0 : index
    %0 = vector.load %arg1[%c0, %c0_0] : memref<32x384xbf16, #tpu.memory_space<vmem>>, vector<32x384xbf16>
    %c0_1 = arith.constant 0 : index
    %c0_2 = arith.constant 0 : index
    %1 = vector.load %arg2[%c0_1, %c0_2] : memref<384x128xbf16, #tpu.memory_space<vmem>>, vector<384x128xbf16>
    %cst = arith.constant dense<0.000000e+00> : vector<32x128xf32>
    %2 = tpu.matmul %0, %1, %cst {dimension_numbers = #tpu.dot_dimension_numbers<[1], [0], [0], [1], [0, 0, 1, 1], [], []>} : vector<32x384xbf16>, vector<384x128xbf16>, vector<32x128xf32> -> vector<32x128xf32>
    %3 = arith.truncf %2 : vector<32x128xf32> to vector<32x128xbf16>
    %c0_3 = arith.constant 0 : index
    %c0_4 = arith.constant 0 : index
    %4 = vector.load %arg3[%c0_3, %c0_4] : memref<32x128xbf16, #tpu.memory_space<vmem>>, vector<32x128xbf16>
    tpu.vector_store %arg3[%c0_3, %c0_4], %3 {strides = array<i32>} : memref<32x128xbf16, #tpu.memory_space<vmem>>, vector<32x128xbf16>,
    %cst_5 = arith.constant dense<0.000000e+00> : vector<128xf32>
    %5 = vector.multi_reduction <add>, %2, %cst_5 [0] : vector<32x128xf32> to vector<128xf32>
    %6 = vector.shape_cast %5 : vector<128xf32> to vector<1x128xf32>
    %7 = arith.mulf %2, %2 : vector<32x128xf32>
    %cst_6 = arith.constant dense<0.000000e+00> : vector<128xf32>
    %8 = vector.multi_reduction <add>, %7, %cst_6 [0] : vector<32x128xf32> to vector<128xf32>
    %9 = vector.shape_cast %8 : vector<128xf32> to vector<1x128xf32>
    %cst_7 = arith.constant 0.000000e+00 : f32
    %10 = vector.broadcast %cst_7 : f32 to vector<6x128xf32>
    %11 = tpu.concatenate %6, %9, %10 in 0 : vector<1x128xf32>, vector<1x128xf32>, vector<6x128xf32> -> vector<8x128xf32>
    %c0_8 = arith.constant 0 : index
    %c0_9 = arith.constant 0 : index
    %c0_10 = arith.constant 0 : index
    %12 = vector.load %arg4[%c0_8, %c0_9, %c0_10] : memref<1x8x128xf32, #tpu.memory_space<vmem>>, vector<1x8x128xf32>
    %13 = vector.shape_cast %12 : vector<1x8x128xf32> to vector<8x128xf32>
    %14 = vector.shape_cast %11 : vector<8x128xf32> to vector<1x8x128xf32>
    tpu.vector_store %arg4[%c0_8, %c0_9, %c0_10], %14 {strides = array<i32>} : memref<1x8x128xf32, #tpu.memory_space<vmem>>, vector<1x8x128xf32>,
    return
  }
  func.func @transform_0(%arg0: i32) -> (i32, i32) {
    %c0_i32 = arith.constant 0 : i32
    %c0_i32_0 = arith.constant 0 : i32
    return %arg0, %c0_i32 : i32, i32
  }
  func.func @transform_1(%arg0: i32) -> (i32, i32) {
    %c0_i32 = arith.constant 0 : i32
    %c0_i32_0 = arith.constant 0 : i32
    %c0_i32_1 = arith.constant 0 : i32
    return %c0_i32, %c0_i32_0 : i32, i32
  }
  func.func @transform_2(%arg0: i32) -> (i32, i32) {
    %c0_i32 = arith.constant 0 : i32
    %c0_i32_0 = arith.constant 0 : i32
    return %arg0, %c0_i32 : i32, i32
  }
  func.func @transform_3(%arg0: i32) -> (i32, i32, i32) {
    %c0_i32 = arith.constant 0 : i32
    %c0_i32_0 = arith.constant 0 : i32
    %c0_i32_1 = arith.constant 0 : i32
    return %arg0, %c0_i32, %c0_i32_0 : i32, i32, i32
  }
}

module attributes {stable_mosaic.version = 11 : i64} {
  func.func @_bn_act_kernel(%arg0: i32, %arg1: memref<32x128xbf16, #tpu.memory_space<vmem>>, %arg2: memref<8x128xf32, #tpu.memory_space<vmem>>, %arg3: memref<1x128xf32, #tpu.memory_space<vmem>>, %arg4: memref<1x128xf32, #tpu.memory_space<vmem>>, %arg5: memref<32x128xbf16, #tpu.memory_space<vmem>>, %arg6: memref<32x128xbf16, #tpu.memory_space<vmem>>) attributes {dimension_semantics = [#tpu.dimension_semantics<parallel>], iteration_bounds = array<i64: 1>, scalar_prefetch = 0 : i64, scratch_operands = 0 : i64, tpu.core_type = #tpu.core_type<tc>, window_params = [{transform_indices = @transform_0, window_bounds = array<i64: 32, 128>}, {pipeline_mode = #tpu.pipeline_mode<synchronous>, transform_indices = @transform_1, window_bounds = array<i64: 8, 128>}, {pipeline_mode = #tpu.pipeline_mode<synchronous>, transform_indices = @transform_2, window_bounds = array<i64: 1, 128>}, {pipeline_mode = #tpu.pipeline_mode<synchronous>, transform_indices = @transform_3, window_bounds = array<i64: 1, 128>}, {transform_indices = @transform_4, window_bounds = array<i64: 32, 128>}, {transform_indices = @transform_5, window_bounds = array<i64: 32, 128>}]} {
    %c0 = arith.constant 0 : index
    %c0_0 = arith.constant 0 : index
    %0 = vector.load %arg2[%c0, %c0_0] : memref<8x128xf32, #tpu.memory_space<vmem>>, vector<1x128xf32>
    %cst = arith.constant 3.125000e-02 : f32
    %1 = vector.broadcast %cst : f32 to vector<1x128xf32>
    %2 = arith.mulf %0, %1 : vector<1x128xf32>
    %c1 = arith.constant 1 : index
    %c0_1 = arith.constant 0 : index
    %3 = vector.load %arg2[%c1, %c0_1] : memref<8x128xf32, #tpu.memory_space<vmem>>, vector<1x128xf32>
    %cst_2 = arith.constant 3.125000e-02 : f32
    %4 = vector.broadcast %cst_2 : f32 to vector<1x128xf32>
    %5 = arith.mulf %3, %4 : vector<1x128xf32>
    %6 = arith.mulf %2, %2 : vector<1x128xf32>
    %7 = arith.subf %5, %6 : vector<1x128xf32>
    %cst_3 = arith.constant 0.000000e+00 : f32
    %8 = vector.broadcast %cst_3 : f32 to vector<1x128xf32>
    %9 = arith.maximumf %7, %8 : vector<1x128xf32>
    %c0_4 = arith.constant 0 : index
    %c0_5 = arith.constant 0 : index
    %10 = vector.load %arg3[%c0_4, %c0_5] : memref<1x128xf32, #tpu.memory_space<vmem>>, vector<1x128xf32>
    %cst_6 = arith.constant 9.99999974E-6 : f32
    %11 = vector.broadcast %cst_6 : f32 to vector<1x128xf32>
    %12 = arith.addf %9, %11 : vector<1x128xf32>
    %13 = math.rsqrt %12 : vector<1x128xf32>
    %14 = arith.mulf %10, %13 : vector<1x128xf32>
    %c0_7 = arith.constant 0 : index
    %c0_8 = arith.constant 0 : index
    %15 = vector.load %arg4[%c0_7, %c0_8] : memref<1x128xf32, #tpu.memory_space<vmem>>, vector<1x128xf32>
    %16 = arith.mulf %2, %14 : vector<1x128xf32>
    %17 = arith.subf %15, %16 : vector<1x128xf32>
    %c0_9 = arith.constant 0 : index
    %c0_10 = arith.constant 0 : index
    %18 = vector.load %arg1[%c0_9, %c0_10] : memref<32x128xbf16, #tpu.memory_space<vmem>>, vector<32x128xbf16>
    %19 = arith.extf %18 : vector<32x128xbf16> to vector<32x128xf32>
    %20 = vector.broadcast %14 : vector<1x128xf32> to vector<32x128xf32>
    %21 = arith.mulf %19, %20 : vector<32x128xf32>
    %22 = vector.broadcast %17 : vector<1x128xf32> to vector<32x128xf32>
    %23 = arith.addf %21, %22 : vector<32x128xf32>
    %c0_11 = arith.constant 0 : index
    %c0_12 = arith.constant 0 : index
    %24 = vector.load %arg5[%c0_11, %c0_12] : memref<32x128xbf16, #tpu.memory_space<vmem>>, vector<32x128xbf16>
    %25 = arith.extf %24 : vector<32x128xbf16> to vector<32x128xf32>
    %26 = arith.addf %23, %25 : vector<32x128xf32>
    %cst_13 = arith.constant 0.000000e+00 : f32
    %27 = vector.broadcast %cst_13 : f32 to vector<32x128xf32>
    %28 = arith.maximumf %26, %27 : vector<32x128xf32>
    %29 = arith.truncf %28 : vector<32x128xf32> to vector<32x128xbf16>
    %c0_14 = arith.constant 0 : index
    %c0_15 = arith.constant 0 : index
    %30 = vector.load %arg6[%c0_14, %c0_15] : memref<32x128xbf16, #tpu.memory_space<vmem>>, vector<32x128xbf16>
    tpu.vector_store %arg6[%c0_14, %c0_15], %29 {strides = array<i32>} : memref<32x128xbf16, #tpu.memory_space<vmem>>, vector<32x128xbf16>,
    return
  }
  func.func @transform_0(%arg0: i32) -> (i32, i32) {
    %c0_i32 = arith.constant 0 : i32
    %c0_i32_0 = arith.constant 0 : i32
    return %arg0, %c0_i32 : i32, i32
  }
  func.func @transform_1(%arg0: i32) -> (i32, i32) {
    %c0_i32 = arith.constant 0 : i32
    %c0_i32_0 = arith.constant 0 : i32
    %c0_i32_1 = arith.constant 0 : i32
    return %c0_i32, %c0_i32_0 : i32, i32
  }
  func.func @transform_2(%arg0: i32) -> (i32, i32) {
    %c0_i32 = arith.constant 0 : i32
    %c0_i32_0 = arith.constant 0 : i32
    %c0_i32_1 = arith.constant 0 : i32
    return %c0_i32, %c0_i32_0 : i32, i32
  }
  func.func @transform_3(%arg0: i32) -> (i32, i32) {
    %c0_i32 = arith.constant 0 : i32
    %c0_i32_0 = arith.constant 0 : i32
    %c0_i32_1 = arith.constant 0 : i32
    return %c0_i32, %c0_i32_0 : i32, i32
  }
  func.func @transform_4(%arg0: i32) -> (i32, i32) {
    %c0_i32 = arith.constant 0 : i32
    %c0_i32_0 = arith.constant 0 : i32
    return %arg0, %c0_i32 : i32, i32
  }
  func.func @transform_5(%arg0: i32) -> (i32, i32) {
    %c0_i32 = arith.constant 0 : i32
    %c0_i32_0 = arith.constant 0 : i32
    return %arg0, %c0_i32 : i32, i32
  }
}

module attributes {stable_mosaic.version = 11 : i64} {
  func.func @_matmul_stats_kernel(%arg0: i32, %arg1: memref<32x128xbf16, #tpu.memory_space<vmem>>, %arg2: memref<128x128xbf16, #tpu.memory_space<vmem>>, %arg3: memref<32x128xbf16, #tpu.memory_space<vmem>>, %arg4: memref<1x8x128xf32, #tpu.memory_space<vmem>>) attributes {dimension_semantics = [#tpu.dimension_semantics<parallel>], iteration_bounds = array<i64: 1>, scalar_prefetch = 0 : i64, scratch_operands = 0 : i64, tpu.core_type = #tpu.core_type<tc>, window_params = [{transform_indices = @transform_0, window_bounds = array<i64: 32, 128>}, {pipeline_mode = #tpu.pipeline_mode<synchronous>, transform_indices = @transform_1, window_bounds = array<i64: 128, 128>}, {transform_indices = @transform_2, window_bounds = array<i64: 32, 128>}, {transform_indices = @transform_3, window_bounds = array<i64: 1, 8, 128>}]} {
    %c0 = arith.constant 0 : index
    %c0_0 = arith.constant 0 : index
    %0 = vector.load %arg1[%c0, %c0_0] : memref<32x128xbf16, #tpu.memory_space<vmem>>, vector<32x128xbf16>
    %c0_1 = arith.constant 0 : index
    %c0_2 = arith.constant 0 : index
    %1 = vector.load %arg2[%c0_1, %c0_2] : memref<128x128xbf16, #tpu.memory_space<vmem>>, vector<128x128xbf16>
    %cst = arith.constant dense<0.000000e+00> : vector<32x128xf32>
    %2 = tpu.matmul %0, %1, %cst {dimension_numbers = #tpu.dot_dimension_numbers<[1], [0], [0], [1], [0, 0, 1, 1], [], []>} : vector<32x128xbf16>, vector<128x128xbf16>, vector<32x128xf32> -> vector<32x128xf32>
    %3 = arith.truncf %2 : vector<32x128xf32> to vector<32x128xbf16>
    %c0_3 = arith.constant 0 : index
    %c0_4 = arith.constant 0 : index
    %4 = vector.load %arg3[%c0_3, %c0_4] : memref<32x128xbf16, #tpu.memory_space<vmem>>, vector<32x128xbf16>
    tpu.vector_store %arg3[%c0_3, %c0_4], %3 {strides = array<i32>} : memref<32x128xbf16, #tpu.memory_space<vmem>>, vector<32x128xbf16>,
    %cst_5 = arith.constant dense<0.000000e+00> : vector<128xf32>
    %5 = vector.multi_reduction <add>, %2, %cst_5 [0] : vector<32x128xf32> to vector<128xf32>
    %6 = vector.shape_cast %5 : vector<128xf32> to vector<1x128xf32>
    %7 = arith.mulf %2, %2 : vector<32x128xf32>
    %cst_6 = arith.constant dense<0.000000e+00> : vector<128xf32>
    %8 = vector.multi_reduction <add>, %7, %cst_6 [0] : vector<32x128xf32> to vector<128xf32>
    %9 = vector.shape_cast %8 : vector<128xf32> to vector<1x128xf32>
    %cst_7 = arith.constant 0.000000e+00 : f32
    %10 = vector.broadcast %cst_7 : f32 to vector<6x128xf32>
    %11 = tpu.concatenate %6, %9, %10 in 0 : vector<1x128xf32>, vector<1x128xf32>, vector<6x128xf32> -> vector<8x128xf32>
    %c0_8 = arith.constant 0 : index
    %c0_9 = arith.constant 0 : index
    %c0_10 = arith.constant 0 : index
    %12 = vector.load %arg4[%c0_8, %c0_9, %c0_10] : memref<1x8x128xf32, #tpu.memory_space<vmem>>, vector<1x8x128xf32>
    %13 = vector.shape_cast %12 : vector<1x8x128xf32> to vector<8x128xf32>
    %14 = vector.shape_cast %11 : vector<8x128xf32> to vector<1x8x128xf32>
    tpu.vector_store %arg4[%c0_8, %c0_9, %c0_10], %14 {strides = array<i32>} : memref<1x8x128xf32, #tpu.memory_space<vmem>>, vector<1x8x128xf32>,
    return
  }
  func.func @transform_0(%arg0: i32) -> (i32, i32) {
    %c0_i32 = arith.constant 0 : i32
    %c0_i32_0 = arith.constant 0 : i32
    return %arg0, %c0_i32 : i32, i32
  }
  func.func @transform_1(%arg0: i32) -> (i32, i32) {
    %c0_i32 = arith.constant 0 : i32
    %c0_i32_0 = arith.constant 0 : i32
    %c0_i32_1 = arith.constant 0 : i32
    return %c0_i32, %c0_i32_0 : i32, i32
  }
  func.func @transform_2(%arg0: i32) -> (i32, i32) {
    %c0_i32 = arith.constant 0 : i32
    %c0_i32_0 = arith.constant 0 : i32
    return %arg0, %c0_i32 : i32, i32
  }
  func.func @transform_3(%arg0: i32) -> (i32, i32, i32) {
    %c0_i32 = arith.constant 0 : i32
    %c0_i32_0 = arith.constant 0 : i32
    %c0_i32_1 = arith.constant 0 : i32
    return %arg0, %c0_i32, %c0_i32_0 : i32, i32, i32
  }
}

module attributes {stable_mosaic.version = 11 : i64} {
  func.func @_bn_act_kernel(%arg0: i32, %arg1: memref<32x128xbf16, #tpu.memory_space<vmem>>, %arg2: memref<8x128xf32, #tpu.memory_space<vmem>>, %arg3: memref<1x128xf32, #tpu.memory_space<vmem>>, %arg4: memref<1x128xf32, #tpu.memory_space<vmem>>, %arg5: memref<32x128xbf16, #tpu.memory_space<vmem>>) attributes {dimension_semantics = [#tpu.dimension_semantics<parallel>], iteration_bounds = array<i64: 1>, scalar_prefetch = 0 : i64, scratch_operands = 0 : i64, tpu.core_type = #tpu.core_type<tc>, window_params = [{transform_indices = @transform_0, window_bounds = array<i64: 32, 128>}, {pipeline_mode = #tpu.pipeline_mode<synchronous>, transform_indices = @transform_1, window_bounds = array<i64: 8, 128>}, {pipeline_mode = #tpu.pipeline_mode<synchronous>, transform_indices = @transform_2, window_bounds = array<i64: 1, 128>}, {pipeline_mode = #tpu.pipeline_mode<synchronous>, transform_indices = @transform_3, window_bounds = array<i64: 1, 128>}, {transform_indices = @transform_4, window_bounds = array<i64: 32, 128>}]} {
    %c0 = arith.constant 0 : index
    %c0_0 = arith.constant 0 : index
    %0 = vector.load %arg2[%c0, %c0_0] : memref<8x128xf32, #tpu.memory_space<vmem>>, vector<1x128xf32>
    %cst = arith.constant 7.812500e-03 : f32
    %1 = vector.broadcast %cst : f32 to vector<1x128xf32>
    %2 = arith.mulf %0, %1 : vector<1x128xf32>
    %c1 = arith.constant 1 : index
    %c0_1 = arith.constant 0 : index
    %3 = vector.load %arg2[%c1, %c0_1] : memref<8x128xf32, #tpu.memory_space<vmem>>, vector<1x128xf32>
    %cst_2 = arith.constant 7.812500e-03 : f32
    %4 = vector.broadcast %cst_2 : f32 to vector<1x128xf32>
    %5 = arith.mulf %3, %4 : vector<1x128xf32>
    %6 = arith.mulf %2, %2 : vector<1x128xf32>
    %7 = arith.subf %5, %6 : vector<1x128xf32>
    %cst_3 = arith.constant 0.000000e+00 : f32
    %8 = vector.broadcast %cst_3 : f32 to vector<1x128xf32>
    %9 = arith.maximumf %7, %8 : vector<1x128xf32>
    %c0_4 = arith.constant 0 : index
    %c0_5 = arith.constant 0 : index
    %10 = vector.load %arg3[%c0_4, %c0_5] : memref<1x128xf32, #tpu.memory_space<vmem>>, vector<1x128xf32>
    %cst_6 = arith.constant 9.99999974E-6 : f32
    %11 = vector.broadcast %cst_6 : f32 to vector<1x128xf32>
    %12 = arith.addf %9, %11 : vector<1x128xf32>
    %13 = math.rsqrt %12 : vector<1x128xf32>
    %14 = arith.mulf %10, %13 : vector<1x128xf32>
    %c0_7 = arith.constant 0 : index
    %c0_8 = arith.constant 0 : index
    %15 = vector.load %arg4[%c0_7, %c0_8] : memref<1x128xf32, #tpu.memory_space<vmem>>, vector<1x128xf32>
    %16 = arith.mulf %2, %14 : vector<1x128xf32>
    %17 = arith.subf %15, %16 : vector<1x128xf32>
    %c0_9 = arith.constant 0 : index
    %c0_10 = arith.constant 0 : index
    %18 = vector.load %arg1[%c0_9, %c0_10] : memref<32x128xbf16, #tpu.memory_space<vmem>>, vector<32x128xbf16>
    %19 = arith.extf %18 : vector<32x128xbf16> to vector<32x128xf32>
    %20 = vector.broadcast %14 : vector<1x128xf32> to vector<32x128xf32>
    %21 = arith.mulf %19, %20 : vector<32x128xf32>
    %22 = vector.broadcast %17 : vector<1x128xf32> to vector<32x128xf32>
    %23 = arith.addf %21, %22 : vector<32x128xf32>
    %cst_11 = arith.constant 0.000000e+00 : f32
    %24 = vector.broadcast %cst_11 : f32 to vector<32x128xf32>
    %25 = arith.maximumf %23, %24 : vector<32x128xf32>
    %26 = arith.truncf %25 : vector<32x128xf32> to vector<32x128xbf16>
    %c0_12 = arith.constant 0 : index
    %c0_13 = arith.constant 0 : index
    %27 = vector.load %arg5[%c0_12, %c0_13] : memref<32x128xbf16, #tpu.memory_space<vmem>>, vector<32x128xbf16>
    tpu.vector_store %arg5[%c0_12, %c0_13], %26 {strides = array<i32>} : memref<32x128xbf16, #tpu.memory_space<vmem>>, vector<32x128xbf16>,
    return
  }
  func.func @transform_0(%arg0: i32) -> (i32, i32) {
    %c0_i32 = arith.constant 0 : i32
    %c0_i32_0 = arith.constant 0 : i32
    return %arg0, %c0_i32 : i32, i32
  }
  func.func @transform_1(%arg0: i32) -> (i32, i32) {
    %c0_i32 = arith.constant 0 : i32
    %c0_i32_0 = arith.constant 0 : i32
    %c0_i32_1 = arith.constant 0 : i32
    return %c0_i32, %c0_i32_0 : i32, i32
  }
  func.func @transform_2(%arg0: i32) -> (i32, i32) {
    %c0_i32 = arith.constant 0 : i32
    %c0_i32_0 = arith.constant 0 : i32
    %c0_i32_1 = arith.constant 0 : i32
    return %c0_i32, %c0_i32_0 : i32, i32
  }
  func.func @transform_3(%arg0: i32) -> (i32, i32) {
    %c0_i32 = arith.constant 0 : i32
    %c0_i32_0 = arith.constant 0 : i32
    %c0_i32_1 = arith.constant 0 : i32
    return %c0_i32, %c0_i32_0 : i32, i32
  }
  func.func @transform_4(%arg0: i32) -> (i32, i32) {
    %c0_i32 = arith.constant 0 : i32
    %c0_i32_0 = arith.constant 0 : i32
    return %arg0, %c0_i32 : i32, i32
  }
}

module attributes {stable_mosaic.version = 11 : i64} {
  func.func @_bn_act_kernel(%arg0: i32, %arg1: memref<128x128xbf16, #tpu.memory_space<vmem>>, %arg2: memref<8x128xf32, #tpu.memory_space<vmem>>, %arg3: memref<1x128xf32, #tpu.memory_space<vmem>>, %arg4: memref<1x128xf32, #tpu.memory_space<vmem>>, %arg5: memref<128x128xbf16, #tpu.memory_space<vmem>>) attributes {dimension_semantics = [#tpu.dimension_semantics<parallel>], iteration_bounds = array<i64: 1>, scalar_prefetch = 0 : i64, scratch_operands = 0 : i64, tpu.core_type = #tpu.core_type<tc>, window_params = [{transform_indices = @transform_0, window_bounds = array<i64: 128, 128>}, {pipeline_mode = #tpu.pipeline_mode<synchronous>, transform_indices = @transform_1, window_bounds = array<i64: 8, 128>}, {pipeline_mode = #tpu.pipeline_mode<synchronous>, transform_indices = @transform_2, window_bounds = array<i64: 1, 128>}, {pipeline_mode = #tpu.pipeline_mode<synchronous>, transform_indices = @transform_3, window_bounds = array<i64: 1, 128>}, {transform_indices = @transform_4, window_bounds = array<i64: 128, 128>}]} {
    %c0 = arith.constant 0 : index
    %c0_0 = arith.constant 0 : index
    %0 = vector.load %arg2[%c0, %c0_0] : memref<8x128xf32, #tpu.memory_space<vmem>>, vector<1x128xf32>
    %cst = arith.constant 0.001953125 : f32
    %1 = vector.broadcast %cst : f32 to vector<1x128xf32>
    %2 = arith.mulf %0, %1 : vector<1x128xf32>
    %c1 = arith.constant 1 : index
    %c0_1 = arith.constant 0 : index
    %3 = vector.load %arg2[%c1, %c0_1] : memref<8x128xf32, #tpu.memory_space<vmem>>, vector<1x128xf32>
    %cst_2 = arith.constant 0.001953125 : f32
    %4 = vector.broadcast %cst_2 : f32 to vector<1x128xf32>
    %5 = arith.mulf %3, %4 : vector<1x128xf32>
    %6 = arith.mulf %2, %2 : vector<1x128xf32>
    %7 = arith.subf %5, %6 : vector<1x128xf32>
    %cst_3 = arith.constant 0.000000e+00 : f32
    %8 = vector.broadcast %cst_3 : f32 to vector<1x128xf32>
    %9 = arith.maximumf %7, %8 : vector<1x128xf32>
    %c0_4 = arith.constant 0 : index
    %c0_5 = arith.constant 0 : index
    %10 = vector.load %arg3[%c0_4, %c0_5] : memref<1x128xf32, #tpu.memory_space<vmem>>, vector<1x128xf32>
    %cst_6 = arith.constant 9.99999974E-6 : f32
    %11 = vector.broadcast %cst_6 : f32 to vector<1x128xf32>
    %12 = arith.addf %9, %11 : vector<1x128xf32>
    %13 = math.rsqrt %12 : vector<1x128xf32>
    %14 = arith.mulf %10, %13 : vector<1x128xf32>
    %c0_7 = arith.constant 0 : index
    %c0_8 = arith.constant 0 : index
    %15 = vector.load %arg4[%c0_7, %c0_8] : memref<1x128xf32, #tpu.memory_space<vmem>>, vector<1x128xf32>
    %16 = arith.mulf %2, %14 : vector<1x128xf32>
    %17 = arith.subf %15, %16 : vector<1x128xf32>
    %c0_9 = arith.constant 0 : index
    %c0_10 = arith.constant 0 : index
    %18 = vector.load %arg1[%c0_9, %c0_10] : memref<128x128xbf16, #tpu.memory_space<vmem>>, vector<128x128xbf16>
    %19 = arith.extf %18 : vector<128x128xbf16> to vector<128x128xf32>
    %20 = vector.broadcast %14 : vector<1x128xf32> to vector<128x128xf32>
    %21 = arith.mulf %19, %20 : vector<128x128xf32>
    %22 = vector.broadcast %17 : vector<1x128xf32> to vector<128x128xf32>
    %23 = arith.addf %21, %22 : vector<128x128xf32>
    %cst_11 = arith.constant 0.000000e+00 : f32
    %24 = vector.broadcast %cst_11 : f32 to vector<128x128xf32>
    %25 = arith.maximumf %23, %24 : vector<128x128xf32>
    %26 = arith.truncf %25 : vector<128x128xf32> to vector<128x128xbf16>
    %c0_12 = arith.constant 0 : index
    %c0_13 = arith.constant 0 : index
    %27 = vector.load %arg5[%c0_12, %c0_13] : memref<128x128xbf16, #tpu.memory_space<vmem>>, vector<128x128xbf16>
    tpu.vector_store %arg5[%c0_12, %c0_13], %26 {strides = array<i32>} : memref<128x128xbf16, #tpu.memory_space<vmem>>, vector<128x128xbf16>,
    return
  }
  func.func @transform_0(%arg0: i32) -> (i32, i32) {
    %c0_i32 = arith.constant 0 : i32
    %c0_i32_0 = arith.constant 0 : i32
    return %arg0, %c0_i32 : i32, i32
  }
  func.func @transform_1(%arg0: i32) -> (i32, i32) {
    %c0_i32 = arith.constant 0 : i32
    %c0_i32_0 = arith.constant 0 : i32
    %c0_i32_1 = arith.constant 0 : i32
    return %c0_i32, %c0_i32_0 : i32, i32
  }
  func.func @transform_2(%arg0: i32) -> (i32, i32) {
    %c0_i32 = arith.constant 0 : i32
    %c0_i32_0 = arith.constant 0 : i32
    %c0_i32_1 = arith.constant 0 : i32
    return %c0_i32, %c0_i32_0 : i32, i32
  }
  func.func @transform_3(%arg0: i32) -> (i32, i32) {
    %c0_i32 = arith.constant 0 : i32
    %c0_i32_0 = arith.constant 0 : i32
    %c0_i32_1 = arith.constant 0 : i32
    return %c0_i32, %c0_i32_0 : i32, i32
  }
  func.func @transform_4(%arg0: i32) -> (i32, i32) {
    %c0_i32 = arith.constant 0 : i32
    %c0_i32_0 = arith.constant 0 : i32
    return %arg0, %c0_i32 : i32, i32
  }
}

module attributes {stable_mosaic.version = 11 : i64} {
  func.func @_matmul_bias_tanh_kernel(%arg0: i32, %arg1: memref<512x512xbf16, #tpu.memory_space<vmem>>, %arg2: memref<512x128xbf16, #tpu.memory_space<vmem>>, %arg3: memref<1x128xf32, #tpu.memory_space<vmem>>, %arg4: memref<512x128xf32, #tpu.memory_space<vmem>>) attributes {dimension_semantics = [#tpu.dimension_semantics<parallel>], iteration_bounds = array<i64: 1>, scalar_prefetch = 0 : i64, scratch_operands = 0 : i64, tpu.core_type = #tpu.core_type<tc>, window_params = [{transform_indices = @transform_0, window_bounds = array<i64: 512, 512>}, {pipeline_mode = #tpu.pipeline_mode<synchronous>, transform_indices = @transform_1, window_bounds = array<i64: 512, 128>}, {pipeline_mode = #tpu.pipeline_mode<synchronous>, transform_indices = @transform_2, window_bounds = array<i64: 1, 128>}, {transform_indices = @transform_3, window_bounds = array<i64: 512, 128>}]} {
    %c0 = arith.constant 0 : index
    %c0_0 = arith.constant 0 : index
    %0 = vector.load %arg1[%c0, %c0_0] : memref<512x512xbf16, #tpu.memory_space<vmem>>, vector<512x512xbf16>
    %c0_1 = arith.constant 0 : index
    %c0_2 = arith.constant 0 : index
    %1 = vector.load %arg2[%c0_1, %c0_2] : memref<512x128xbf16, #tpu.memory_space<vmem>>, vector<512x128xbf16>
    %cst = arith.constant dense<0.000000e+00> : vector<512x128xf32>
    %2 = tpu.matmul %0, %1, %cst {dimension_numbers = #tpu.dot_dimension_numbers<[1], [0], [0], [1], [0, 0, 1, 1], [], []>} : vector<512x512xbf16>, vector<512x128xbf16>, vector<512x128xf32> -> vector<512x128xf32>
    %c0_3 = arith.constant 0 : index
    %c0_4 = arith.constant 0 : index
    %3 = vector.load %arg3[%c0_3, %c0_4] : memref<1x128xf32, #tpu.memory_space<vmem>>, vector<1x128xf32>
    %4 = vector.broadcast %3 : vector<1x128xf32> to vector<512x128xf32>
    %5 = arith.addf %2, %4 : vector<512x128xf32>
    %6 = math.tanh %5 : vector<512x128xf32>
    %c0_5 = arith.constant 0 : index
    %c0_6 = arith.constant 0 : index
    %7 = vector.load %arg4[%c0_5, %c0_6] : memref<512x128xf32, #tpu.memory_space<vmem>>, vector<512x128xf32>
    tpu.vector_store %arg4[%c0_5, %c0_6], %6 {strides = array<i32>} : memref<512x128xf32, #tpu.memory_space<vmem>>, vector<512x128xf32>,
    return
  }
  func.func @transform_0(%arg0: i32) -> (i32, i32) {
    %c0_i32 = arith.constant 0 : i32
    %c0_i32_0 = arith.constant 0 : i32
    return %arg0, %c0_i32 : i32, i32
  }
  func.func @transform_1(%arg0: i32) -> (i32, i32) {
    %c0_i32 = arith.constant 0 : i32
    %c0_i32_0 = arith.constant 0 : i32
    %c0_i32_1 = arith.constant 0 : i32
    return %c0_i32, %c0_i32_0 : i32, i32
  }
  func.func @transform_2(%arg0: i32) -> (i32, i32) {
    %c0_i32 = arith.constant 0 : i32
    %c0_i32_0 = arith.constant 0 : i32
    %c0_i32_1 = arith.constant 0 : i32
    return %c0_i32, %c0_i32_0 : i32, i32
  }
  func.func @transform_3(%arg0: i32) -> (i32, i32) {
    %c0_i32 = arith.constant 0 : i32
    %c0_i32_0 = arith.constant 0 : i32
    return %arg0, %c0_i32 : i32, i32
  }
}

</mosaic_0001>

<llo_original>
// kernel: resnet_generator_forward.47
$region0: #{resnet_generator_forward.47}
  #allocation0 [shape = 'u32[]', space=smem, size = 0x4, offset = 0x4, fixed_abs, tag = 'smem constant byte address 0x4 - core index']
  #allocation1 [shape = 'u32[72,128]{1,0:T(1,128)}', space=vmem, size = 0x9000, scoped, tag = 'internal scratch']
  %s0 = inlined_call_operand.vmem [shape: bf16[512,256], index: 0, kind: input, shape index: {}]
  %s1 = inlined_call_operand.vmem [shape: bf16[256,128], index: 1, kind: input, shape index: {}]
  %s2 = inlined_call_operand.vmem [shape: bf16[512,128], index: 2, kind: output, shape index: {0}]
  %s3 = inlined_call_operand.vmem [shape: f32[1,8,128], index: 3, kind: output, shape index: {1}]
  %4 = xla_tuple %s2, %s3
  %s5 = sld [smem:[#allocation0]]
  $region26: #{resnet_generator_forward.47} parent=0
    _
  %s7 = ssub.s32 1, %s5
  %s8 = scalar_select 0, %s7, %s5
  // Predicated region
  $region2: #{resnet_generator_forward.47} parent=0 // pred_check
    _
  $region3: #{resnet_generator_forward.47} parent=0 // pred_check_branch
    %10 = sbr.rel (0) target = $region5
  $region4: #{resnet_generator_forward.47} parent=0 // pred_region
    _
  $region5: #{resnet_generator_forward.47} parent=0 // pred_fallthru
    _
  // Predicated region
  $region6: #{resnet_generator_forward.47} parent=0 // pred_check
    _
  $region7: #{resnet_generator_forward.47} parent=0 // pred_check_branch
    %12 = sbr.rel (0) target = $region9
  $region8: #{resnet_generator_forward.47} parent=0 // pred_region
    _
  $region9: #{resnet_generator_forward.47} parent=0 // pred_fallthru
    _
  %v13 = vld [vmem:[%s0] sm:$0xff]
  %v14 = vld [vmem:[%s0 + $0x8] sm:$0xff]
  %v15 = vld [vmem:[%s0 + $0x10] sm:$0xff]
  %v16 = vld [vmem:[%s0 + $0x18] sm:$0xff]
  %v17 = vld [vmem:[%s0 + $0x20] sm:$0xff]
  %v18 = vld [vmem:[%s0 + $0x28] sm:$0xff]
  %v19 = vld [vmem:[%s0 + $0x30] sm:$0xff]
  %v20 = vld [vmem:[%s0 + $0x38] sm:$0xff]
  %v21 = vld [vmem:[%s0 + $0x40] sm:$0xff]
  %v22 = vld [vmem:[%s0 + $0x48] sm:$0xff]
  %v23 = vld [vmem:[%s0 + $0x50] sm:$0xff]
  %v24 = vld [vmem:[%s0 + $0x58] sm:$0xff]
  %v25 = vld [vmem:[%s0 + $0x60] sm:$0xff]
  %v26 = vld [vmem:[%s0 + $0x68] sm:$0xff]
  %v27 = vld [vmem:[%s0 + $0x70] sm:$0xff]
  %v28 = vld [vmem:[%s0 + $0x78] sm:$0xff]
  %v29 = vld [vmem:[%s0 + $0x80] sm:$0xff]
  %v30 = vld [vmem:[%s0 + $0x88] sm:$0xff]
  %v31 = vld [vmem:[%s0 + $0x90] sm:$0xff]
  %v32 = vld [vmem:[%s0 + $0x98] sm:$0xff]
  %v33 = vld [vmem:[%s0 + $0xa0] sm:$0xff]
  %v34 = vld [vmem:[%s0 + $0xa8] sm:$0xff]
  %v35 = vld [vmem:[%s0 + $0xb0] sm:$0xff]
  %v36 = vld [vmem:[%s0 + $0xb8] sm:$0xff]
  %v37 = vld [vmem:[%s0 + $0xc0] sm:$0xff]
  %v38 = vld [vmem:[%s0 + $0xc8] sm:$0xff]
  %v39 = vld [vmem:[%s0 + $0xd0] sm:$0xff]
  %v40 = vld [vmem:[%s0 + $0xd8] sm:$0xff]
  %v41 = vld [vmem:[%s0 + $0xe0] sm:$0xff]
  %v42 = vld [vmem:[%s0 + $0xe8] sm:$0xff]
  %v43 = vld [vmem:[%s0 + $0xf0] sm:$0xff]
  %v44 = vld [vmem:[%s0 + $0xf8] sm:$0xff]
  %v45 = vld [vmem:[%s0 + $0x100] sm:$0xff]
  %v46 = vld [vmem:[%s0 + $0x108] sm:$0xff]
  %v47 = vld [vmem:[%s0 + $0x110] sm:$0xff]
  %v48 = vld [vmem:[%s0 + $0x118] sm:$0xff]
  %v49 = vld [vmem:[%s0 + $0x120] sm:$0xff]
  %v50 = vld [vmem:[%s0 + $0x128] sm:$0xff]
  %v51 = vld [vmem:[%s0 + $0x130] sm:$0xff]
  %v52 = vld [vmem:[%s0 + $0x138] sm:$0xff]
  %v53 = vld [vmem:[%s0 + $0x140] sm:$0xff]
  %v54 = vld [vmem:[%s0 + $0x148] sm:$0xff]
  %v55 = vld [vmem:[%s0 + $0x150] sm:$0xff]
  %v56 = vld [vmem:[%s0 + $0x158] sm:$0xff]
  %v57 = vld [vmem:[%s0 + $0x160] sm:$0xff]
  %v58 = vld [vmem:[%s0 + $0x168] sm:$0xff]
  %v59 = vld [vmem:[%s0 + $0x170] sm:$0xff]
  %v60 = vld [vmem:[%s0 + $0x178] sm:$0xff]
  %v61 = vld [vmem:[%s0 + $0x180] sm:$0xff]
  %v62 = vld [vmem:[%s0 + $0x188] sm:$0xff]
  %v63 = vld [vmem:[%s0 + $0x190] sm:$0xff]
  %v64 = vld [vmem:[%s0 + $0x198] sm:$0xff]
  %v65 = vld [vmem:[%s0 + $0x1a0] sm:$0xff]
  %v66 = vld [vmem:[%s0 + $0x1a8] sm:$0xff]
  %v67 = vld [vmem:[%s0 + $0x1b0] sm:$0xff]
  %v68 = vld [vmem:[%s0 + $0x1b8] sm:$0xff]
  %v69 = vld [vmem:[%s0 + $0x1c0] sm:$0xff]
  %v70 = vld [vmem:[%s0 + $0x1c8] sm:$0xff]
  %v71 = vld [vmem:[%s0 + $0x1d0] sm:$0xff]
  %v72 = vld [vmem:[%s0 + $0x1d8] sm:$0xff]
  %v73 = vld [vmem:[%s0 + $0x1e0] sm:$0xff]
  %v74 = vld [vmem:[%s0 + $0x1e8] sm:$0xff]
  %v75 = vld [vmem:[%s0 + $0x1f0] sm:$0xff]
  %v76 = vld [vmem:[%s0 + $0x1f8] sm:$0xff]
  %v77 = vld [vmem:[%s1] sm:$0xf]
  %v78 = vld [vmem:[%s1 + $0x4] sm:$0xf]
  %v79 = vld [vmem:[%s1 + $0x8] sm:$0xf]
  %v80 = vld [vmem:[%s1 + $0xc] sm:$0xf]
  %v81 = vld [vmem:[%s1 + $0x10] sm:$0xf]
  %v82 = vld [vmem:[%s1 + $0x14] sm:$0xf]
  %v83 = vld [vmem:[%s1 + $0x18] sm:$0xf]
  %v84 = vld [vmem:[%s1 + $0x1c] sm:$0xf]
  %v85 = vld [vmem:[%s1 + $0x20] sm:$0xf]
  %v86 = vld [vmem:[%s1 + $0x24] sm:$0xf]
  %v87 = vld [vmem:[%s1 + $0x28] sm:$0xf]
  %v88 = vld [vmem:[%s1 + $0x2c] sm:$0xf]
  %v89 = vld [vmem:[%s1 + $0x30] sm:$0xf]
  %v90 = vld [vmem:[%s1 + $0x34] sm:$0xf]
  %v91 = vld [vmem:[%s1 + $0x38] sm:$0xf]
  %v92 = vld [vmem:[%s1 + $0x3c] sm:$0xf]
  %v93 = vld [vmem:[%s1 + $0x40] sm:$0xf]
  %v94 = vld [vmem:[%s1 + $0x44] sm:$0xf]
  %v95 = vld [vmem:[%s1 + $0x48] sm:$0xf]
  %v96 = vld [vmem:[%s1 + $0x4c] sm:$0xf]
  %v97 = vld [vmem:[%s1 + $0x50] sm:$0xf]
  %v98 = vld [vmem:[%s1 + $0x54] sm:$0xf]
  %v99 = vld [vmem:[%s1 + $0x58] sm:$0xf]
  %v100 = vld [vmem:[%s1 + $0x5c] sm:$0xf]
  %v101 = vld [vmem:[%s1 + $0x60] sm:$0xf]
  %v102 = vld [vmem:[%s1 + $0x64] sm:$0xf]
  %v103 = vld [vmem:[%s1 + $0x68] sm:$0xf]
  %v104 = vld [vmem:[%s1 + $0x6c] sm:$0xf]
  %v105 = vld [vmem:[%s1 + $0x70] sm:$0xf]
  %v106 = vld [vmem:[%s1 + $0x74] sm:$0xf]
  %v107 = vld [vmem:[%s1 + $0x78] sm:$0xf]
  %v108 = vld [vmem:[%s1 + $0x7c] sm:$0xf]
  %v173 = vunpack.c.l.b16 %v13
  %v174 = vunpack.c.h.b16 %v13
  %v175 = vunpack.c.l.b16 %v14
  %v176 = vunpack.c.h.b16 %v14
  %v177 = vunpack.c.l.b16 %v15
  %v178 = vunpack.c.h.b16 %v15
  %v179 = vunpack.c.l.b16 %v16
  %v180 = vunpack.c.h.b16 %v16
  %v181 = vunpack.c.l.b16 %v17
  %v182 = vunpack.c.h.b16 %v17
  %v183 = vunpack.c.l.b16 %v18
  %v184 = vunpack.c.h.b16 %v18
  %v185 = vunpack.c.l.b16 %v19
  %v186 = vunpack.c.h.b16 %v19
  %v187 = vunpack.c.l.b16 %v20
  %v188 = vunpack.c.h.b16 %v20
  %v189 = vunpack.c.l.b16 %v21
  %v190 = vunpack.c.h.b16 %v21
  %v191 = vunpack.c.l.b16 %v22
  %v192 = vunpack.c.h.b16 %v22
  %v193 = vunpack.c.l.b16 %v23
  %v194 = vunpack.c.h.b16 %v23
  %v195 = vunpack.c.l.b16 %v24
  %v196 = vunpack.c.h.b16 %v24
  %v197 = vunpack.c.l.b16 %v25
  %v198 = vunpack.c.h.b16 %v25
  %v199 = vunpack.c.l.b16 %v26
  %v200 = vunpack.c.h.b16 %v26
  %v201 = vunpack.c.l.b16 %v27
  %v202 = vunpack.c.h.b16 %v27
  %v203 = vunpack.c.l.b16 %v28
  %v204 = vunpack.c.h.b16 %v28
  %v205 = vunpack.c.l.b16 %v29
  %v206 = vunpack.c.h.b16 %v29
  %v207 = vunpack.c.l.b16 %v30
  %v208 = vunpack.c.h.b16 %v30
  %v209 = vunpack.c.l.b16 %v31
  %v210 = vunpack.c.h.b16 %v31
  %v211 = vunpack.c.l.b16 %v32
  %v212 = vunpack.c.h.b16 %v32
  %v213 = vunpack.c.l.b16 %v33
  %v214 = vunpack.c.h.b16 %v33
  %v215 = vunpack.c.l.b16 %v34
  %v216 = vunpack.c.h.b16 %v34
  %v217 = vunpack.c.l.b16 %v35
  %v218 = vunpack.c.h.b16 %v35
  %v219 = vunpack.c.l.b16 %v36
  %v220 = vunpack.c.h.b16 %v36
  %v221 = vunpack.c.l.b16 %v37
  %v222 = vunpack.c.h.b16 %v37
  %v223 = vunpack.c.l.b16 %v38
  %v224 = vunpack.c.h.b16 %v38
  %v225 = vunpack.c.l.b16 %v39
  %v226 = vunpack.c.h.b16 %v39
  %v227 = vunpack.c.l.b16 %v40
  %v228 = vunpack.c.h.b16 %v40
  %v229 = vunpack.c.l.b16 %v41
  %v230 = vunpack.c.h.b16 %v41
  %v231 = vunpack.c.l.b16 %v42
  %v232 = vunpack.c.h.b16 %v42
  %v233 = vunpack.c.l.b16 %v43
  %v234 = vunpack.c.h.b16 %v43
  %v235 = vunpack.c.l.b16 %v44
  %v236 = vunpack.c.h.b16 %v44
  %v237 = vunpack.c.l.b16 %v45
  %v238 = vunpack.c.h.b16 %v45
  %v239 = vunpack.c.l.b16 %v46
  %v240 = vunpack.c.h.b16 %v46
  %v241 = vunpack.c.l.b16 %v47
  %v242 = vunpack.c.h.b16 %v47
  %v243 = vunpack.c.l.b16 %v48
  %v244 = vunpack.c.h.b16 %v48
  %v245 = vunpack.c.l.b16 %v49
  %v246 = vunpack.c.h.b16 %v49
  %v247 = vunpack.c.l.b16 %v50
  %v248 = vunpack.c.h.b16 %v50
  %v249 = vunpack.c.l.b16 %v51
  %v250 = vunpack.c.h.b16 %v51
  %v251 = vunpack.c.l.b16 %v52
  %v252 = vunpack.c.h.b16 %v52
  %v253 = vunpack.c.l.b16 %v53
  %v254 = vunpack.c.h.b16 %v53
  %v255 = vunpack.c.l.b16 %v54
  %v256 = vunpack.c.h.b16 %v54
  %v257 = vunpack.c.l.b16 %v55
  %v258 = vunpack.c.h.b16 %v55
  %v259 = vunpack.c.l.b16 %v56
  %v260 = vunpack.c.h.b16 %v56
  %v261 = vunpack.c.l.b16 %v57
  %v262 = vunpack.c.h.b16 %v57
  %v263 = vunpack.c.l.b16 %v58
  %v264 = vunpack.c.h.b16 %v58
  %v265 = vunpack.c.l.b16 %v59
  %v266 = vunpack.c.h.b16 %v59
  %v267 = vunpack.c.l.b16 %v60
  %v268 = vunpack.c.h.b16 %v60
  %v269 = vunpack.c.l.b16 %v61
  %v270 = vunpack.c.h.b16 %v61
  %v271 = vunpack.c.l.b16 %v62
  %v272 = vunpack.c.h.b16 %v62
  %v273 = vunpack.c.l.b16 %v63
  %v274 = vunpack.c.h.b16 %v63
  %v275 = vunpack.c.l.b16 %v64
  %v276 = vunpack.c.h.b16 %v64
  %v277 = vunpack.c.l.b16 %v65
  %v278 = vunpack.c.h.b16 %v65
  %v279 = vunpack.c.l.b16 %v66
  %v280 = vunpack.c.h.b16 %v66
  %v281 = vunpack.c.l.b16 %v67
  %v282 = vunpack.c.h.b16 %v67
  %v283 = vunpack.c.l.b16 %v68
  %v284 = vunpack.c.h.b16 %v68
  %v285 = vunpack.c.l.b16 %v69
  %v286 = vunpack.c.h.b16 %v69
  %v287 = vunpack.c.l.b16 %v70
  %v288 = vunpack.c.h.b16 %v70
  %v289 = vunpack.c.l.b16 %v71
  %v290 = vunpack.c.h.b16 %v71
  %v291 = vunpack.c.l.b16 %v72
  %v292 = vunpack.c.h.b16 %v72
  %v293 = vunpack.c.l.b16 %v73
  %v294 = vunpack.c.h.b16 %v73
  %v295 = vunpack.c.l.b16 %v74
  %v296 = vunpack.c.h.b16 %v74
  %v297 = vunpack.c.l.b16 %v75
  %v298 = vunpack.c.h.b16 %v75
  %v299 = vunpack.c.l.b16 %v76
  %v300 = vunpack.c.h.b16 %v76
  %v301 = vpack.c.b16 %v175, %v173
  %v302 = vpack.c.b16 %v176, %v174
  %v303 = vpack.c.b16 %v179, %v177
  %v304 = vpack.c.b16 %v180, %v178
  %v305 = vpack.c.b16 %v183, %v181
  %v306 = vpack.c.b16 %v184, %v182
  %v307 = vpack.c.b16 %v187, %v185
  %v308 = vpack.c.b16 %v188, %v186
  %v309 = vpack.c.b16 %v191, %v189
  %v310 = vpack.c.b16 %v192, %v190
  %v311 = vpack.c.b16 %v195, %v193
  %v312 = vpack.c.b16 %v196, %v194
  %v313 = vpack.c.b16 %v199, %v197
  %v314 = vpack.c.b16 %v200, %v198
  %v315 = vpack.c.b16 %v203, %v201
  %v316 = vpack.c.b16 %v204, %v202
  %v317 = vpack.c.b16 %v207, %v205
  %v318 = vpack.c.b16 %v208, %v206
  %v319 = vpack.c.b16 %v211, %v209
  %v320 = vpack.c.b16 %v212, %v210
  %v321 = vpack.c.b16 %v215, %v213
  %v322 = vpack.c.b16 %v216, %v214
  %v323 = vpack.c.b16 %v219, %v217
  %v324 = vpack.c.b16 %v220, %v218
  %v325 = vpack.c.b16 %v223, %v221
  %v326 = vpack.c.b16 %v224, %v222
  %v327 = vpack.c.b16 %v227, %v225
  %v328 = vpack.c.b16 %v228, %v226
  %v329 = vpack.c.b16 %v231, %v229
  %v330 = vpack.c.b16 %v232, %v230
  %v331 = vpack.c.b16 %v235, %v233
  %v332 = vpack.c.b16 %v236, %v234
  %v333 = vpack.c.b16 %v239, %v237
  %v334 = vpack.c.b16 %v240, %v238
  %v335 = vpack.c.b16 %v243, %v241
  %v336 = vpack.c.b16 %v244, %v242
  %v337 = vpack.c.b16 %v247, %v245
  %v338 = vpack.c.b16 %v248, %v246
  %v339 = vpack.c.b16 %v251, %v249
  %v340 = vpack.c.b16 %v252, %v250
  %v341 = vpack.c.b16 %v255, %v253
  %v342 = vpack.c.b16 %v256, %v254
  %v343 = vpack.c.b16 %v259, %v257
  %v344 = vpack.c.b16 %v260, %v258
  %v345 = vpack.c.b16 %v263, %v261
  %v346 = vpack.c.b16 %v264, %v262
  %v347 = vpack.c.b16 %v267, %v265
  %v348 = vpack.c.b16 %v268, %v266
  %v349 = vpack.c.b16 %v271, %v269
  %v350 = vpack.c.b16 %v272, %v270
  %v351 = vpack.c.b16 %v275, %v273
  %v352 = vpack.c.b16 %v276, %v274
  %v353 = vpack.c.b16 %v279, %v277
  %v354 = vpack.c.b16 %v280, %v278
  %v355 = vpack.c.b16 %v283, %v281
  %v356 = vpack.c.b16 %v284, %v282
  %v357 = vpack.c.b16 %v287, %v285
  %v358 = vpack.c.b16 %v288, %v286
  %v359 = vpack.c.b16 %v291, %v289
  %v360 = vpack.c.b16 %v292, %v290
  %v361 = vpack.c.b16 %v295, %v293
  %v362 = vpack.c.b16 %v296, %v294
  %v363 = vpack.c.b16 %v299, %v297
  %v364 = vpack.c.b16 %v300, %v298
  %v461 = vunpack.c.l.b16 %v77
  %v462 = vunpack.c.l.b16 %v78
  %v463 = vunpack.c.l.b16 %v79
  %v464 = vunpack.c.l.b16 %v80
  %v465 = vunpack.c.l.b16 %v81
  %v466 = vunpack.c.l.b16 %v82
  %v467 = vunpack.c.l.b16 %v83
  %v468 = vunpack.c.l.b16 %v84
  %v469 = vunpack.c.l.b16 %v85
  %v470 = vunpack.c.l.b16 %v86
  %v471 = vunpack.c.l.b16 %v87
  %v472 = vunpack.c.l.b16 %v88
  %v473 = vunpack.c.l.b16 %v89
  %v474 = vunpack.c.l.b16 %v90
  %v475 = vunpack.c.l.b16 %v91
  %v476 = vunpack.c.l.b16 %v92
  %v477 = vunpack.c.l.b16 %v93
  %v478 = vunpack.c.l.b16 %v94
  %v479 = vunpack.c.l.b16 %v95
  %v480 = vunpack.c.l.b16 %v96
  %v481 = vunpack.c.l.b16 %v97
  %v482 = vunpack.c.l.b16 %v98
  %v483 = vunpack.c.l.b16 %v99
  %v484 = vunpack.c.l.b16 %v100
  %v485 = vunpack.c.l.b16 %v101
  %v486 = vunpack.c.l.b16 %v102
  %v487 = vunpack.c.l.b16 %v103
  %v488 = vunpack.c.l.b16 %v104
  %v489 = vunpack.c.l.b16 %v105
  %v490 = vunpack.c.l.b16 %v106
  %v491 = vunpack.c.l.b16 %v107
  %v492 = vunpack.c.l.b16 %v108
  %v493 = vpack.c.b16 %v462, %v461
  %v494 = vpack.c.b16 %v464, %v463
  %v495 = vpack.c.b16 %v466, %v465
  %v496 = vpack.c.b16 %v468, %v467
  %v497 = vpack.c.b16 %v470, %v469
  %v498 = vpack.c.b16 %v472, %v471
  %v499 = vpack.c.b16 %v474, %v473
  %v500 = vpack.c.b16 %v476, %v475
  %v501 = vpack.c.b16 %v478, %v477
  %v502 = vpack.c.b16 %v480, %v479
  %v503 = vpack.c.b16 %v482, %v481
  %v504 = vpack.c.b16 %v484, %v483
  %v505 = vpack.c.b16 %v486, %v485
  %v506 = vpack.c.b16 %v488, %v487
  %v507 = vpack.c.b16 %v490, %v489
  %v508 = vpack.c.b16 %v492, %v491
  %525 = vmatpush.bf16.msra.mxu0 %v500
  %526 = vmatpush.bf16.msra.mxu0 %v499
  %527 = vmatpush.bf16.msra.mxu0 %v498
  %528 = vmatpush.bf16.msra.mxu0 %v497
  %529 = vmatpush.bf16.msra.mxu0 %v496
  %530 = vmatpush.bf16.msra.mxu0 %v495
  %531 = vmatpush.bf16.msra.mxu0 %v494
  %532 = vmatpush.bf16.msra.mxu0 %v493
  %533 = vmatmul.bf16.gmra.mxu0 %v301
  %v534 = vpop.f32.mrf.mxu0
  %v535 = vadd.f32 0.0, %v534
  %v536 = vpop.f32.mrf.mxu0
  %v537 = vadd.f32 0.0, %v536
  %538 = vmatmul.bf16.gmra.mxu0 %v303
  %v539 = vpop.f32.mrf.mxu0
  %v540 = vadd.f32 0.0, %v539
  %v541 = vpop.f32.mrf.mxu0
  %v542 = vadd.f32 0.0, %v541
  %543 = vmatmul.bf16.gmra.mxu0 %v305
  %v544 = vpop.f32.mrf.mxu0
  %v545 = vadd.f32 0.0, %v544
  %v546 = vpop.f32.mrf.mxu0
  %v547 = vadd.f32 0.0, %v546
  %548 = vmatmul.bf16.gmra.mxu0 %v307
  %v549 = vpop.f32.mrf.mxu0
  %v550 = vadd.f32 0.0, %v549
  %v551 = vpop.f32.mrf.mxu0
  %v552 = vadd.f32 0.0, %v551
  %553 = vmatmul.bf16.gmra.mxu0 %v309
  %v554 = vpop.f32.mrf.mxu0
  %v555 = vadd.f32 0.0, %v554
  %v556 = vpop.f32.mrf.mxu0
  %v557 = vadd.f32 0.0, %v556
  %558 = vmatmul.bf16.gmra.mxu0 %v311
  %v559 = vpop.f32.mrf.mxu0
  %v560 = vadd.f32 0.0, %v559
  %v561 = vpop.f32.mrf.mxu0
  %v562 = vadd.f32 0.0, %v561
  %563 = vmatmul.bf16.gmra.mxu0 %v313
  %v564 = vpop.f32.mrf.mxu0
  %v565 = vadd.f32 0.0, %v564
  %v566 = vpop.f32.mrf.mxu0
  %v567 = vadd.f32 0.0, %v566
  %568 = vmatmul.bf16.gmra.mxu0 %v315
  %v569 = vpop.f32.mrf.mxu0
  %v570 = vadd.f32 0.0, %v569
  %v571 = vpop.f32.mrf.mxu0
  %v572 = vadd.f32 0.0, %v571
  %573 = vmatmul.bf16.gmra.mxu0 %v317
  %v574 = vpop.f32.mrf.mxu0
  %v575 = vadd.f32 0.0, %v574
  %v576 = vpop.f32.mrf.mxu0
  %v577 = vadd.f32 0.0, %v576
  %578 = vmatmul.bf16.gmra.mxu0 %v319
  %v579 = vpop.f32.mrf.mxu0
  %v580 = vadd.f32 0.0, %v579
  %v581 = vpop.f32.mrf.mxu0
  %v582 = vadd.f32 0.0, %v581
  %583 = vmatmul.bf16.gmra.mxu0 %v321
  %v584 = vpop.f32.mrf.mxu0
  %v585 = vadd.f32 0.0, %v584
  %v586 = vpop.f32.mrf.mxu0
  %v587 = vadd.f32 0.0, %v586
  %588 = vmatmul.bf16.gmra.mxu0 %v323
  %v589 = vpop.f32.mrf.mxu0
  %v590 = vadd.f32 0.0, %v589
  %v591 = vpop.f32.mrf.mxu0
  %v592 = vadd.f32 0.0, %v591
  %593 = vmatmul.bf16.gmra.mxu0 %v325
  %v594 = vpop.f32.mrf.mxu0
  %v595 = vadd.f32 0.0, %v594
  %v596 = vpop.f32.mrf.mxu0
  %v597 = vadd.f32 0.0, %v596
  %598 = vmatmul.bf16.gmra.mxu0 %v327
  %v599 = vpop.f32.mrf.mxu0
  %v600 = vadd.f32 0.0, %v599
  %v601 = vpop.f32.mrf.mxu0
  %v602 = vadd.f32 0.0, %v601
  %603 = vmatmul.bf16.gmra.mxu0 %v329
  %v604 = vpop.f32.mrf.mxu0
  %v605 = vadd.f32 0.0, %v604
  %v606 = vpop.f32.mrf.mxu0
  %v607 = vadd.f32 0.0, %v606
  %608 = vmatmul.bf16.gmra.mxu0 %v331
  %v609 = vpop.f32.mrf.mxu0
  %v610 = vadd.f32 0.0, %v609
  %v611 = vpop.f32.mrf.mxu0
  %v612 = vadd.f32 0.0, %v611
  %613 = vmatmul.bf16.gmra.mxu0 %v333
  %v614 = vpop.f32.mrf.mxu0
  %v615 = vadd.f32 0.0, %v614
  %v616 = vpop.f32.mrf.mxu0
  %v617 = vadd.f32 0.0, %v616
  %618 = vmatmul.bf16.gmra.mxu0 %v335
  %v619 = vpop.f32.mrf.mxu0
  %v620 = vadd.f32 0.0, %v619
  %v621 = vpop.f32.mrf.mxu0
  %v622 = vadd.f32 0.0, %v621
  %623 = vmatmul.bf16.gmra.mxu0 %v337
  %v624 = vpop.f32.mrf.mxu0
  %v625 = vadd.f32 0.0, %v624
  %v626 = vpop.f32.mrf.mxu0
  %v627 = vadd.f32 0.0, %v626
  %628 = vmatmul.bf16.gmra.mxu0 %v339
  %v629 = vpop.f32.mrf.mxu0
  %v630 = vadd.f32 0.0, %v629
  %v631 = vpop.f32.mrf.mxu0
  %v632 = vadd.f32 0.0, %v631
  %633 = vmatmul.bf16.gmra.mxu0 %v341
  %v634 = vpop.f32.mrf.mxu0
  %v635 = vadd.f32 0.0, %v634
  %v636 = vpop.f32.mrf.mxu0
  %v637 = vadd.f32 0.0, %v636
  %638 = vmatmul.bf16.gmra.mxu0 %v343
  %v639 = vpop.f32.mrf.mxu0
  %v640 = vadd.f32 0.0, %v639
  %v641 = vpop.f32.mrf.mxu0
  %v642 = vadd.f32 0.0, %v641
  %643 = vmatmul.bf16.gmra.mxu0 %v345
  %v644 = vpop.f32.mrf.mxu0
  %v645 = vadd.f32 0.0, %v644
  %v646 = vpop.f32.mrf.mxu0
  %v647 = vadd.f32 0.0, %v646
  %648 = vmatmul.bf16.gmra.mxu0 %v347
  %v649 = vpop.f32.mrf.mxu0
  %v650 = vadd.f32 0.0, %v649
  %v651 = vpop.f32.mrf.mxu0
  %v652 = vadd.f32 0.0, %v651
  %653 = vmatmul.bf16.gmra.mxu0 %v349
  %v654 = vpop.f32.mrf.mxu0
  %v655 = vadd.f32 0.0, %v654
  %v656 = vpop.f32.mrf.mxu0
  %v657 = vadd.f32 0.0, %v656
  %658 = vmatmul.bf16.gmra.mxu0 %v351
  %v659 = vpop.f32.mrf.mxu0
  %v660 = vadd.f32 0.0, %v659
  %v661 = vpop.f32.mrf.mxu0
  %v662 = vadd.f32 0.0, %v661
  %663 = vmatmul.bf16.gmra.mxu0 %v353
  %v664 = vpop.f32.mrf.mxu0
  %v665 = vadd.f32 0.0, %v664
  %v666 = vpop.f32.mrf.mxu0
  %v667 = vadd.f32 0.0, %v666
  %668 = vmatmul.bf16.gmra.mxu0 %v355
  %v669 = vpop.f32.mrf.mxu0
  %v670 = vadd.f32 0.0, %v669
  %v671 = vpop.f32.mrf.mxu0
  %v672 = vadd.f32 0.0, %v671
  %673 = vmatmul.bf16.gmra.mxu0 %v357
  %v674 = vpop.f32.mrf.mxu0
  %v675 = vadd.f32 0.0, %v674
  %v676 = vpop.f32.mrf.mxu0
  %v677 = vadd.f32 0.0, %v676
  %678 = vmatmul.bf16.gmra.mxu0 %v359
  %v679 = vpop.f32.mrf.mxu0
  %v680 = vadd.f32 0.0, %v679
  %v681 = vpop.f32.mrf.mxu0
  %v682 = vadd.f32 0.0, %v681
  %683 = vmatmul.bf16.gmra.mxu0 %v361
  %v684 = vpop.f32.mrf.mxu0
  %v685 = vadd.f32 0.0, %v684
  %v686 = vpop.f32.mrf.mxu0
  %v687 = vadd.f32 0.0, %v686
  %688 = vmatmul.bf16.gmra.mxu0 %v363
  %v689 = vpop.f32.mrf.mxu0
  %v690 = vadd.f32 0.0, %v689
  %v691 = vpop.f32.mrf.mxu0
  %v692 = vadd.f32 0.0, %v691
  %693 = vdwg.mxu0
  %694 = vmatpush.bf16.msra.mxu0 %v508
  %695 = vmatpush.bf16.msra.mxu0 %v507
  %696 = vmatpush.bf16.msra.mxu0 %v506
  %697 = vmatpush.bf16.msra.mxu0 %v505
  %698 = vmatpush.bf16.msra.mxu0 %v504
  %699 = vmatpush.bf16.msra.mxu0 %v503
  %700 = vmatpush.bf16.msra.mxu0 %v502
  %701 = vmatpush.bf16.msra.mxu0 %v501
  %702 = vmatmul.bf16.gmra.mxu0 %v302
  %v703 = vpop.f32.mrf.mxu0
  %v704 = vadd.f32 %v535, %v703
  %v705 = vpop.f32.mrf.mxu0
  %v706 = vadd.f32 %v537, %v705
  %707 = vmatmul.bf16.gmra.mxu0 %v304
  %v708 = vpop.f32.mrf.mxu0
  %v709 = vadd.f32 %v540, %v708
  %v710 = vpop.f32.mrf.mxu0
  %v711 = vadd.f32 %v542, %v710
  %712 = vmatmul.bf16.gmra.mxu0 %v306
  %v713 = vpop.f32.mrf.mxu0
  %v714 = vadd.f32 %v545, %v713
  %v715 = vpop.f32.mrf.mxu0
  %v716 = vadd.f32 %v547, %v715
  %717 = vmatmul.bf16.gmra.mxu0 %v308
  %v718 = vpop.f32.mrf.mxu0
  %v719 = vadd.f32 %v550, %v718
  %v720 = vpop.f32.mrf.mxu0
  %v721 = vadd.f32 %v552, %v720
  %722 = vmatmul.bf16.gmra.mxu0 %v310
  %v723 = vpop.f32.mrf.mxu0
  %v724 = vadd.f32 %v555, %v723
  %v725 = vpop.f32.mrf.mxu0
  %v726 = vadd.f32 %v557, %v725
  %727 = vmatmul.bf16.gmra.mxu0 %v312
  %v728 = vpop.f32.mrf.mxu0
  %v729 = vadd.f32 %v560, %v728
  %v730 = vpop.f32.mrf.mxu0
  %v731 = vadd.f32 %v562, %v730
  %732 = vmatmul.bf16.gmra.mxu0 %v314
  %v733 = vpop.f32.mrf.mxu0
  %v734 = vadd.f32 %v565, %v733
  %v735 = vpop.f32.mrf.mxu0
  %v736 = vadd.f32 %v567, %v735
  %737 = vmatmul.bf16.gmra.mxu0 %v316
  %v738 = vpop.f32.mrf.mxu0
  %v739 = vadd.f32 %v570, %v738
  %v740 = vpop.f32.mrf.mxu0
  %v741 = vadd.f32 %v572, %v740
  %742 = vmatmul.bf16.gmra.mxu0 %v318
  %v743 = vpop.f32.mrf.mxu0
  %v744 = vadd.f32 %v575, %v743
  %v745 = vpop.f32.mrf.mxu0
  %v746 = vadd.f32 %v577, %v745
  %747 = vmatmul.bf16.gmra.mxu0 %v320
  %v748 = vpop.f32.mrf.mxu0
  %v749 = vadd.f32 %v580, %v748
  %v750 = vpop.f32.mrf.mxu0
  %v751 = vadd.f32 %v582, %v750
  %752 = vmatmul.bf16.gmra.mxu0 %v322
  %v753 = vpop.f32.mrf.mxu0
  %v754 = vadd.f32 %v585, %v753
  %v755 = vpop.f32.mrf.mxu0
  %v756 = vadd.f32 %v587, %v755
  %757 = vmatmul.bf16.gmra.mxu0 %v324
  %v758 = vpop.f32.mrf.mxu0
  %v759 = vadd.f32 %v590, %v758
  %v760 = vpop.f32.mrf.mxu0
  %v761 = vadd.f32 %v592, %v760
  %762 = vmatmul.bf16.gmra.mxu0 %v326
  %v763 = vpop.f32.mrf.mxu0
  %v764 = vadd.f32 %v595, %v763
  %v765 = vpop.f32.mrf.mxu0
  %v766 = vadd.f32 %v597, %v765
  %767 = vmatmul.bf16.gmra.mxu0 %v328
  %v768 = vpop.f32.mrf.mxu0
  %v769 = vadd.f32 %v600, %v768
  %v770 = vpop.f32.mrf.mxu0
  %v771 = vadd.f32 %v602, %v770
  %772 = vmatmul.bf16.gmra.mxu0 %v330
  %v773 = vpop.f32.mrf.mxu0
  %v774 = vadd.f32 %v605, %v773
  %v775 = vpop.f32.mrf.mxu0
  %v776 = vadd.f32 %v607, %v775
  %777 = vmatmul.bf16.gmra.mxu0 %v332
  %v778 = vpop.f32.mrf.mxu0
  %v779 = vadd.f32 %v610, %v778
  %v780 = vpop.f32.mrf.mxu0
  %v781 = vadd.f32 %v612, %v780
  %782 = vmatmul.bf16.gmra.mxu0 %v334
  %v783 = vpop.f32.mrf.mxu0
  %v784 = vadd.f32 %v615, %v783
  %v785 = vpop.f32.mrf.mxu0
  %v786 = vadd.f32 %v617, %v785
  %787 = vmatmul.bf16.gmra.mxu0 %v336
  %v788 = vpop.f32.mrf.mxu0
  %v789 = vadd.f32 %v620, %v788
  %v790 = vpop.f32.mrf.mxu0
  %v791 = vadd.f32 %v622, %v790
  %792 = vmatmul.bf16.gmra.mxu0 %v338
  %v793 = vpop.f32.mrf.mxu0
  %v794 = vadd.f32 %v625, %v793
  %v795 = vpop.f32.mrf.mxu0
  %v796 = vadd.f32 %v627, %v795
  %797 = vmatmul.bf16.gmra.mxu0 %v340
  %v798 = vpop.f32.mrf.mxu0
  %v799 = vadd.f32 %v630, %v798
  %v800 = vpop.f32.mrf.mxu0
  %v801 = vadd.f32 %v632, %v800
  %802 = vmatmul.bf16.gmra.mxu0 %v342
  %v803 = vpop.f32.mrf.mxu0
  %v804 = vadd.f32 %v635, %v803
  %v805 = vpop.f32.mrf.mxu0
  %v806 = vadd.f32 %v637, %v805
  %807 = vmatmul.bf16.gmra.mxu0 %v344
  %v808 = vpop.f32.mrf.mxu0
  %v809 = vadd.f32 %v640, %v808
  %v810 = vpop.f32.mrf.mxu0
  %v811 = vadd.f32 %v642, %v810
  %812 = vmatmul.bf16.gmra.mxu0 %v346
  %v813 = vpop.f32.mrf.mxu0
  %v814 = vadd.f32 %v645, %v813
  %v815 = vpop.f32.mrf.mxu0
  %v816 = vadd.f32 %v647, %v815
  %817 = vmatmul.bf16.gmra.mxu0 %v348
  %v818 = vpop.f32.mrf.mxu0
  %v819 = vadd.f32 %v650, %v818
  %v820 = vpop.f32.mrf.mxu0
  %v821 = vadd.f32 %v652, %v820
  %822 = vmatmul.bf16.gmra.mxu0 %v350
  %v823 = vpop.f32.mrf.mxu0
  %v824 = vadd.f32 %v655, %v823
  %v825 = vpop.f32.mrf.mxu0
  %v826 = vadd.f32 %v657, %v825
  %827 = vmatmul.bf16.gmra.mxu0 %v352
  %v828 = vpop.f32.mrf.mxu0
  %v829 = vadd.f32 %v660, %v828
  %v830 = vpop.f32.mrf.mxu0
  %v831 = vadd.f32 %v662, %v830
  %832 = vmatmul.bf16.gmra.mxu0 %v354
  %v833 = vpop.f32.mrf.mxu0
  %v834 = vadd.f32 %v665, %v833
  %v835 = vpop.f32.mrf.mxu0
  %v836 = vadd.f32 %v667, %v835
  %837 = vmatmul.bf16.gmra.mxu0 %v356
  %v838 = vpop.f32.mrf.mxu0
  %v839 = vadd.f32 %v670, %v838
  %v840 = vpop.f32.mrf.mxu0
  %v841 = vadd.f32 %v672, %v840
  %842 = vmatmul.bf16.gmra.mxu0 %v358
  %v843 = vpop.f32.mrf.mxu0
  %v844 = vadd.f32 %v675, %v843
  %v845 = vpop.f32.mrf.mxu0
  %v846 = vadd.f32 %v677, %v845
  %847 = vmatmul.bf16.gmra.mxu0 %v360
  %v848 = vpop.f32.mrf.mxu0
  %v849 = vadd.f32 %v680, %v848
  %v850 = vpop.f32.mrf.mxu0
  %v851 = vadd.f32 %v682, %v850
  %852 = vmatmul.bf16.gmra.mxu0 %v362
  %v853 = vpop.f32.mrf.mxu0
  %v854 = vadd.f32 %v685, %v853
  %v855 = vpop.f32.mrf.mxu0
  %v856 = vadd.f32 %v687, %v855
  %857 = vmatmul.bf16.gmra.mxu0 %v364
  %v858 = vpop.f32.mrf.mxu0
  %v859 = vadd.f32 %v690, %v858
  %v860 = vpop.f32.mrf.mxu0
  %v861 = vadd.f32 %v692, %v860
  %862 = vdwg.mxu0
  %v863 = vpack.c.bf16 %v704, %v704
  %v864 = vpack.c.bf16 %v706, %v706
  %v865 = vpack.c.bf16 %v709, %v709
  %v866 = vpack.c.bf16 %v711, %v711
  %v867 = vpack.c.bf16 %v714, %v714
  %v868 = vpack.c.bf16 %v716, %v716
  %v869 = vpack.c.bf16 %v719, %v719
  %v870 = vpack.c.bf16 %v721, %v721
  %v871 = vpack.c.bf16 %v724, %v724
  %v872 = vpack.c.bf16 %v726, %v726
  %v873 = vpack.c.bf16 %v729, %v729
  %v874 = vpack.c.bf16 %v731, %v731
  %v875 = vpack.c.bf16 %v734, %v734
  %v876 = vpack.c.bf16 %v736, %v736
  %v877 = vpack.c.bf16 %v739, %v739
  %v878 = vpack.c.bf16 %v741, %v741
  %v879 = vpack.c.bf16 %v744, %v744
  %v880 = vpack.c.bf16 %v746, %v746
  %v881 = vpack.c.bf16 %v749, %v749
  %v882 = vpack.c.bf16 %v751, %v751
  %v883 = vpack.c.bf16 %v754, %v754
  %v884 = vpack.c.bf16 %v756, %v756
  %v885 = vpack.c.bf16 %v759, %v759
  %v886 = vpack.c.bf16 %v761, %v761
  %v887 = vpack.c.bf16 %v764, %v764
  %v888 = vpack.c.bf16 %v766, %v766
  %v889 = vpack.c.bf16 %v769, %v769
  %v890 = vpack.c.bf16 %v771, %v771
  %v891 = vpack.c.bf16 %v774, %v774
  %v892 = vpack.c.bf16 %v776, %v776
  %v893 = vpack.c.bf16 %v779, %v779
  %v894 = vpack.c.bf16 %v781, %v781
  %v895 = vpack.c.bf16 %v784, %v784
  %v896 = vpack.c.bf16 %v786, %v786
  %v897 = vpack.c.bf16 %v789, %v789
  %v898 = vpack.c.bf16 %v791, %v791
  %v899 = vpack.c.bf16 %v794, %v794
  %v900 = vpack.c.bf16 %v796, %v796
  %v901 = vpack.c.bf16 %v799, %v799
  %v902 = vpack.c.bf16 %v801, %v801
  %v903 = vpack.c.bf16 %v804, %v804
  %v904 = vpack.c.bf16 %v806, %v806
  %v905 = vpack.c.bf16 %v809, %v809
  %v906 = vpack.c.bf16 %v811, %v811
  %v907 = vpack.c.bf16 %v814, %v814
  %v908 = vpack.c.bf16 %v816, %v816
  %v909 = vpack.c.bf16 %v819, %v819
  %v910 = vpack.c.bf16 %v821, %v821
  %v911 = vpack.c.bf16 %v824, %v824
  %v912 = vpack.c.bf16 %v826, %v826
  %v913 = vpack.c.bf16 %v829, %v829
  %v914 = vpack.c.bf16 %v831, %v831
  %v915 = vpack.c.bf16 %v834, %v834
  %v916 = vpack.c.bf16 %v836, %v836
  %v917 = vpack.c.bf16 %v839, %v839
  %v918 = vpack.c.bf16 %v841, %v841
  %v919 = vpack.c.bf16 %v844, %v844
  %v920 = vpack.c.bf16 %v846, %v846
  %v921 = vpack.c.bf16 %v849, %v849
  %v922 = vpack.c.bf16 %v851, %v851
  %v923 = vpack.c.bf16 %v854, %v854
  %v924 = vpack.c.bf16 %v856, %v856
  %v925 = vpack.c.bf16 %v859, %v859
  %v926 = vpack.c.bf16 %v861, %v861
  %927 = vst [vmem:[%s2] sm:$0xf] %v863
  %928 = vst [vmem:[%s2 + $0x4] sm:$0xf] %v864
  %929 = vst [vmem:[%s2 + $0x8] sm:$0xf] %v865
  %930 = vst [vmem:[%s2 + $0xc] sm:$0xf] %v866
  %931 = vst [vmem:[%s2 + $0x10] sm:$0xf] %v867
  %932 = vst [vmem:[%s2 + $0x14] sm:$0xf] %v868
  %933 = vst [vmem:[%s2 + $0x18] sm:$0xf] %v869
  %934 = vst [vmem:[%s2 + $0x1c] sm:$0xf] %v870
  %935 = vst [vmem:[%s2 + $0x20] sm:$0xf] %v871
  %936 = vst [vmem:[%s2 + $0x24] sm:$0xf] %v872
  %937 = vst [vmem:[%s2 + $0x28] sm:$0xf] %v873
  %938 = vst [vmem:[%s2 + $0x2c] sm:$0xf] %v874
  %939 = vst [vmem:[%s2 + $0x30] sm:$0xf] %v875
  %940 = vst [vmem:[%s2 + $0x34] sm:$0xf] %v876
  %941 = vst [vmem:[%s2 + $0x38] sm:$0xf] %v877
  %942 = vst [vmem:[%s2 + $0x3c] sm:$0xf] %v878
  %943 = vst [vmem:[%s2 + $0x40] sm:$0xf] %v879
  %944 = vst [vmem:[%s2 + $0x44] sm:$0xf] %v880
  %945 = vst [vmem:[%s2 + $0x48] sm:$0xf] %v881
  %946 = vst [vmem:[%s2 + $0x4c] sm:$0xf] %v882
  %947 = vst [vmem:[%s2 + $0x50] sm:$0xf] %v883
  %948 = vst [vmem:[%s2 + $0x54] sm:$0xf] %v884
  %949 = vst [vmem:[%s2 + $0x58] sm:$0xf] %v885
  %950 = vst [vmem:[%s2 + $0x5c] sm:$0xf] %v886
  %951 = vst [vmem:[%s2 + $0x60] sm:$0xf] %v887
  %952 = vst [vmem:[%s2 + $0x64] sm:$0xf] %v888
  %953 = vst [vmem:[%s2 + $0x68] sm:$0xf] %v889
  %954 = vst [vmem:[%s2 + $0x6c] sm:$0xf] %v890
  %955 = vst [vmem:[%s2 + $0x70] sm:$0xf] %v891
  %956 = vst [vmem:[%s2 + $0x74] sm:$0xf] %v892
  %957 = vst [vmem:[%s2 + $0x78] sm:$0xf] %v893
  %958 = vst [vmem:[%s2 + $0x7c] sm:$0xf] %v894
  %959 = vst [vmem:[%s2 + $0x80] sm:$0xf] %v895
  %960 = vst [vmem:[%s2 + $0x84] sm:$0xf] %v896
  %961 = vst [vmem:[%s2 + $0x88] sm:$0xf] %v897
  %962 = vst [vmem:[%s2 + $0x8c] sm:$0xf] %v898
  %963 = vst [vmem:[%s2 + $0x90] sm:$0xf] %v899
  %964 = vst [vmem:[%s2 + $0x94] sm:$0xf] %v900
  %965 = vst [vmem:[%s2 + $0x98] sm:$0xf] %v901
  %966 = vst [vmem:[%s2 + $0x9c] sm:$0xf] %v902
  %967 = vst [vmem:[%s2 + $0xa0] sm:$0xf] %v903
  %968 = vst [vmem:[%s2 + $0xa4] sm:$0xf] %v904
  %969 = vst [vmem:[%s2 + $0xa8] sm:$0xf] %v905
  %970 = vst [vmem:[%s2 + $0xac] sm:$0xf] %v906
  %971 = vst [vmem:[%s2 + $0xb0] sm:$0xf] %v907
  %972 = vst [vmem:[%s2 + $0xb4] sm:$0xf] %v908
  %973 = vst [vmem:[%s2 + $0xb8] sm:$0xf] %v909
  %974 = vst [vmem:[%s2 + $0xbc] sm:$0xf] %v910
  %975 = vst [vmem:[%s2 + $0xc0] sm:$0xf] %v911
  %976 = vst [vmem:[%s2 + $0xc4] sm:$0xf] %v912
  %977 = vst [vmem:[%s2 + $0xc8] sm:$0xf] %v913
  %978 = vst [vmem:[%s2 + $0xcc] sm:$0xf] %v914
  %979 = vst [vmem:[%s2 + $0xd0] sm:$0xf] %v915
  %980 = vst [vmem:[%s2 + $0xd4] sm:$0xf] %v916
  %981 = vst [vmem:[%s2 + $0xd8] sm:$0xf] %v917
  %982 = vst [vmem:[%s2 + $0xdc] sm:$0xf] %v918
  %983 = vst [vmem:[%s2 + $0xe0] sm:$0xf] %v919
  %984 = vst [vmem:[%s2 + $0xe4] sm:$0xf] %v920
  %985 = vst [vmem:[%s2 + $0xe8] sm:$0xf] %v921
  %986 = vst [vmem:[%s2 + $0xec] sm:$0xf] %v922
  %987 = vst [vmem:[%s2 + $0xf0] sm:$0xf] %v923
  %988 = vst [vmem:[%s2 + $0xf4] sm:$0xf] %v924
  %989 = vst [vmem:[%s2 + $0xf8] sm:$0xf] %v925
  %990 = vst [vmem:[%s2 + $0xfc] sm:$0xf] %v926
  %v991 = vadd.f32 %v704, %v706
  %v992 = vadd.f32 %v991, %v709
  %v993 = vadd.f32 %v992, %v711
  %v994 = vadd.f32 %v993, %v714
  %v995 = vadd.f32 %v994, %v716
  %v996 = vadd.f32 %v995, %v719
  %v997 = vadd.f32 %v996, %v721
  %v998 = vadd.f32 %v997, %v724
  %v999 = vadd.f32 %v998, %v726
  %v1000 = vadd.f32 %v999, %v729
  %v1001 = vadd.f32 %v1000, %v731
  %v1002 = vadd.f32 %v1001, %v734
  %v1003 = vadd.f32 %v1002, %v736
  %v1004 = vadd.f32 %v1003, %v739
  %v1005 = vadd.f32 %v1004, %v741
  %v1006 = vadd.f32 %v1005, %v744
  %v1007 = vadd.f32 %v1006, %v746
  %v1008 = vadd.f32 %v1007, %v749
  %v1009 = vadd.f32 %v1008, %v751
  %v1010 = vadd.f32 %v1009, %v754
  %v1011 = vadd.f32 %v1010, %v756
  %v1012 = vadd.f32 %v1011, %v759
  %v1013 = vadd.f32 %v1012, %v761
  %v1014 = vadd.f32 %v1013, %v764
  %v1015 = vadd.f32 %v1014, %v766
  %v1016 = vadd.f32 %v1015, %v769
  %v1017 = vadd.f32 %v1016, %v771
  %v1018 = vadd.f32 %v1017, %v774
  %v1019 = vadd.f32 %v1018, %v776
  %v1020 = vadd.f32 %v1019, %v779
  %v1021 = vadd.f32 %v1020, %v781
  %v1022 = vadd.f32 %v1021, %v784
  %v1023 = vadd.f32 %v1022, %v786
  %v1024 = vadd.f32 %v1023, %v789
  %v1025 = vadd.f32 %v1024, %v791
  %v1026 = vadd.f32 %v1025, %v794
  %v1027 = vadd.f32 %v1026, %v796
  %v1028 = vadd.f32 %v1027, %v799
  %v1029 = vadd.f32 %v1028, %v801
  %v1030 = vadd.f32 %v1029, %v804
  %v1031 = vadd.f32 %v1030, %v806
  %v1032 = vadd.f32 %v1031, %v809
  %v1033 = vadd.f32 %v1032, %v811
  %v1034 = vadd.f32 %v1033, %v814
  %v1035 = vadd.f32 %v1034, %v816
  %v1036 = vadd.f32 %v1035, %v819
  %v1037 = vadd.f32 %v1036, %v821
  %v1038 = vadd.f32 %v1037, %v824
  %v1039 = vadd.f32 %v1038, %v826
  %v1040 = vadd.f32 %v1039, %v829
  %v1041 = vadd.f32 %v1040, %v831
  %v1042 = vadd.f32 %v1041, %v834
  %v1043 = vadd.f32 %v1042, %v836
  %v1044 = vadd.f32 %v1043, %v839
  %v1045 = vadd.f32 %v1044, %v841
  %v1046 = vadd.f32 %v1045, %v844
  %v1047 = vadd.f32 %v1046, %v846
  %v1048 = vadd.f32 %v1047, %v849
  %v1049 = vadd.f32 %v1048, %v851
  %v1050 = vadd.f32 %v1049, %v854
  %v1051 = vadd.f32 %v1050, %v856
  %v1052 = vadd.f32 %v1051, %v859
  %v1053 = vadd.f32 %v1052, %v861
  %v1054 = vrot.slane %v1053, 4
  %v1055 = vadd.f32 %v1053, %v1054
  %v1056 = vrot.slane %v1055, 2
  %v1057 = vadd.f32 %v1055, %v1056
  %v1058 = vrot.slane %v1057, 1
  %v1059 = vadd.f32 %v1057, %v1058
  %v1060 = vmul.f32 %v704, %v704
  %v1061 = vmul.f32 %v706, %v706
  %v1062 = vmul.f32 %v709, %v709
  %v1063 = vmul.f32 %v711, %v711
  %v1064 = vmul.f32 %v714, %v714
  %v1065 = vmul.f32 %v716, %v716
  %v1066 = vmul.f32 %v719, %v719
  %v1067 = vmul.f32 %v721, %v721
  %v1068 = vmul.f32 %v724, %v724
  %v1069 = vmul.f32 %v726, %v726
  %v1070 = vmul.f32 %v729, %v729
  %v1071 = vmul.f32 %v731, %v731
  %v1072 = vmul.f32 %v734, %v734
  %v1073 = vmul.f32 %v736, %v736
  %v1074 = vmul.f32 %v739, %v739
  %v1075 = vmul.f32 %v741, %v741
  %v1076 = vmul.f32 %v744, %v744
  %v1077 = vmul.f32 %v746, %v746
  %v1078 = vmul.f32 %v749, %v749
  %v1079 = vmul.f32 %v751, %v751
  %v1080 = vmul.f32 %v754, %v754
  %v1081 = vmul.f32 %v756, %v756
  %v1082 = vmul.f32 %v759, %v759
  %v1083 = vmul.f32 %v761, %v761
  %v1084 = vmul.f32 %v764, %v764
  %v1085 = vmul.f32 %v766, %v766
  %v1086 = vmul.f32 %v769, %v769
  %v1087 = vmul.f32 %v771, %v771
  %v1088 = vmul.f32 %v774, %v774
  %v1089 = vmul.f32 %v776, %v776
  %v1090 = vmul.f32 %v779, %v779
  %v1091 = vmul.f32 %v781, %v781
  %v1092 = vmul.f32 %v784, %v784
  %v1093 = vmul.f32 %v786, %v786
  %v1094 = vmul.f32 %v789, %v789
  %v1095 = vmul.f32 %v791, %v791
  %v1096 = vmul.f32 %v794, %v794
  %v1097 = vmul.f32 %v796, %v796
  %v1098 = vmul.f32 %v799, %v799
  %v1099 = vmul.f32 %v801, %v801
  %v1100 = vmul.f32 %v804, %v804
  %v1101 = vmul.f32 %v806, %v806
  %v1102 = vmul.f32 %v809, %v809
  %v1103 = vmul.f32 %v811, %v811
  %v1104 = vmul.f32 %v814, %v814
  %v1105 = vmul.f32 %v816, %v816
  %v1106 = vmul.f32 %v819, %v819
  %v1107 = vmul.f32 %v821, %v821
  %v1108 = vmul.f32 %v824, %v824
  %v1109 = vmul.f32 %v826, %v826
  %v1110 = vmul.f32 %v829, %v829
  %v1111 = vmul.f32 %v831, %v831
  %v1112 = vmul.f32 %v834, %v834
  %v1113 = vmul.f32 %v836, %v836
  %v1114 = vmul.f32 %v839, %v839
  %v1115 = vmul.f32 %v841, %v841
  %v1116 = vmul.f32 %v844, %v844
  %v1117 = vmul.f32 %v846, %v846
  %v1118 = vmul.f32 %v849, %v849
  %v1119 = vmul.f32 %v851, %v851
  %v1120 = vmul.f32 %v854, %v854
  %v1121 = vmul.f32 %v856, %v856
  %v1122 = vmul.f32 %v859, %v859
  %v1123 = vmul.f32 %v861, %v861
  %v1124 = vadd.f32 %v1060, %v1061
  %v1125 = vadd.f32 %v1124, %v1062
  %v1126 = vadd.f32 %v1125, %v1063
  %v1127 = vadd.f32 %v1126, %v1064
  %v1128 = vadd.f32 %v1127, %v1065
  %v1129 = vadd.f32 %v1128, %v1066
  %v1130 = vadd.f32 %v1129, %v1067
  %v1131 = vadd.f32 %v1130, %v1068
  %v1132 = vadd.f32 %v1131, %v1069
  %v1133 = vadd.f32 %v1132, %v1070
  %v1134 = vadd.f32 %v1133, %v1071
  %v1135 = vadd.f32 %v1134, %v1072
  %v1136 = vadd.f32 %v1135, %v1073
  %v1137 = vadd.f32 %v1136, %v1074
  %v1138 = vadd.f32 %v1137, %v1075
  %v1139 = vadd.f32 %v1138, %v1076
  %v1140 = vadd.f32 %v1139, %v1077
  %v1141 = vadd.f32 %v1140, %v1078
  %v1142 = vadd.f32 %v1141, %v1079
  %v1143 = vadd.f32 %v1142, %v1080
  %v1144 = vadd.f32 %v1143, %v1081
  %v1145 = vadd.f32 %v1144, %v1082
  %v1146 = vadd.f32 %v1145, %v1083
  %v1147 = vadd.f32 %v1146, %v1084
  %v1148 = vadd.f32 %v1147, %v1085
  %v1149 = vadd.f32 %v1148, %v1086
  %v1150 = vadd.f32 %v1149, %v1087
  %v1151 = vadd.f32 %v1150, %v1088
  %v1152 = vadd.f32 %v1151, %v1089
  %v1153 = vadd.f32 %v1152, %v1090
  %v1154 = vadd.f32 %v1153, %v1091
  %v1155 = vadd.f32 %v1154, %v1092
  %v1156 = vadd.f32 %v1155, %v1093
  %v1157 = vadd.f32 %v1156, %v1094
  %v1158 = vadd.f32 %v1157, %v1095
  %v1159 = vadd.f32 %v1158, %v1096
  %v1160 = vadd.f32 %v1159, %v1097
  %v1161 = vadd.f32 %v1160, %v1098
  %v1162 = vadd.f32 %v1161, %v1099
  %v1163 = vadd.f32 %v1162, %v1100
  %v1164 = vadd.f32 %v1163, %v1101
  %v1165 = vadd.f32 %v1164, %v1102
  %v1166 = vadd.f32 %v1165, %v1103
  %v1167 = vadd.f32 %v1166, %v1104
  %v1168 = vadd.f32 %v1167, %v1105
  %v1169 = vadd.f32 %v1168, %v1106
  %v1170 = vadd.f32 %v1169, %v1107
  %v1171 = vadd.f32 %v1170, %v1108
  %v1172 = vadd.f32 %v1171, %v1109
  %v1173 = vadd.f32 %v1172, %v1110
  %v1174 = vadd.f32 %v1173, %v1111
  %v1175 = vadd.f32 %v1174, %v1112
  %v1176 = vadd.f32 %v1175, %v1113
  %v1177 = vadd.f32 %v1176, %v1114
  %v1178 = vadd.f32 %v1177, %v1115
  %v1179 = vadd.f32 %v1178, %v1116
  %v1180 = vadd.f32 %v1179, %v1117
  %v1181 = vadd.f32 %v1180, %v1118
  %v1182 = vadd.f32 %v1181, %v1119
  %v1183 = vadd.f32 %v1182, %v1120
  %v1184 = vadd.f32 %v1183, %v1121
  %v1185 = vadd.f32 %v1184, %v1122
  %v1186 = vadd.f32 %v1185, %v1123
  %v1187 = vrot.slane %v1186, 4
  %v1188 = vadd.f32 %v1186, %v1187
  %v1189 = vrot.slane %v1188, 2
  %v1190 = vadd.f32 %v1188, %v1189
  %v1191 = vrot.slane %v1190, 1
  %v1192 = vadd.f32 %v1190, %v1191
  %vm1193 = vcmask 1040384
  %v1194 = vsel %vm1193, %v1059, %v1192
  %vm1195 = vcmask 1041408
  %v1196 = vsel %vm1195, %v1194, 0.0
  %1197 = vst [vmem:[%s3] sm:$0xff] %v1196
  // Predicated region
  $region10: #{resnet_generator_forward.47} parent=0 // pred_check
    _
  $region11: #{resnet_generator_forward.47} parent=0 // pred_check_branch
    %1199 = sbr.rel (0) target = $region13
  $region12: #{resnet_generator_forward.47} parent=0 // pred_region
    _
  $region13: #{resnet_generator_forward.47} parent=0 // pred_fallthru
    _
  // Predicated region
  $region14: #{resnet_generator_forward.47} parent=0 // pred_check
    _
  $region15: #{resnet_generator_forward.47} parent=0 // pred_check_branch
    %1201 = sbr.rel (0) target = $region17
  $region16: #{resnet_generator_forward.47} parent=0 // pred_region
    _
  $region17: #{resnet_generator_forward.47} parent=0 // pred_fallthru
    _
  // Predicated region
  $region18: #{resnet_generator_forward.47} parent=0 // pred_check
    _
  $region19: #{resnet_generator_forward.47} parent=0 // pred_check_branch
    %1203 = sbr.rel (0) target = $region21
  $region20: #{resnet_generator_forward.47} parent=0 // pred_region
    _
  $region21: #{resnet_generator_forward.47} parent=0 // pred_fallthru
    _
  // Predicated region
  $region22: #{resnet_generator_forward.47} parent=0 // pred_check
    _
  $region23: #{resnet_generator_forward.47} parent=0 // pred_check_branch
    %1205 = sbr.rel (0) target = $region25
  $region24: #{resnet_generator_forward.47} parent=0 // pred_region
    _
  $region25: #{resnet_generator_forward.47} parent=0 // pred_fallthru
    _

// kernel: resnet_generator_forward.48
$region0: #{resnet_generator_forward.48}
  #allocation0 [shape = 'u32[]', space=smem, size = 0x4, offset = 0x4, fixed_abs, tag = 'smem constant byte address 0x4 - core index']
  #allocation1 [shape = 'u32[72,128]{1,0:T(1,128)}', space=vmem, size = 0x9000, scoped, tag = 'internal scratch']
  %s0 = inlined_call_operand.vmem [shape: bf16[512,128], index: 0, kind: input, shape index: {}]
  %s1 = inlined_call_operand.vmem [shape: f32[8,128], index: 1, kind: input, shape index: {}]
  %s2 = inlined_call_operand.vmem [shape: f32[1,128], index: 2, kind: input, shape index: {}]
  %s3 = inlined_call_operand.vmem [shape: f32[1,128], index: 3, kind: input, shape index: {}]
  %s4 = inlined_call_operand.vmem [shape: bf16[512,128], index: 4, kind: output, shape index: {}]
  %s5 = sld [smem:[#allocation0]]
  $region26: #{resnet_generator_forward.48} parent=0
    _
  %s7 = ssub.s32 1, %s5
  %s8 = scalar_select 0, %s7, %s5
  // Predicated region
  $region2: #{resnet_generator_forward.48} parent=0 // pred_check
    _
  $region3: #{resnet_generator_forward.48} parent=0 // pred_check_branch
    %10 = sbr.rel (0) target = $region5
  $region4: #{resnet_generator_forward.48} parent=0 // pred_region
    _
  $region5: #{resnet_generator_forward.48} parent=0 // pred_fallthru
    _
  // Predicated region
  $region6: #{resnet_generator_forward.48} parent=0 // pred_check
    _
  $region7: #{resnet_generator_forward.48} parent=0 // pred_check_branch
    %12 = sbr.rel (0) target = $region9
  $region8: #{resnet_generator_forward.48} parent=0 // pred_region
    _
  $region9: #{resnet_generator_forward.48} parent=0 // pred_fallthru
    _
  // Predicated region
  $region10: #{resnet_generator_forward.48} parent=0 // pred_check
    _
  $region11: #{resnet_generator_forward.48} parent=0 // pred_check_branch
    %14 = sbr.rel (0) target = $region13
  $region12: #{resnet_generator_forward.48} parent=0 // pred_region
    _
  $region13: #{resnet_generator_forward.48} parent=0 // pred_fallthru
    _
  // Predicated region
  $region14: #{resnet_generator_forward.48} parent=0 // pred_check
    _
  $region15: #{resnet_generator_forward.48} parent=0 // pred_check_branch
    %16 = sbr.rel (0) target = $region17
  $region16: #{resnet_generator_forward.48} parent=0 // pred_region
    _
  $region17: #{resnet_generator_forward.48} parent=0 // pred_fallthru
    _
  %v17 = vld [vmem:[%s1] sm:$0x1]
  %v18 = vmul.f32 %v17, 0.001953125
  %v19 = vld [vmem:[%s1 + $0x1] sm:$0x1]
  %v20 = vmul.f32 %v19, 0.001953125
  %v21 = vmul.f32 %v18, %v18
  %v22 = vsub.f32 %v20, %v21
  %v23 = vmax.f32 %v22, 0.0
  %v24 = vld [vmem:[%s2] sm:$0x1]
  %v25 = vadd.f32 %v23, 1e-05
  %v26 = vrsqrt.pop %v25
  %v27 = vmul.f32 %v26, %v25
  %v28 = vmul.f32 %v27, %v26
  %v29 = vmul.f32 0.5, %v28
  %v30 = vsub.f32 1.5, %v29
  %v31 = vmul.f32 %v26, %v30
  %vm32 = vweird.f32 %v25
  %vm33 = vweird.f32 %v26
  %vm34 = vmor %vm32, %vm33
  %v35 = vsel %vm34, %v26, %v31
  %v36 = vmul.f32 %v24, %v35
  %v37 = vld [vmem:[%s3] sm:$0x1]
  %v38 = vmul.f32 %v18, %v36
  %v39 = vsub.f32 %v37, %v38
  %v40 = vld [vmem:[%s0] sm:$0xf]
  %v41 = vld [vmem:[%s0 + $0x4] sm:$0xf]
  %v42 = vld [vmem:[%s0 + $0x8] sm:$0xf]
  %v43 = vld [vmem:[%s0 + $0xc] sm:$0xf]
  %v44 = vld [vmem:[%s0 + $0x10] sm:$0xf]
  %v45 = vld [vmem:[%s0 + $0x14] sm:$0xf]
  %v46 = vld [vmem:[%s0 + $0x18] sm:$0xf]
  %v47 = vld [vmem:[%s0 + $0x1c] sm:$0xf]
  %v48 = vld [vmem:[%s0 + $0x20] sm:$0xf]
  %v49 = vld [vmem:[%s0 + $0x24] sm:$0xf]
  %v50 = vld [vmem:[%s0 + $0x28] sm:$0xf]
  %v51 = vld [vmem:[%s0 + $0x2c] sm:$0xf]
  %v52 = vld [vmem:[%s0 + $0x30] sm:$0xf]
  %v53 = vld [vmem:[%s0 + $0x34] sm:$0xf]
  %v54 = vld [vmem:[%s0 + $0x38] sm:$0xf]
  %v55 = vld [vmem:[%s0 + $0x3c] sm:$0xf]
  %v56 = vld [vmem:[%s0 + $0x40] sm:$0xf]
  %v57 = vld [vmem:[%s0 + $0x44] sm:$0xf]
  %v58 = vld [vmem:[%s0 + $0x48] sm:$0xf]
  %v59 = vld [vmem:[%s0 + $0x4c] sm:$0xf]
  %v60 = vld [vmem:[%s0 + $0x50] sm:$0xf]
  %v61 = vld [vmem:[%s0 + $0x54] sm:$0xf]
  %v62 = vld [vmem:[%s0 + $0x58] sm:$0xf]
  %v63 = vld [vmem:[%s0 + $0x5c] sm:$0xf]
  %v64 = vld [vmem:[%s0 + $0x60] sm:$0xf]
  %v65 = vld [vmem:[%s0 + $0x64] sm:$0xf]
  %v66 = vld [vmem:[%s0 + $0x68] sm:$0xf]
  %v67 = vld [vmem:[%s0 + $0x6c] sm:$0xf]
  %v68 = vld [vmem:[%s0 + $0x70] sm:$0xf]
  %v69 = vld [vmem:[%s0 + $0x74] sm:$0xf]
  %v70 = vld [vmem:[%s0 + $0x78] sm:$0xf]
  %v71 = vld [vmem:[%s0 + $0x7c] sm:$0xf]
  %v72 = vld [vmem:[%s0 + $0x80] sm:$0xf]
  %v73 = vld [vmem:[%s0 + $0x84] sm:$0xf]
  %v74 = vld [vmem:[%s0 + $0x88] sm:$0xf]
  %v75 = vld [vmem:[%s0 + $0x8c] sm:$0xf]
  %v76 = vld [vmem:[%s0 + $0x90] sm:$0xf]
  %v77 = vld [vmem:[%s0 + $0x94] sm:$0xf]
  %v78 = vld [vmem:[%s0 + $0x98] sm:$0xf]
  %v79 = vld [vmem:[%s0 + $0x9c] sm:$0xf]
  %v80 = vld [vmem:[%s0 + $0xa0] sm:$0xf]
  %v81 = vld [vmem:[%s0 + $0xa4] sm:$0xf]
  %v82 = vld [vmem:[%s0 + $0xa8] sm:$0xf]
  %v83 = vld [vmem:[%s0 + $0xac] sm:$0xf]
  %v84 = vld [vmem:[%s0 + $0xb0] sm:$0xf]
  %v85 = vld [vmem:[%s0 + $0xb4] sm:$0xf]
  %v86 = vld [vmem:[%s0 + $0xb8] sm:$0xf]
  %v87 = vld [vmem:[%s0 + $0xbc] sm:$0xf]
  %v88 = vld [vmem:[%s0 + $0xc0] sm:$0xf]
  %v89 = vld [vmem:[%s0 + $0xc4] sm:$0xf]
  %v90 = vld [vmem:[%s0 + $0xc8] sm:$0xf]
  %v91 = vld [vmem:[%s0 + $0xcc] sm:$0xf]
  %v92 = vld [vmem:[%s0 + $0xd0] sm:$0xf]
  %v93 = vld [vmem:[%s0 + $0xd4] sm:$0xf]
  %v94 = vld [vmem:[%s0 + $0xd8] sm:$0xf]
  %v95 = vld [vmem:[%s0 + $0xdc] sm:$0xf]
  %v96 = vld [vmem:[%s0 + $0xe0] sm:$0xf]
  %v97 = vld [vmem:[%s0 + $0xe4] sm:$0xf]
  %v98 = vld [vmem:[%s0 + $0xe8] sm:$0xf]
  %v99 = vld [vmem:[%s0 + $0xec] sm:$0xf]
  %v100 = vld [vmem:[%s0 + $0xf0] sm:$0xf]
  %v101 = vld [vmem:[%s0 + $0xf4] sm:$0xf]
  %v102 = vld [vmem:[%s0 + $0xf8] sm:$0xf]
  %v103 = vld [vmem:[%s0 + $0xfc] sm:$0xf]
  %v104 = vunpack.c.l.bf16 %v40
  %v105 = vunpack.c.l.bf16 %v41
  %v106 = vunpack.c.l.bf16 %v42
  %v107 = vunpack.c.l.bf16 %v43
  %v108 = vunpack.c.l.bf16 %v44
  %v109 = vunpack.c.l.bf16 %v45
  %v110 = vunpack.c.l.bf16 %v46
  %v111 = vunpack.c.l.bf16 %v47
  %v112 = vunpack.c.l.bf16 %v48
  %v113 = vunpack.c.l.bf16 %v49
  %v114 = vunpack.c.l.bf16 %v50
  %v115 = vunpack.c.l.bf16 %v51
  %v116 = vunpack.c.l.bf16 %v52
  %v117 = vunpack.c.l.bf16 %v53
  %v118 = vunpack.c.l.bf16 %v54
  %v119 = vunpack.c.l.bf16 %v55
  %v120 = vunpack.c.l.bf16 %v56
  %v121 = vunpack.c.l.bf16 %v57
  %v122 = vunpack.c.l.bf16 %v58
  %v123 = vunpack.c.l.bf16 %v59
  %v124 = vunpack.c.l.bf16 %v60
  %v125 = vunpack.c.l.bf16 %v61
  %v126 = vunpack.c.l.bf16 %v62
  %v127 = vunpack.c.l.bf16 %v63
  %v128 = vunpack.c.l.bf16 %v64
  %v129 = vunpack.c.l.bf16 %v65
  %v130 = vunpack.c.l.bf16 %v66
  %v131 = vunpack.c.l.bf16 %v67
  %v132 = vunpack.c.l.bf16 %v68
  %v133 = vunpack.c.l.bf16 %v69
  %v134 = vunpack.c.l.bf16 %v70
  %v135 = vunpack.c.l.bf16 %v71
  %v136 = vunpack.c.l.bf16 %v72
  %v137 = vunpack.c.l.bf16 %v73
  %v138 = vunpack.c.l.bf16 %v74
  %v139 = vunpack.c.l.bf16 %v75
  %v140 = vunpack.c.l.bf16 %v76
  %v141 = vunpack.c.l.bf16 %v77
  %v142 = vunpack.c.l.bf16 %v78
  %v143 = vunpack.c.l.bf16 %v79
  %v144 = vunpack.c.l.bf16 %v80
  %v145 = vunpack.c.l.bf16 %v81
  %v146 = vunpack.c.l.bf16 %v82
  %v147 = vunpack.c.l.bf16 %v83
  %v148 = vunpack.c.l.bf16 %v84
  %v149 = vunpack.c.l.bf16 %v85
  %v150 = vunpack.c.l.bf16 %v86
  %v151 = vunpack.c.l.bf16 %v87
  %v152 = vunpack.c.l.bf16 %v88
  %v153 = vunpack.c.l.bf16 %v89
  %v154 = vunpack.c.l.bf16 %v90
  %v155 = vunpack.c.l.bf16 %v91
  %v156 = vunpack.c.l.bf16 %v92
  %v157 = vunpack.c.l.bf16 %v93
  %v158 = vunpack.c.l.bf16 %v94
  %v159 = vunpack.c.l.bf16 %v95
  %v160 = vunpack.c.l.bf16 %v96
  %v161 = vunpack.c.l.bf16 %v97
  %v162 = vunpack.c.l.bf16 %v98
  %v163 = vunpack.c.l.bf16 %v99
  %v164 = vunpack.c.l.bf16 %v100
  %v165 = vunpack.c.l.bf16 %v101
  %v166 = vunpack.c.l.bf16 %v102
  %v167 = vunpack.c.l.bf16 %v103
  %v169 = vperm.slane %v36, 0
  %v171 = vmul.f32 %v104, %v169
  %v172 = vmul.f32 %v105, %v169
  %v173 = vmul.f32 %v106, %v169
  %v174 = vmul.f32 %v107, %v169
  %v175 = vmul.f32 %v108, %v169
  %v176 = vmul.f32 %v109, %v169
  %v177 = vmul.f32 %v110, %v169
  %v178 = vmul.f32 %v111, %v169
  %v179 = vmul.f32 %v112, %v169
  %v180 = vmul.f32 %v113, %v169
  %v181 = vmul.f32 %v114, %v169
  %v182 = vmul.f32 %v115, %v169
  %v183 = vmul.f32 %v116, %v169
  %v184 = vmul.f32 %v117, %v169
  %v185 = vmul.f32 %v118, %v169
  %v186 = vmul.f32 %v119, %v169
  %v187 = vmul.f32 %v120, %v169
  %v188 = vmul.f32 %v121, %v169
  %v189 = vmul.f32 %v122, %v169
  %v190 = vmul.f32 %v123, %v169
  %v191 = vmul.f32 %v124, %v169
  %v192 = vmul.f32 %v125, %v169
  %v193 = vmul.f32 %v126, %v169
  %v194 = vmul.f32 %v127, %v169
  %v195 = vmul.f32 %v128, %v169
  %v196 = vmul.f32 %v129, %v169
  %v197 = vmul.f32 %v130, %v169
  %v198 = vmul.f32 %v131, %v169
  %v199 = vmul.f32 %v132, %v169
  %v200 = vmul.f32 %v133, %v169
  %v201 = vmul.f32 %v134, %v169
  %v202 = vmul.f32 %v135, %v169
  %v203 = vmul.f32 %v136, %v169
  %v204 = vmul.f32 %v137, %v169
  %v205 = vmul.f32 %v138, %v169
  %v206 = vmul.f32 %v139, %v169
  %v207 = vmul.f32 %v140, %v169
  %v208 = vmul.f32 %v141, %v169
  %v209 = vmul.f32 %v142, %v169
  %v210 = vmul.f32 %v143, %v169
  %v211 = vmul.f32 %v144, %v169
  %v212 = vmul.f32 %v145, %v169
  %v213 = vmul.f32 %v146, %v169
  %v214 = vmul.f32 %v147, %v169
  %v215 = vmul.f32 %v148, %v169
  %v216 = vmul.f32 %v149, %v169
  %v217 = vmul.f32 %v150, %v169
  %v218 = vmul.f32 %v151, %v169
  %v219 = vmul.f32 %v152, %v169
  %v220 = vmul.f32 %v153, %v169
  %v221 = vmul.f32 %v154, %v169
  %v222 = vmul.f32 %v155, %v169
  %v223 = vmul.f32 %v156, %v169
  %v224 = vmul.f32 %v157, %v169
  %v225 = vmul.f32 %v158, %v169
  %v226 = vmul.f32 %v159, %v169
  %v227 = vmul.f32 %v160, %v169
  %v228 = vmul.f32 %v161, %v169
  %v229 = vmul.f32 %v162, %v169
  %v230 = vmul.f32 %v163, %v169
  %v231 = vmul.f32 %v164, %v169
  %v232 = vmul.f32 %v165, %v169
  %v233 = vmul.f32 %v166, %v169
  %v234 = vmul.f32 %v167, %v169
  %v236 = vperm.slane %v39, 0
  %v238 = vadd.f32 %v171, %v236
  %v239 = vadd.f32 %v172, %v236
  %v240 = vadd.f32 %v173, %v236
  %v241 = vadd.f32 %v174, %v236
  %v242 = vadd.f32 %v175, %v236
  %v243 = vadd.f32 %v176, %v236
  %v244 = vadd.f32 %v177, %v236
  %v245 = vadd.f32 %v178, %v236
  %v246 = vadd.f32 %v179, %v236
  %v247 = vadd.f32 %v180, %v236
  %v248 = vadd.f32 %v181, %v236
  %v249 = vadd.f32 %v182, %v236
  %v250 = vadd.f32 %v183, %v236
  %v251 = vadd.f32 %v184, %v236
  %v252 = vadd.f32 %v185, %v236
  %v253 = vadd.f32 %v186, %v236
  %v254 = vadd.f32 %v187, %v236
  %v255 = vadd.f32 %v188, %v236
  %v256 = vadd.f32 %v189, %v236
  %v257 = vadd.f32 %v190, %v236
  %v258 = vadd.f32 %v191, %v236
  %v259 = vadd.f32 %v192, %v236
  %v260 = vadd.f32 %v193, %v236
  %v261 = vadd.f32 %v194, %v236
  %v262 = vadd.f32 %v195, %v236
  %v263 = vadd.f32 %v196, %v236
  %v264 = vadd.f32 %v197, %v236
  %v265 = vadd.f32 %v198, %v236
  %v266 = vadd.f32 %v199, %v236
  %v267 = vadd.f32 %v200, %v236
  %v268 = vadd.f32 %v201, %v236
  %v269 = vadd.f32 %v202, %v236
  %v270 = vadd.f32 %v203, %v236
  %v271 = vadd.f32 %v204, %v236
  %v272 = vadd.f32 %v205, %v236
  %v273 = vadd.f32 %v206, %v236
  %v274 = vadd.f32 %v207, %v236
  %v275 = vadd.f32 %v208, %v236
  %v276 = vadd.f32 %v209, %v236
  %v277 = vadd.f32 %v210, %v236
  %v278 = vadd.f32 %v211, %v236
  %v279 = vadd.f32 %v212, %v236
  %v280 = vadd.f32 %v213, %v236
  %v281 = vadd.f32 %v214, %v236
  %v282 = vadd.f32 %v215, %v236
  %v283 = vadd.f32 %v216, %v236
  %v284 = vadd.f32 %v217, %v236
  %v285 = vadd.f32 %v218, %v236
  %v286 = vadd.f32 %v219, %v236
  %v287 = vadd.f32 %v220, %v236
  %v288 = vadd.f32 %v221, %v236
  %v289 = vadd.f32 %v222, %v236
  %v290 = vadd.f32 %v223, %v236
  %v291 = vadd.f32 %v224, %v236
  %v292 = vadd.f32 %v225, %v236
  %v293 = vadd.f32 %v226, %v236
  %v294 = vadd.f32 %v227, %v236
  %v295 = vadd.f32 %v228, %v236
  %v296 = vadd.f32 %v229, %v236
  %v297 = vadd.f32 %v230, %v236
  %v298 = vadd.f32 %v231, %v236
  %v299 = vadd.f32 %v232, %v236
  %v300 = vadd.f32 %v233, %v236
  %v301 = vadd.f32 %v234, %v236
  %v302 = vmax.f32 %v238, 0.0
  %v303 = vmax.f32 %v239, 0.0
  %v304 = vmax.f32 %v240, 0.0
  %v305 = vmax.f32 %v241, 0.0
  %v306 = vmax.f32 %v242, 0.0
  %v307 = vmax.f32 %v243, 0.0
  %v308 = vmax.f32 %v244, 0.0
  %v309 = vmax.f32 %v245, 0.0
  %v310 = vmax.f32 %v246, 0.0
  %v311 = vmax.f32 %v247, 0.0
  %v312 = vmax.f32 %v248, 0.0
  %v313 = vmax.f32 %v249, 0.0
  %v314 = vmax.f32 %v250, 0.0
  %v315 = vmax.f32 %v251, 0.0
  %v316 = vmax.f32 %v252, 0.0
  %v317 = vmax.f32 %v253, 0.0
  %v318 = vmax.f32 %v254, 0.0
  %v319 = vmax.f32 %v255, 0.0
  %v320 = vmax.f32 %v256, 0.0
  %v321 = vmax.f32 %v257, 0.0
  %v322 = vmax.f32 %v258, 0.0
  %v323 = vmax.f32 %v259, 0.0
  %v324 = vmax.f32 %v260, 0.0
  %v325 = vmax.f32 %v261, 0.0
  %v326 = vmax.f32 %v262, 0.0
  %v327 = vmax.f32 %v263, 0.0
  %v328 = vmax.f32 %v264, 0.0
  %v329 = vmax.f32 %v265, 0.0
  %v330 = vmax.f32 %v266, 0.0
  %v331 = vmax.f32 %v267, 0.0
  %v332 = vmax.f32 %v268, 0.0
  %v333 = vmax.f32 %v269, 0.0
  %v334 = vmax.f32 %v270, 0.0
  %v335 = vmax.f32 %v271, 0.0
  %v336 = vmax.f32 %v272, 0.0
  %v337 = vmax.f32 %v273, 0.0
  %v338 = vmax.f32 %v274, 0.0
  %v339 = vmax.f32 %v275, 0.0
  %v340 = vmax.f32 %v276, 0.0
  %v341 = vmax.f32 %v277, 0.0
  %v342 = vmax.f32 %v278, 0.0
  %v343 = vmax.f32 %v279, 0.0
  %v344 = vmax.f32 %v280, 0.0
  %v345 = vmax.f32 %v281, 0.0
  %v346 = vmax.f32 %v282, 0.0
  %v347 = vmax.f32 %v283, 0.0
  %v348 = vmax.f32 %v284, 0.0
  %v349 = vmax.f32 %v285, 0.0
  %v350 = vmax.f32 %v286, 0.0
  %v351 = vmax.f32 %v287, 0.0
  %v352 = vmax.f32 %v288, 0.0
  %v353 = vmax.f32 %v289, 0.0
  %v354 = vmax.f32 %v290, 0.0
  %v355 = vmax.f32 %v291, 0.0
  %v356 = vmax.f32 %v292, 0.0
  %v357 = vmax.f32 %v293, 0.0
  %v358 = vmax.f32 %v294, 0.0
  %v359 = vmax.f32 %v295, 0.0
  %v360 = vmax.f32 %v296, 0.0
  %v361 = vmax.f32 %v297, 0.0
  %v362 = vmax.f32 %v298, 0.0
  %v363 = vmax.f32 %v299, 0.0
  %v364 = vmax.f32 %v300, 0.0
  %v365 = vmax.f32 %v301, 0.0
  %v366 = vpack.c.bf16 %v302, %v302
  %v367 = vpack.c.bf16 %v303, %v303
  %v368 = vpack.c.bf16 %v304, %v304
  %v369 = vpack.c.bf16 %v305, %v305
  %v370 = vpack.c.bf16 %v306, %v306
  %v371 = vpack.c.bf16 %v307, %v307
  %v372 = vpack.c.bf16 %v308, %v308
  %v373 = vpack.c.bf16 %v309, %v309
  %v374 = vpack.c.bf16 %v310, %v310
  %v375 = vpack.c.bf16 %v311, %v311
  %v376 = vpack.c.bf16 %v312, %v312
  %v377 = vpack.c.bf16 %v313, %v313
  %v378 = vpack.c.bf16 %v314, %v314
  %v379 = vpack.c.bf16 %v315, %v315
  %v380 = vpack.c.bf16 %v316, %v316
  %v381 = vpack.c.bf16 %v317, %v317
  %v382 = vpack.c.bf16 %v318, %v318
  %v383 = vpack.c.bf16 %v319, %v319
  %v384 = vpack.c.bf16 %v320, %v320
  %v385 = vpack.c.bf16 %v321, %v321
  %v386 = vpack.c.bf16 %v322, %v322
  %v387 = vpack.c.bf16 %v323, %v323
  %v388 = vpack.c.bf16 %v324, %v324
  %v389 = vpack.c.bf16 %v325, %v325
  %v390 = vpack.c.bf16 %v326, %v326
  %v391 = vpack.c.bf16 %v327, %v327
  %v392 = vpack.c.bf16 %v328, %v328
  %v393 = vpack.c.bf16 %v329, %v329
  %v394 = vpack.c.bf16 %v330, %v330
  %v395 = vpack.c.bf16 %v331, %v331
  %v396 = vpack.c.bf16 %v332, %v332
  %v397 = vpack.c.bf16 %v333, %v333
  %v398 = vpack.c.bf16 %v334, %v334
  %v399 = vpack.c.bf16 %v335, %v335
  %v400 = vpack.c.bf16 %v336, %v336
  %v401 = vpack.c.bf16 %v337, %v337
  %v402 = vpack.c.bf16 %v338, %v338
  %v403 = vpack.c.bf16 %v339, %v339
  %v404 = vpack.c.bf16 %v340, %v340
  %v405 = vpack.c.bf16 %v341, %v341
  %v406 = vpack.c.bf16 %v342, %v342
  %v407 = vpack.c.bf16 %v343, %v343
  %v408 = vpack.c.bf16 %v344, %v344
  %v409 = vpack.c.bf16 %v345, %v345
  %v410 = vpack.c.bf16 %v346, %v346
  %v411 = vpack.c.bf16 %v347, %v347
  %v412 = vpack.c.bf16 %v348, %v348
  %v413 = vpack.c.bf16 %v349, %v349
  %v414 = vpack.c.bf16 %v350, %v350
  %v415 = vpack.c.bf16 %v351, %v351
  %v416 = vpack.c.bf16 %v352, %v352
  %v417 = vpack.c.bf16 %v353, %v353
  %v418 = vpack.c.bf16 %v354, %v354
  %v419 = vpack.c.bf16 %v355, %v355
  %v420 = vpack.c.bf16 %v356, %v356
  %v421 = vpack.c.bf16 %v357, %v357
  %v422 = vpack.c.bf16 %v358, %v358
  %v423 = vpack.c.bf16 %v359, %v359
  %v424 = vpack.c.bf16 %v360, %v360
  %v425 = vpack.c.bf16 %v361, %v361
  %v426 = vpack.c.bf16 %v362, %v362
  %v427 = vpack.c.bf16 %v363, %v363
  %v428 = vpack.c.bf16 %v364, %v364
  %v429 = vpack.c.bf16 %v365, %v365
  %430 = vst [vmem:[%s4] sm:$0xf] %v366
  %431 = vst [vmem:[%s4 + $0x4] sm:$0xf] %v367
  %432 = vst [vmem:[%s4 + $0x8] sm:$0xf] %v368
  %433 = vst [vmem:[%s4 + $0xc] sm:$0xf] %v369
  %434 = vst [vmem:[%s4 + $0x10] sm:$0xf] %v370
  %435 = vst [vmem:[%s4 + $0x14] sm:$0xf] %v371
  %436 = vst [vmem:[%s4 + $0x18] sm:$0xf] %v372
  %437 = vst [vmem:[%s4 + $0x1c] sm:$0xf] %v373
  %438 = vst [vmem:[%s4 + $0x20] sm:$0xf] %v374
  %439 = vst [vmem:[%s4 + $0x24] sm:$0xf] %v375
  %440 = vst [vmem:[%s4 + $0x28] sm:$0xf] %v376
  %441 = vst [vmem:[%s4 + $0x2c] sm:$0xf] %v377
  %442 = vst [vmem:[%s4 + $0x30] sm:$0xf] %v378
  %443 = vst [vmem:[%s4 + $0x34] sm:$0xf] %v379
  %444 = vst [vmem:[%s4 + $0x38] sm:$0xf] %v380
  %445 = vst [vmem:[%s4 + $0x3c] sm:$0xf] %v381
  %446 = vst [vmem:[%s4 + $0x40] sm:$0xf] %v382
  %447 = vst [vmem:[%s4 + $0x44] sm:$0xf] %v383
  %448 = vst [vmem:[%s4 + $0x48] sm:$0xf] %v384
  %449 = vst [vmem:[%s4 + $0x4c] sm:$0xf] %v385
  %450 = vst [vmem:[%s4 + $0x50] sm:$0xf] %v386
  %451 = vst [vmem:[%s4 + $0x54] sm:$0xf] %v387
  %452 = vst [vmem:[%s4 + $0x58] sm:$0xf] %v388
  %453 = vst [vmem:[%s4 + $0x5c] sm:$0xf] %v389
  %454 = vst [vmem:[%s4 + $0x60] sm:$0xf] %v390
  %455 = vst [vmem:[%s4 + $0x64] sm:$0xf] %v391
  %456 = vst [vmem:[%s4 + $0x68] sm:$0xf] %v392
  %457 = vst [vmem:[%s4 + $0x6c] sm:$0xf] %v393
  %458 = vst [vmem:[%s4 + $0x70] sm:$0xf] %v394
  %459 = vst [vmem:[%s4 + $0x74] sm:$0xf] %v395
  %460 = vst [vmem:[%s4 + $0x78] sm:$0xf] %v396
  %461 = vst [vmem:[%s4 + $0x7c] sm:$0xf] %v397
  %462 = vst [vmem:[%s4 + $0x80] sm:$0xf] %v398
  %463 = vst [vmem:[%s4 + $0x84] sm:$0xf] %v399
  %464 = vst [vmem:[%s4 + $0x88] sm:$0xf] %v400
  %465 = vst [vmem:[%s4 + $0x8c] sm:$0xf] %v401
  %466 = vst [vmem:[%s4 + $0x90] sm:$0xf] %v402
  %467 = vst [vmem:[%s4 + $0x94] sm:$0xf] %v403
  %468 = vst [vmem:[%s4 + $0x98] sm:$0xf] %v404
  %469 = vst [vmem:[%s4 + $0x9c] sm:$0xf] %v405
  %470 = vst [vmem:[%s4 + $0xa0] sm:$0xf] %v406
  %471 = vst [vmem:[%s4 + $0xa4] sm:$0xf] %v407
  %472 = vst [vmem:[%s4 + $0xa8] sm:$0xf] %v408
  %473 = vst [vmem:[%s4 + $0xac] sm:$0xf] %v409
  %474 = vst [vmem:[%s4 + $0xb0] sm:$0xf] %v410
  %475 = vst [vmem:[%s4 + $0xb4] sm:$0xf] %v411
  %476 = vst [vmem:[%s4 + $0xb8] sm:$0xf] %v412
  %477 = vst [vmem:[%s4 + $0xbc] sm:$0xf] %v413
  %478 = vst [vmem:[%s4 + $0xc0] sm:$0xf] %v414
  %479 = vst [vmem:[%s4 + $0xc4] sm:$0xf] %v415
  %480 = vst [vmem:[%s4 + $0xc8] sm:$0xf] %v416
  %481 = vst [vmem:[%s4 + $0xcc] sm:$0xf] %v417
  %482 = vst [vmem:[%s4 + $0xd0] sm:$0xf] %v418
  %483 = vst [vmem:[%s4 + $0xd4] sm:$0xf] %v419
  %484 = vst [vmem:[%s4 + $0xd8] sm:$0xf] %v420
  %485 = vst [vmem:[%s4 + $0xdc] sm:$0xf] %v421
  %486 = vst [vmem:[%s4 + $0xe0] sm:$0xf] %v422
  %487 = vst [vmem:[%s4 + $0xe4] sm:$0xf] %v423
  %488 = vst [vmem:[%s4 + $0xe8] sm:$0xf] %v424
  %489 = vst [vmem:[%s4 + $0xec] sm:$0xf] %v425
  %490 = vst [vmem:[%s4 + $0xf0] sm:$0xf] %v426
  %491 = vst [vmem:[%s4 + $0xf4] sm:$0xf] %v427
  %492 = vst [vmem:[%s4 + $0xf8] sm:$0xf] %v428
  %493 = vst [vmem:[%s4 + $0xfc] sm:$0xf] %v429
  // Predicated region
  $region18: #{resnet_generator_forward.48} parent=0 // pred_check
    _
  $region19: #{resnet_generator_forward.48} parent=0 // pred_check_branch
    %495 = sbr.rel (0) target = $region21
  $region20: #{resnet_generator_forward.48} parent=0 // pred_region
    _
  $region21: #{resnet_generator_forward.48} parent=0 // pred_fallthru
    _
  // Predicated region
  $region22: #{resnet_generator_forward.48} parent=0 // pred_check
    _
  $region23: #{resnet_generator_forward.48} parent=0 // pred_check_branch
    %497 = sbr.rel (0) target = $region25
  $region24: #{resnet_generator_forward.48} parent=0 // pred_region
    _
  $region25: #{resnet_generator_forward.48} parent=0 // pred_fallthru
    _

// kernel: resnet_generator_forward.49
$region0: #{resnet_generator_forward.49}
  #allocation0 [shape = 'u32[]', space=smem, size = 0x4, offset = 0x4, fixed_abs, tag = 'smem constant byte address 0x4 - core index']
  #allocation1 [shape = 'u32[72,128]{1,0:T(1,128)}', space=vmem, size = 0x9000, scoped, tag = 'internal scratch']
  %s0 = inlined_call_operand.vmem [shape: bf16[128,128], index: 0, kind: input, shape index: {}]
  %s1 = inlined_call_operand.vmem [shape: bf16[128,128], index: 1, kind: input, shape index: {}]
  %s2 = inlined_call_operand.vmem [shape: bf16[128,128], index: 2, kind: output, shape index: {0}]
  %s3 = inlined_call_operand.vmem [shape: f32[1,8,128], index: 3, kind: output, shape index: {1}]
  %4 = xla_tuple %s2, %s3
  %s5 = sld [smem:[#allocation0]]
  $region26: #{resnet_generator_forward.49} parent=0
    _
  %s7 = ssub.s32 1, %s5
  %s8 = scalar_select 0, %s7, %s5
  // Predicated region
  $region2: #{resnet_generator_forward.49} parent=0 // pred_check
    _
  $region3: #{resnet_generator_forward.49} parent=0 // pred_check_branch
    %10 = sbr.rel (0) target = $region5
  $region4: #{resnet_generator_forward.49} parent=0 // pred_region
    _
  $region5: #{resnet_generator_forward.49} parent=0 // pred_fallthru
    _
  // Predicated region
  $region6: #{resnet_generator_forward.49} parent=0 // pred_check
    _
  $region7: #{resnet_generator_forward.49} parent=0 // pred_check_branch
    %12 = sbr.rel (0) target = $region9
  $region8: #{resnet_generator_forward.49} parent=0 // pred_region
    _
  $region9: #{resnet_generator_forward.49} parent=0 // pred_fallthru
    _
  %v13 = vld [vmem:[%s0] sm:$0xf]
  %v14 = vld [vmem:[%s0 + $0x4] sm:$0xf]
  %v15 = vld [vmem:[%s0 + $0x8] sm:$0xf]
  %v16 = vld [vmem:[%s0 + $0xc] sm:$0xf]
  %v17 = vld [vmem:[%s0 + $0x10] sm:$0xf]
  %v18 = vld [vmem:[%s0 + $0x14] sm:$0xf]
  %v19 = vld [vmem:[%s0 + $0x18] sm:$0xf]
  %v20 = vld [vmem:[%s0 + $0x1c] sm:$0xf]
  %v21 = vld [vmem:[%s0 + $0x20] sm:$0xf]
  %v22 = vld [vmem:[%s0 + $0x24] sm:$0xf]
  %v23 = vld [vmem:[%s0 + $0x28] sm:$0xf]
  %v24 = vld [vmem:[%s0 + $0x2c] sm:$0xf]
  %v25 = vld [vmem:[%s0 + $0x30] sm:$0xf]
  %v26 = vld [vmem:[%s0 + $0x34] sm:$0xf]
  %v27 = vld [vmem:[%s0 + $0x38] sm:$0xf]
  %v28 = vld [vmem:[%s0 + $0x3c] sm:$0xf]
  %v29 = vld [vmem:[%s1] sm:$0xf]
  %v30 = vld [vmem:[%s1 + $0x4] sm:$0xf]
  %v31 = vld [vmem:[%s1 + $0x8] sm:$0xf]
  %v32 = vld [vmem:[%s1 + $0xc] sm:$0xf]
  %v33 = vld [vmem:[%s1 + $0x10] sm:$0xf]
  %v34 = vld [vmem:[%s1 + $0x14] sm:$0xf]
  %v35 = vld [vmem:[%s1 + $0x18] sm:$0xf]
  %v36 = vld [vmem:[%s1 + $0x1c] sm:$0xf]
  %v37 = vld [vmem:[%s1 + $0x20] sm:$0xf]
  %v38 = vld [vmem:[%s1 + $0x24] sm:$0xf]
  %v39 = vld [vmem:[%s1 + $0x28] sm:$0xf]
  %v40 = vld [vmem:[%s1 + $0x2c] sm:$0xf]
  %v41 = vld [vmem:[%s1 + $0x30] sm:$0xf]
  %v42 = vld [vmem:[%s1 + $0x34] sm:$0xf]
  %v43 = vld [vmem:[%s1 + $0x38] sm:$0xf]
  %v44 = vld [vmem:[%s1 + $0x3c] sm:$0xf]
  %v61 = vunpack.c.l.b16 %v13
  %v62 = vunpack.c.l.b16 %v14
  %v63 = vunpack.c.l.b16 %v15
  %v64 = vunpack.c.l.b16 %v16
  %v65 = vunpack.c.l.b16 %v17
  %v66 = vunpack.c.l.b16 %v18
  %v67 = vunpack.c.l.b16 %v19
  %v68 = vunpack.c.l.b16 %v20
  %v69 = vunpack.c.l.b16 %v21
  %v70 = vunpack.c.l.b16 %v22
  %v71 = vunpack.c.l.b16 %v23
  %v72 = vunpack.c.l.b16 %v24
  %v73 = vunpack.c.l.b16 %v25
  %v74 = vunpack.c.l.b16 %v26
  %v75 = vunpack.c.l.b16 %v27
  %v76 = vunpack.c.l.b16 %v28
  %v77 = vpack.c.b16 %v62, %v61
  %v78 = vpack.c.b16 %v64, %v63
  %v79 = vpack.c.b16 %v66, %v65
  %v80 = vpack.c.b16 %v68, %v67
  %v81 = vpack.c.b16 %v70, %v69
  %v82 = vpack.c.b16 %v72, %v71
  %v83 = vpack.c.b16 %v74, %v73
  %v84 = vpack.c.b16 %v76, %v75
  %v109 = vunpack.c.l.b16 %v29
  %v110 = vunpack.c.l.b16 %v30
  %v111 = vunpack.c.l.b16 %v31
  %v112 = vunpack.c.l.b16 %v32
  %v113 = vunpack.c.l.b16 %v33
  %v114 = vunpack.c.l.b16 %v34
  %v115 = vunpack.c.l.b16 %v35
  %v116 = vunpack.c.l.b16 %v36
  %v117 = vunpack.c.l.b16 %v37
  %v118 = vunpack.c.l.b16 %v38
  %v119 = vunpack.c.l.b16 %v39
  %v120 = vunpack.c.l.b16 %v40
  %v121 = vunpack.c.l.b16 %v41
  %v122 = vunpack.c.l.b16 %v42
  %v123 = vunpack.c.l.b16 %v43
  %v124 = vunpack.c.l.b16 %v44
  %v125 = vpack.c.b16 %v110, %v109
  %v126 = vpack.c.b16 %v112, %v111
  %v127 = vpack.c.b16 %v114, %v113
  %v128 = vpack.c.b16 %v116, %v115
  %v129 = vpack.c.b16 %v118, %v117
  %v130 = vpack.c.b16 %v120, %v119
  %v131 = vpack.c.b16 %v122, %v121
  %v132 = vpack.c.b16 %v124, %v123
  %141 = vmatpush.bf16.msra.mxu0 %v132
  %142 = vmatpush.bf16.msra.mxu0 %v131
  %143 = vmatpush.bf16.msra.mxu0 %v130
  %144 = vmatpush.bf16.msra.mxu0 %v129
  %145 = vmatpush.bf16.msra.mxu0 %v128
  %146 = vmatpush.bf16.msra.mxu0 %v127
  %147 = vmatpush.bf16.msra.mxu0 %v126
  %148 = vmatpush.bf16.msra.mxu0 %v125
  %149 = vmatmul.bf16.gmra.mxu0 %v77
  %v150 = vpop.f32.mrf.mxu0
  %v151 = vadd.f32 0.0, %v150
  %v152 = vpop.f32.mrf.mxu0
  %v153 = vadd.f32 0.0, %v152
  %154 = vmatmul.bf16.gmra.mxu0 %v78
  %v155 = vpop.f32.mrf.mxu0
  %v156 = vadd.f32 0.0, %v155
  %v157 = vpop.f32.mrf.mxu0
  %v158 = vadd.f32 0.0, %v157
  %159 = vmatmul.bf16.gmra.mxu0 %v79
  %v160 = vpop.f32.mrf.mxu0
  %v161 = vadd.f32 0.0, %v160
  %v162 = vpop.f32.mrf.mxu0
  %v163 = vadd.f32 0.0, %v162
  %164 = vmatmul.bf16.gmra.mxu0 %v80
  %v165 = vpop.f32.mrf.mxu0
  %v166 = vadd.f32 0.0, %v165
  %v167 = vpop.f32.mrf.mxu0
  %v168 = vadd.f32 0.0, %v167
  %169 = vmatmul.bf16.gmra.mxu0 %v81
  %v170 = vpop.f32.mrf.mxu0
  %v171 = vadd.f32 0.0, %v170
  %v172 = vpop.f32.mrf.mxu0
  %v173 = vadd.f32 0.0, %v172
  %174 = vmatmul.bf16.gmra.mxu0 %v82
  %v175 = vpop.f32.mrf.mxu0
  %v176 = vadd.f32 0.0, %v175
  %v177 = vpop.f32.mrf.mxu0
  %v178 = vadd.f32 0.0, %v177
  %179 = vmatmul.bf16.gmra.mxu0 %v83
  %v180 = vpop.f32.mrf.mxu0
  %v181 = vadd.f32 0.0, %v180
  %v182 = vpop.f32.mrf.mxu0
  %v183 = vadd.f32 0.0, %v182
  %184 = vmatmul.bf16.gmra.mxu0 %v84
  %v185 = vpop.f32.mrf.mxu0
  %v186 = vadd.f32 0.0, %v185
  %v187 = vpop.f32.mrf.mxu0
  %v188 = vadd.f32 0.0, %v187
  %189 = vdwg.mxu0
  %v190 = vpack.c.bf16 %v151, %v151
  %v191 = vpack.c.bf16 %v153, %v153
  %v192 = vpack.c.bf16 %v156, %v156
  %v193 = vpack.c.bf16 %v158, %v158
  %v194 = vpack.c.bf16 %v161, %v161
  %v195 = vpack.c.bf16 %v163, %v163
  %v196 = vpack.c.bf16 %v166, %v166
  %v197 = vpack.c.bf16 %v168, %v168
  %v198 = vpack.c.bf16 %v171, %v171
  %v199 = vpack.c.bf16 %v173, %v173
  %v200 = vpack.c.bf16 %v176, %v176
  %v201 = vpack.c.bf16 %v178, %v178
  %v202 = vpack.c.bf16 %v181, %v181
  %v203 = vpack.c.bf16 %v183, %v183
  %v204 = vpack.c.bf16 %v186, %v186
  %v205 = vpack.c.bf16 %v188, %v188
  %206 = vst [vmem:[%s2] sm:$0xf] %v190
  %207 = vst [vmem:[%s2 + $0x4] sm:$0xf] %v191
  %208 = vst [vmem:[%s2 + $0x8] sm:$0xf] %v192
  %209 = vst [vmem:[%s2 + $0xc] sm:$0xf] %v193
  %210 = vst [vmem:[%s2 + $0x10] sm:$0xf] %v194
  %211 = vst [vmem:[%s2 + $0x14] sm:$0xf] %v195
  %212 = vst [vmem:[%s2 + $0x18] sm:$0xf] %v196
  %213 = vst [vmem:[%s2 + $0x1c] sm:$0xf] %v197
  %214 = vst [vmem:[%s2 + $0x20] sm:$0xf] %v198
  %215 = vst [vmem:[%s2 + $0x24] sm:$0xf] %v199
  %216 = vst [vmem:[%s2 + $0x28] sm:$0xf] %v200
  %217 = vst [vmem:[%s2 + $0x2c] sm:$0xf] %v201
  %218 = vst [vmem:[%s2 + $0x30] sm:$0xf] %v202
  %219 = vst [vmem:[%s2 + $0x34] sm:$0xf] %v203
  %220 = vst [vmem:[%s2 + $0x38] sm:$0xf] %v204
  %221 = vst [vmem:[%s2 + $0x3c] sm:$0xf] %v205
  %v222 = vadd.f32 %v151, %v153
  %v223 = vadd.f32 %v222, %v156
  %v224 = vadd.f32 %v223, %v158
  %v225 = vadd.f32 %v224, %v161
  %v226 = vadd.f32 %v225, %v163
  %v227 = vadd.f32 %v226, %v166
  %v228 = vadd.f32 %v227, %v168
  %v229 = vadd.f32 %v228, %v171
  %v230 = vadd.f32 %v229, %v173
  %v231 = vadd.f32 %v230, %v176
  %v232 = vadd.f32 %v231, %v178
  %v233 = vadd.f32 %v232, %v181
  %v234 = vadd.f32 %v233, %v183
  %v235 = vadd.f32 %v234, %v186
  %v236 = vadd.f32 %v235, %v188
  %v237 = vrot.slane %v236, 4
  %v238 = vadd.f32 %v236, %v237
  %v239 = vrot.slane %v238, 2
  %v240 = vadd.f32 %v238, %v239
  %v241 = vrot.slane %v240, 1
  %v242 = vadd.f32 %v240, %v241
  %v243 = vmul.f32 %v151, %v151
  %v244 = vmul.f32 %v153, %v153
  %v245 = vmul.f32 %v156, %v156
  %v246 = vmul.f32 %v158, %v158
  %v247 = vmul.f32 %v161, %v161
  %v248 = vmul.f32 %v163, %v163
  %v249 = vmul.f32 %v166, %v166
  %v250 = vmul.f32 %v168, %v168
  %v251 = vmul.f32 %v171, %v171
  %v252 = vmul.f32 %v173, %v173
  %v253 = vmul.f32 %v176, %v176
  %v254 = vmul.f32 %v178, %v178
  %v255 = vmul.f32 %v181, %v181
  %v256 = vmul.f32 %v183, %v183
  %v257 = vmul.f32 %v186, %v186
  %v258 = vmul.f32 %v188, %v188
  %v259 = vadd.f32 %v243, %v244
  %v260 = vadd.f32 %v259, %v245
  %v261 = vadd.f32 %v260, %v246
  %v262 = vadd.f32 %v261, %v247
  %v263 = vadd.f32 %v262, %v248
  %v264 = vadd.f32 %v263, %v249
  %v265 = vadd.f32 %v264, %v250
  %v266 = vadd.f32 %v265, %v251
  %v267 = vadd.f32 %v266, %v252
  %v268 = vadd.f32 %v267, %v253
  %v269 = vadd.f32 %v268, %v254
  %v270 = vadd.f32 %v269, %v255
  %v271 = vadd.f32 %v270, %v256
  %v272 = vadd.f32 %v271, %v257
  %v273 = vadd.f32 %v272, %v258
  %v274 = vrot.slane %v273, 4
  %v275 = vadd.f32 %v273, %v274
  %v276 = vrot.slane %v275, 2
  %v277 = vadd.f32 %v275, %v276
  %v278 = vrot.slane %v277, 1
  %v279 = vadd.f32 %v277, %v278
  %vm280 = vcmask 1040384
  %v281 = vsel %vm280, %v242, %v279
  %vm282 = vcmask 1041408
  %v283 = vsel %vm282, %v281, 0.0
  %284 = vst [vmem:[%s3] sm:$0xff] %v283
  // Predicated region
  $region10: #{resnet_generator_forward.49} parent=0 // pred_check
    _
  $region11: #{resnet_generator_forward.49} parent=0 // pred_check_branch
    %286 = sbr.rel (0) target = $region13
  $region12: #{resnet_generator_forward.49} parent=0 // pred_region
    _
  $region13: #{resnet_generator_forward.49} parent=0 // pred_fallthru
    _
  // Predicated region
  $region14: #{resnet_generator_forward.49} parent=0 // pred_check
    _
  $region15: #{resnet_generator_forward.49} parent=0 // pred_check_branch
    %288 = sbr.rel (0) target = $region17
  $region16: #{resnet_generator_forward.49} parent=0 // pred_region
    _
  $region17: #{resnet_generator_forward.49} parent=0 // pred_fallthru
    _
  // Predicated region
  $region18: #{resnet_generator_forward.49} parent=0 // pred_check
    _
  $region19: #{resnet_generator_forward.49} parent=0 // pred_check_branch
    %290 = sbr.rel (0) target = $region21
  $region20: #{resnet_generator_forward.49} parent=0 // pred_region
    _
  $region21: #{resnet_generator_forward.49} parent=0 // pred_fallthru
    _
  // Predicated region
  $region22: #{resnet_generator_forward.49} parent=0 // pred_check
    _
  $region23: #{resnet_generator_forward.49} parent=0 // pred_check_branch
    %292 = sbr.rel (0) target = $region25
  $region24: #{resnet_generator_forward.49} parent=0 // pred_region
    _
  $region25: #{resnet_generator_forward.49} parent=0 // pred_fallthru
    _

// kernel: resnet_generator_forward.50
$region0: #{resnet_generator_forward.50}
  #allocation0 [shape = 'u32[]', space=smem, size = 0x4, offset = 0x4, fixed_abs, tag = 'smem constant byte address 0x4 - core index']
  #allocation1 [shape = 'u32[72,128]{1,0:T(1,128)}', space=vmem, size = 0x9000, scoped, tag = 'internal scratch']
  %s0 = inlined_call_operand.vmem [shape: bf16[128,128], index: 0, kind: input, shape index: {}]
  %s1 = inlined_call_operand.vmem [shape: f32[8,128], index: 1, kind: input, shape index: {}]
  %s2 = inlined_call_operand.vmem [shape: f32[1,128], index: 2, kind: input, shape index: {}]
  %s3 = inlined_call_operand.vmem [shape: f32[1,128], index: 3, kind: input, shape index: {}]
  %s4 = inlined_call_operand.vmem [shape: bf16[128,128], index: 4, kind: output, shape index: {}]
  %s5 = sld [smem:[#allocation0]]
  $region26: #{resnet_generator_forward.50} parent=0
    _
  %s7 = ssub.s32 1, %s5
  %s8 = scalar_select 0, %s7, %s5
  // Predicated region
  $region2: #{resnet_generator_forward.50} parent=0 // pred_check
    _
  $region3: #{resnet_generator_forward.50} parent=0 // pred_check_branch
    %10 = sbr.rel (0) target = $region5
  $region4: #{resnet_generator_forward.50} parent=0 // pred_region
    _
  $region5: #{resnet_generator_forward.50} parent=0 // pred_fallthru
    _
  // Predicated region
  $region6: #{resnet_generator_forward.50} parent=0 // pred_check
    _
  $region7: #{resnet_generator_forward.50} parent=0 // pred_check_branch
    %12 = sbr.rel (0) target = $region9
  $region8: #{resnet_generator_forward.50} parent=0 // pred_region
    _
  $region9: #{resnet_generator_forward.50} parent=0 // pred_fallthru
    _
  // Predicated region
  $region10: #{resnet_generator_forward.50} parent=0 // pred_check
    _
  $region11: #{resnet_generator_forward.50} parent=0 // pred_check_branch
    %14 = sbr.rel (0) target = $region13
  $region12: #{resnet_generator_forward.50} parent=0 // pred_region
    _
  $region13: #{resnet_generator_forward.50} parent=0 // pred_fallthru
    _
  // Predicated region
  $region14: #{resnet_generator_forward.50} parent=0 // pred_check
    _
  $region15: #{resnet_generator_forward.50} parent=0 // pred_check_branch
    %16 = sbr.rel (0) target = $region17
  $region16: #{resnet_generator_forward.50} parent=0 // pred_region
    _
  $region17: #{resnet_generator_forward.50} parent=0 // pred_fallthru
    _
  %v17 = vld [vmem:[%s1] sm:$0x1]
  %v18 = vmul.f32 %v17, 0.0078125
  %v19 = vld [vmem:[%s1 + $0x1] sm:$0x1]
  %v20 = vmul.f32 %v19, 0.0078125
  %v21 = vmul.f32 %v18, %v18
  %v22 = vsub.f32 %v20, %v21
  %v23 = vmax.f32 %v22, 0.0
  %v24 = vld [vmem:[%s2] sm:$0x1]
  %v25 = vadd.f32 %v23, 1e-05
  %v26 = vrsqrt.pop %v25
  %v27 = vmul.f32 %v26, %v25
  %v28 = vmul.f32 %v27, %v26
  %v29 = vmul.f32 0.5, %v28
  %v30 = vsub.f32 1.5, %v29
  %v31 = vmul.f32 %v26, %v30
  %vm32 = vweird.f32 %v25
  %vm33 = vweird.f32 %v26
  %vm34 = vmor %vm32, %vm33
  %v35 = vsel %vm34, %v26, %v31
  %v36 = vmul.f32 %v24, %v35
  %v37 = vld [vmem:[%s3] sm:$0x1]
  %v38 = vmul.f32 %v18, %v36
  %v39 = vsub.f32 %v37, %v38
  %v40 = vld [vmem:[%s0] sm:$0xf]
  %v41 = vld [vmem:[%s0 + $0x4] sm:$0xf]
  %v42 = vld [vmem:[%s0 + $0x8] sm:$0xf]
  %v43 = vld [vmem:[%s0 + $0xc] sm:$0xf]
  %v44 = vld [vmem:[%s0 + $0x10] sm:$0xf]
  %v45 = vld [vmem:[%s0 + $0x14] sm:$0xf]
  %v46 = vld [vmem:[%s0 + $0x18] sm:$0xf]
  %v47 = vld [vmem:[%s0 + $0x1c] sm:$0xf]
  %v48 = vld [vmem:[%s0 + $0x20] sm:$0xf]
  %v49 = vld [vmem:[%s0 + $0x24] sm:$0xf]
  %v50 = vld [vmem:[%s0 + $0x28] sm:$0xf]
  %v51 = vld [vmem:[%s0 + $0x2c] sm:$0xf]
  %v52 = vld [vmem:[%s0 + $0x30] sm:$0xf]
  %v53 = vld [vmem:[%s0 + $0x34] sm:$0xf]
  %v54 = vld [vmem:[%s0 + $0x38] sm:$0xf]
  %v55 = vld [vmem:[%s0 + $0x3c] sm:$0xf]
  %v56 = vunpack.c.l.bf16 %v40
  %v57 = vunpack.c.l.bf16 %v41
  %v58 = vunpack.c.l.bf16 %v42
  %v59 = vunpack.c.l.bf16 %v43
  %v60 = vunpack.c.l.bf16 %v44
  %v61 = vunpack.c.l.bf16 %v45
  %v62 = vunpack.c.l.bf16 %v46
  %v63 = vunpack.c.l.bf16 %v47
  %v64 = vunpack.c.l.bf16 %v48
  %v65 = vunpack.c.l.bf16 %v49
  %v66 = vunpack.c.l.bf16 %v50
  %v67 = vunpack.c.l.bf16 %v51
  %v68 = vunpack.c.l.bf16 %v52
  %v69 = vunpack.c.l.bf16 %v53
  %v70 = vunpack.c.l.bf16 %v54
  %v71 = vunpack.c.l.bf16 %v55
  %v73 = vperm.slane %v36, 0
  %v75 = vmul.f32 %v56, %v73
  %v76 = vmul.f32 %v57, %v73
  %v77 = vmul.f32 %v58, %v73
  %v78 = vmul.f32 %v59, %v73
  %v79 = vmul.f32 %v60, %v73
  %v80 = vmul.f32 %v61, %v73
  %v81 = vmul.f32 %v62, %v73
  %v82 = vmul.f32 %v63, %v73
  %v83 = vmul.f32 %v64, %v73
  %v84 = vmul.f32 %v65, %v73
  %v85 = vmul.f32 %v66, %v73
  %v86 = vmul.f32 %v67, %v73
  %v87 = vmul.f32 %v68, %v73
  %v88 = vmul.f32 %v69, %v73
  %v89 = vmul.f32 %v70, %v73
  %v90 = vmul.f32 %v71, %v73
  %v92 = vperm.slane %v39, 0
  %v94 = vadd.f32 %v75, %v92
  %v95 = vadd.f32 %v76, %v92
  %v96 = vadd.f32 %v77, %v92
  %v97 = vadd.f32 %v78, %v92
  %v98 = vadd.f32 %v79, %v92
  %v99 = vadd.f32 %v80, %v92
  %v100 = vadd.f32 %v81, %v92
  %v101 = vadd.f32 %v82, %v92
  %v102 = vadd.f32 %v83, %v92
  %v103 = vadd.f32 %v84, %v92
  %v104 = vadd.f32 %v85, %v92
  %v105 = vadd.f32 %v86, %v92
  %v106 = vadd.f32 %v87, %v92
  %v107 = vadd.f32 %v88, %v92
  %v108 = vadd.f32 %v89, %v92
  %v109 = vadd.f32 %v90, %v92
  %v110 = vmax.f32 %v94, 0.0
  %v111 = vmax.f32 %v95, 0.0
  %v112 = vmax.f32 %v96, 0.0
  %v113 = vmax.f32 %v97, 0.0
  %v114 = vmax.f32 %v98, 0.0
  %v115 = vmax.f32 %v99, 0.0
  %v116 = vmax.f32 %v100, 0.0
  %v117 = vmax.f32 %v101, 0.0
  %v118 = vmax.f32 %v102, 0.0
  %v119 = vmax.f32 %v103, 0.0
  %v120 = vmax.f32 %v104, 0.0
  %v121 = vmax.f32 %v105, 0.0
  %v122 = vmax.f32 %v106, 0.0
  %v123 = vmax.f32 %v107, 0.0
  %v124 = vmax.f32 %v108, 0.0
  %v125 = vmax.f32 %v109, 0.0
  %v126 = vpack.c.bf16 %v110, %v110
  %v127 = vpack.c.bf16 %v111, %v111
  %v128 = vpack.c.bf16 %v112, %v112
  %v129 = vpack.c.bf16 %v113, %v113
  %v130 = vpack.c.bf16 %v114, %v114
  %v131 = vpack.c.bf16 %v115, %v115
  %v132 = vpack.c.bf16 %v116, %v116
  %v133 = vpack.c.bf16 %v117, %v117
  %v134 = vpack.c.bf16 %v118, %v118
  %v135 = vpack.c.bf16 %v119, %v119
  %v136 = vpack.c.bf16 %v120, %v120
  %v137 = vpack.c.bf16 %v121, %v121
  %v138 = vpack.c.bf16 %v122, %v122
  %v139 = vpack.c.bf16 %v123, %v123
  %v140 = vpack.c.bf16 %v124, %v124
  %v141 = vpack.c.bf16 %v125, %v125
  %142 = vst [vmem:[%s4] sm:$0xf] %v126
  %143 = vst [vmem:[%s4 + $0x4] sm:$0xf] %v127
  %144 = vst [vmem:[%s4 + $0x8] sm:$0xf] %v128
  %145 = vst [vmem:[%s4 + $0xc] sm:$0xf] %v129
  %146 = vst [vmem:[%s4 + $0x10] sm:$0xf] %v130
  %147 = vst [vmem:[%s4 + $0x14] sm:$0xf] %v131
  %148 = vst [vmem:[%s4 + $0x18] sm:$0xf] %v132
  %149 = vst [vmem:[%s4 + $0x1c] sm:$0xf] %v133
  %150 = vst [vmem:[%s4 + $0x20] sm:$0xf] %v134
  %151 = vst [vmem:[%s4 + $0x24] sm:$0xf] %v135
  %152 = vst [vmem:[%s4 + $0x28] sm:$0xf] %v136
  %153 = vst [vmem:[%s4 + $0x2c] sm:$0xf] %v137
  %154 = vst [vmem:[%s4 + $0x30] sm:$0xf] %v138
  %155 = vst [vmem:[%s4 + $0x34] sm:$0xf] %v139
  %156 = vst [vmem:[%s4 + $0x38] sm:$0xf] %v140
  %157 = vst [vmem:[%s4 + $0x3c] sm:$0xf] %v141
  // Predicated region
  $region18: #{resnet_generator_forward.50} parent=0 // pred_check
    _
  $region19: #{resnet_generator_forward.50} parent=0 // pred_check_branch
    %159 = sbr.rel (0) target = $region21
  $region20: #{resnet_generator_forward.50} parent=0 // pred_region
    _
  $region21: #{resnet_generator_forward.50} parent=0 // pred_fallthru
    _
  // Predicated region
  $region22: #{resnet_generator_forward.50} parent=0 // pred_check
    _
  $region23: #{resnet_generator_forward.50} parent=0 // pred_check_branch
    %161 = sbr.rel (0) target = $region25
  $region24: #{resnet_generator_forward.50} parent=0 // pred_region
    _
  $region25: #{resnet_generator_forward.50} parent=0 // pred_fallthru
    _

// kernel: resnet_generator_forward.52
$region0: #{resnet_generator_forward.52}
  #allocation0 [shape = 'u32[]', space=smem, size = 0x4, offset = 0x4, fixed_abs, tag = 'smem constant byte address 0x4 - core index']
  #allocation1 [shape = 'u32[72,128]{1,0:T(1,128)}', space=vmem, size = 0x9000, scoped, tag = 'internal scratch']
  %s0 = inlined_call_operand.vmem [shape: bf16[32,128], index: 0, kind: input, shape index: {}]
  %s1 = inlined_call_operand.vmem [shape: f32[8,128], index: 1, kind: input, shape index: {}]
  %s2 = inlined_call_operand.vmem [shape: f32[1,128], index: 2, kind: input, shape index: {}]
  %s3 = inlined_call_operand.vmem [shape: f32[1,128], index: 3, kind: input, shape index: {}]
  %s4 = inlined_call_operand.vmem [shape: bf16[32,128], index: 4, kind: output, shape index: {}]
  %s5 = sld [smem:[#allocation0]]
  $region26: #{resnet_generator_forward.52} parent=0
    _
  %s7 = ssub.s32 1, %s5
  %s8 = scalar_select 0, %s7, %s5
  // Predicated region
  $region2: #{resnet_generator_forward.52} parent=0 // pred_check
    _
  $region3: #{resnet_generator_forward.52} parent=0 // pred_check_branch
    %10 = sbr.rel (0) target = $region5
  $region4: #{resnet_generator_forward.52} parent=0 // pred_region
    _
  $region5: #{resnet_generator_forward.52} parent=0 // pred_fallthru
    _
  // Predicated region
  $region6: #{resnet_generator_forward.52} parent=0 // pred_check
    _
  $region7: #{resnet_generator_forward.52} parent=0 // pred_check_branch
    %12 = sbr.rel (0) target = $region9
  $region8: #{resnet_generator_forward.52} parent=0 // pred_region
    _
  $region9: #{resnet_generator_forward.52} parent=0 // pred_fallthru
    _
  // Predicated region
  $region10: #{resnet_generator_forward.52} parent=0 // pred_check
    _
  $region11: #{resnet_generator_forward.52} parent=0 // pred_check_branch
    %14 = sbr.rel (0) target = $region13
  $region12: #{resnet_generator_forward.52} parent=0 // pred_region
    _
  $region13: #{resnet_generator_forward.52} parent=0 // pred_fallthru
    _
  // Predicated region
  $region14: #{resnet_generator_forward.52} parent=0 // pred_check
    _
  $region15: #{resnet_generator_forward.52} parent=0 // pred_check_branch
    %16 = sbr.rel (0) target = $region17
  $region16: #{resnet_generator_forward.52} parent=0 // pred_region
    _
  $region17: #{resnet_generator_forward.52} parent=0 // pred_fallthru
    _
  %v17 = vld [vmem:[%s1] sm:$0x1]
  %v18 = vmul.f32 %v17, 0.03125
  %v19 = vld [vmem:[%s1 + $0x1] sm:$0x1]
  %v20 = vmul.f32 %v19, 0.03125
  %v21 = vmul.f32 %v18, %v18
  %v22 = vsub.f32 %v20, %v21
  %v23 = vmax.f32 %v22, 0.0
  %v24 = vld [vmem:[%s2] sm:$0x1]
  %v25 = vadd.f32 %v23, 1e-05
  %v26 = vrsqrt.pop %v25
  %v27 = vmul.f32 %v26, %v25
  %v28 = vmul.f32 %v27, %v26
  %v29 = vmul.f32 0.5, %v28
  %v30 = vsub.f32 1.5, %v29
  %v31 = vmul.f32 %v26, %v30
  %vm32 = vweird.f32 %v25
  %vm33 = vweird.f32 %v26
  %vm34 = vmor %vm32, %vm33
  %v35 = vsel %vm34, %v26, %v31
  %v36 = vmul.f32 %v24, %v35
  %v37 = vld [vmem:[%s3] sm:$0x1]
  %v38 = vmul.f32 %v18, %v36
  %v39 = vsub.f32 %v37, %v38
  %v40 = vld [vmem:[%s0] sm:$0xf]
  %v41 = vld [vmem:[%s0 + $0x4] sm:$0xf]
  %v42 = vld [vmem:[%s0 + $0x8] sm:$0xf]
  %v43 = vld [vmem:[%s0 + $0xc] sm:$0xf]
  %v44 = vunpack.c.l.bf16 %v40
  %v45 = vunpack.c.l.bf16 %v41
  %v46 = vunpack.c.l.bf16 %v42
  %v47 = vunpack.c.l.bf16 %v43
  %v49 = vperm.slane %v36, 0
  %v51 = vmul.f32 %v44, %v49
  %v52 = vmul.f32 %v45, %v49
  %v53 = vmul.f32 %v46, %v49
  %v54 = vmul.f32 %v47, %v49
  %v56 = vperm.slane %v39, 0
  %v58 = vadd.f32 %v51, %v56
  %v59 = vadd.f32 %v52, %v56
  %v60 = vadd.f32 %v53, %v56
  %v61 = vadd.f32 %v54, %v56
  %v62 = vmax.f32 %v58, 0.0
  %v63 = vmax.f32 %v59, 0.0
  %v64 = vmax.f32 %v60, 0.0
  %v65 = vmax.f32 %v61, 0.0
  %v66 = vpack.c.bf16 %v62, %v62
  %v67 = vpack.c.bf16 %v63, %v63
  %v68 = vpack.c.bf16 %v64, %v64
  %v69 = vpack.c.bf16 %v65, %v65
  %70 = vst [vmem:[%s4] sm:$0xf] %v66
  %71 = vst [vmem:[%s4 + $0x4] sm:$0xf] %v67
  %72 = vst [vmem:[%s4 + $0x8] sm:$0xf] %v68
  %73 = vst [vmem:[%s4 + $0xc] sm:$0xf] %v69
  // Predicated region
  $region18: #{resnet_generator_forward.52} parent=0 // pred_check
    _
  $region19: #{resnet_generator_forward.52} parent=0 // pred_check_branch
    %75 = sbr.rel (0) target = $region21
  $region20: #{resnet_generator_forward.52} parent=0 // pred_region
    _
  $region21: #{resnet_generator_forward.52} parent=0 // pred_fallthru
    _
  // Predicated region
  $region22: #{resnet_generator_forward.52} parent=0 // pred_check
    _
  $region23: #{resnet_generator_forward.52} parent=0 // pred_check_branch
    %77 = sbr.rel (0) target = $region25
  $region24: #{resnet_generator_forward.52} parent=0 // pred_region
    _
  $region25: #{resnet_generator_forward.52} parent=0 // pred_fallthru
    _

// kernel: resnet_generator_forward.51
$region0: #{resnet_generator_forward.51}
  #allocation0 [shape = 'u32[]', space=smem, size = 0x4, offset = 0x4, fixed_abs, tag = 'smem constant byte address 0x4 - core index']
  #allocation1 [shape = 'u32[72,128]{1,0:T(1,128)}', space=vmem, size = 0x9000, scoped, tag = 'internal scratch']
  %s0 = inlined_call_operand.vmem [shape: bf16[32,256], index: 0, kind: input, shape index: {}]
  %s1 = inlined_call_operand.vmem [shape: bf16[256,128], index: 1, kind: input, shape index: {}]
  %s2 = inlined_call_operand.vmem [shape: bf16[32,128], index: 2, kind: output, shape index: {0}]
  %s3 = inlined_call_operand.vmem [shape: f32[1,8,128], index: 3, kind: output, shape index: {1}]
  %4 = xla_tuple %s2, %s3
  %s5 = sld [smem:[#allocation0]]
  $region26: #{resnet_generator_forward.51} parent=0
    _
  %s7 = ssub.s32 1, %s5
  %s8 = scalar_select 0, %s7, %s5
  // Predicated region
  $region2: #{resnet_generator_forward.51} parent=0 // pred_check
    _
  $region3: #{resnet_generator_forward.51} parent=0 // pred_check_branch
    %10 = sbr.rel (0) target = $region5
  $region4: #{resnet_generator_forward.51} parent=0 // pred_region
    _
  $region5: #{resnet_generator_forward.51} parent=0 // pred_fallthru
    _
  // Predicated region
  $region6: #{resnet_generator_forward.51} parent=0 // pred_check
    _
  $region7: #{resnet_generator_forward.51} parent=0 // pred_check_branch
    %12 = sbr.rel (0) target = $region9
  $region8: #{resnet_generator_forward.51} parent=0 // pred_region
    _
  $region9: #{resnet_generator_forward.51} parent=0 // pred_fallthru
    _
  %v13 = vld [vmem:[%s0] sm:$0xff]
  %v14 = vld [vmem:[%s0 + $0x8] sm:$0xff]
  %v15 = vld [vmem:[%s0 + $0x10] sm:$0xff]
  %v16 = vld [vmem:[%s0 + $0x18] sm:$0xff]
  %v17 = vld [vmem:[%s1] sm:$0xf]
  %v18 = vld [vmem:[%s1 + $0x4] sm:$0xf]
  %v19 = vld [vmem:[%s1 + $0x8] sm:$0xf]
  %v20 = vld [vmem:[%s1 + $0xc] sm:$0xf]
  %v21 = vld [vmem:[%s1 + $0x10] sm:$0xf]
  %v22 = vld [vmem:[%s1 + $0x14] sm:$0xf]
  %v23 = vld [vmem:[%s1 + $0x18] sm:$0xf]
  %v24 = vld [vmem:[%s1 + $0x1c] sm:$0xf]
  %v25 = vld [vmem:[%s1 + $0x20] sm:$0xf]
  %v26 = vld [vmem:[%s1 + $0x24] sm:$0xf]
  %v27 = vld [vmem:[%s1 + $0x28] sm:$0xf]
  %v28 = vld [vmem:[%s1 + $0x2c] sm:$0xf]
  %v29 = vld [vmem:[%s1 + $0x30] sm:$0xf]
  %v30 = vld [vmem:[%s1 + $0x34] sm:$0xf]
  %v31 = vld [vmem:[%s1 + $0x38] sm:$0xf]
  %v32 = vld [vmem:[%s1 + $0x3c] sm:$0xf]
  %v33 = vld [vmem:[%s1 + $0x40] sm:$0xf]
  %v34 = vld [vmem:[%s1 + $0x44] sm:$0xf]
  %v35 = vld [vmem:[%s1 + $0x48] sm:$0xf]
  %v36 = vld [vmem:[%s1 + $0x4c] sm:$0xf]
  %v37 = vld [vmem:[%s1 + $0x50] sm:$0xf]
  %v38 = vld [vmem:[%s1 + $0x54] sm:$0xf]
  %v39 = vld [vmem:[%s1 + $0x58] sm:$0xf]
  %v40 = vld [vmem:[%s1 + $0x5c] sm:$0xf]
  %v41 = vld [vmem:[%s1 + $0x60] sm:$0xf]
  %v42 = vld [vmem:[%s1 + $0x64] sm:$0xf]
  %v43 = vld [vmem:[%s1 + $0x68] sm:$0xf]
  %v44 = vld [vmem:[%s1 + $0x6c] sm:$0xf]
  %v45 = vld [vmem:[%s1 + $0x70] sm:$0xf]
  %v46 = vld [vmem:[%s1 + $0x74] sm:$0xf]
  %v47 = vld [vmem:[%s1 + $0x78] sm:$0xf]
  %v48 = vld [vmem:[%s1 + $0x7c] sm:$0xf]
  %v53 = vunpack.c.l.b16 %v13
  %v54 = vunpack.c.h.b16 %v13
  %v55 = vunpack.c.l.b16 %v14
  %v56 = vunpack.c.h.b16 %v14
  %v57 = vunpack.c.l.b16 %v15
  %v58 = vunpack.c.h.b16 %v15
  %v59 = vunpack.c.l.b16 %v16
  %v60 = vunpack.c.h.b16 %v16
  %v61 = vpack.c.b16 %v55, %v53
  %v62 = vpack.c.b16 %v56, %v54
  %v63 = vpack.c.b16 %v59, %v57
  %v64 = vpack.c.b16 %v60, %v58
  %v101 = vunpack.c.l.b16 %v17
  %v102 = vunpack.c.l.b16 %v18
  %v103 = vunpack.c.l.b16 %v19
  %v104 = vunpack.c.l.b16 %v20
  %v105 = vunpack.c.l.b16 %v21
  %v106 = vunpack.c.l.b16 %v22
  %v107 = vunpack.c.l.b16 %v23
  %v108 = vunpack.c.l.b16 %v24
  %v109 = vunpack.c.l.b16 %v25
  %v110 = vunpack.c.l.b16 %v26
  %v111 = vunpack.c.l.b16 %v27
  %v112 = vunpack.c.l.b16 %v28
  %v113 = vunpack.c.l.b16 %v29
  %v114 = vunpack.c.l.b16 %v30
  %v115 = vunpack.c.l.b16 %v31
  %v116 = vunpack.c.l.b16 %v32
  %v117 = vunpack.c.l.b16 %v33
  %v118 = vunpack.c.l.b16 %v34
  %v119 = vunpack.c.l.b16 %v35
  %v120 = vunpack.c.l.b16 %v36
  %v121 = vunpack.c.l.b16 %v37
  %v122 = vunpack.c.l.b16 %v38
  %v123 = vunpack.c.l.b16 %v39
  %v124 = vunpack.c.l.b16 %v40
  %v125 = vunpack.c.l.b16 %v41
  %v126 = vunpack.c.l.b16 %v42
  %v127 = vunpack.c.l.b16 %v43
  %v128 = vunpack.c.l.b16 %v44
  %v129 = vunpack.c.l.b16 %v45
  %v130 = vunpack.c.l.b16 %v46
  %v131 = vunpack.c.l.b16 %v47
  %v132 = vunpack.c.l.b16 %v48
  %v133 = vpack.c.b16 %v102, %v101
  %v134 = vpack.c.b16 %v104, %v103
  %v135 = vpack.c.b16 %v106, %v105
  %v136 = vpack.c.b16 %v108, %v107
  %v137 = vpack.c.b16 %v110, %v109
  %v138 = vpack.c.b16 %v112, %v111
  %v139 = vpack.c.b16 %v114, %v113
  %v140 = vpack.c.b16 %v116, %v115
  %v141 = vpack.c.b16 %v118, %v117
  %v142 = vpack.c.b16 %v120, %v119
  %v143 = vpack.c.b16 %v122, %v121
  %v144 = vpack.c.b16 %v124, %v123
  %v145 = vpack.c.b16 %v126, %v125
  %v146 = vpack.c.b16 %v128, %v127
  %v147 = vpack.c.b16 %v130, %v129
  %v148 = vpack.c.b16 %v132, %v131
  %165 = vmatpush.bf16.msra.mxu0 %v140
  %166 = vmatpush.bf16.msra.mxu0 %v139
  %167 = vmatpush.bf16.msra.mxu0 %v138
  %168 = vmatpush.bf16.msra.mxu0 %v137
  %169 = vmatpush.bf16.msra.mxu0 %v136
  %170 = vmatpush.bf16.msra.mxu0 %v135
  %171 = vmatpush.bf16.msra.mxu0 %v134
  %172 = vmatpush.bf16.msra.mxu0 %v133
  %173 = vmatmul.bf16.gmra.mxu0 %v61
  %v174 = vpop.f32.mrf.mxu0
  %v175 = vadd.f32 0.0, %v174
  %v176 = vpop.f32.mrf.mxu0
  %v177 = vadd.f32 0.0, %v176
  %178 = vmatmul.bf16.gmra.mxu0 %v63
  %v179 = vpop.f32.mrf.mxu0
  %v180 = vadd.f32 0.0, %v179
  %v181 = vpop.f32.mrf.mxu0
  %v182 = vadd.f32 0.0, %v181
  %183 = vdwg.mxu0
  %184 = vmatpush.bf16.msra.mxu0 %v148
  %185 = vmatpush.bf16.msra.mxu0 %v147
  %186 = vmatpush.bf16.msra.mxu0 %v146
  %187 = vmatpush.bf16.msra.mxu0 %v145
  %188 = vmatpush.bf16.msra.mxu0 %v144
  %189 = vmatpush.bf16.msra.mxu0 %v143
  %190 = vmatpush.bf16.msra.mxu0 %v142
  %191 = vmatpush.bf16.msra.mxu0 %v141
  %192 = vmatmul.bf16.gmra.mxu0 %v62
  %v193 = vpop.f32.mrf.mxu0
  %v194 = vadd.f32 %v175, %v193
  %v195 = vpop.f32.mrf.mxu0
  %v196 = vadd.f32 %v177, %v195
  %197 = vmatmul.bf16.gmra.mxu0 %v64
  %v198 = vpop.f32.mrf.mxu0
  %v199 = vadd.f32 %v180, %v198
  %v200 = vpop.f32.mrf.mxu0
  %v201 = vadd.f32 %v182, %v200
  %202 = vdwg.mxu0
  %v203 = vpack.c.bf16 %v194, %v194
  %v204 = vpack.c.bf16 %v196, %v196
  %v205 = vpack.c.bf16 %v199, %v199
  %v206 = vpack.c.bf16 %v201, %v201
  %207 = vst [vmem:[%s2] sm:$0xf] %v203
  %208 = vst [vmem:[%s2 + $0x4] sm:$0xf] %v204
  %209 = vst [vmem:[%s2 + $0x8] sm:$0xf] %v205
  %210 = vst [vmem:[%s2 + $0xc] sm:$0xf] %v206
  %v211 = vadd.f32 %v194, %v196
  %v212 = vadd.f32 %v211, %v199
  %v213 = vadd.f32 %v212, %v201
  %v214 = vrot.slane %v213, 4
  %v215 = vadd.f32 %v213, %v214
  %v216 = vrot.slane %v215, 2
  %v217 = vadd.f32 %v215, %v216
  %v218 = vrot.slane %v217, 1
  %v219 = vadd.f32 %v217, %v218
  %v220 = vmul.f32 %v194, %v194
  %v221 = vmul.f32 %v196, %v196
  %v222 = vmul.f32 %v199, %v199
  %v223 = vmul.f32 %v201, %v201
  %v224 = vadd.f32 %v220, %v221
  %v225 = vadd.f32 %v224, %v222
  %v226 = vadd.f32 %v225, %v223
  %v227 = vrot.slane %v226, 4
  %v228 = vadd.f32 %v226, %v227
  %v229 = vrot.slane %v228, 2
  %v230 = vadd.f32 %v228, %v229
  %v231 = vrot.slane %v230, 1
  %v232 = vadd.f32 %v230, %v231
  %vm233 = vcmask 1040384
  %v234 = vsel %vm233, %v219, %v232
  %vm235 = vcmask 1041408
  %v236 = vsel %vm235, %v234, 0.0
  %237 = vst [vmem:[%s3] sm:$0xff] %v236
  // Predicated region
  $region10: #{resnet_generator_forward.51} parent=0 // pred_check
    _
  $region11: #{resnet_generator_forward.51} parent=0 // pred_check_branch
    %239 = sbr.rel (0) target = $region13
  $region12: #{resnet_generator_forward.51} parent=0 // pred_region
    _
  $region13: #{resnet_generator_forward.51} parent=0 // pred_fallthru
    _
  // Predicated region
  $region14: #{resnet_generator_forward.51} parent=0 // pred_check
    _
  $region15: #{resnet_generator_forward.51} parent=0 // pred_check_branch
    %241 = sbr.rel (0) target = $region17
  $region16: #{resnet_generator_forward.51} parent=0 // pred_region
    _
  $region17: #{resnet_generator_forward.51} parent=0 // pred_fallthru
    _
  // Predicated region
  $region18: #{resnet_generator_forward.51} parent=0 // pred_check
    _
  $region19: #{resnet_generator_forward.51} parent=0 // pred_check_branch
    %243 = sbr.rel (0) target = $region21
  $region20: #{resnet_generator_forward.51} parent=0 // pred_region
    _
  $region21: #{resnet_generator_forward.51} parent=0 // pred_fallthru
    _
  // Predicated region
  $region22: #{resnet_generator_forward.51} parent=0 // pred_check
    _
  $region23: #{resnet_generator_forward.51} parent=0 // pred_check_branch
    %245 = sbr.rel (0) target = $region25
  $region24: #{resnet_generator_forward.51} parent=0 // pred_region
    _
  $region25: #{resnet_generator_forward.51} parent=0 // pred_fallthru
    _

// kernel: resnet_generator_forward.56
$region0: #{resnet_generator_forward.56}
  #allocation0 [shape = 'u32[]', space=smem, size = 0x4, offset = 0x4, fixed_abs, tag = 'smem constant byte address 0x4 - core index']
  #allocation1 [shape = 'u32[72,128]{1,0:T(1,128)}', space=vmem, size = 0x9000, scoped, tag = 'internal scratch']
  %s0 = inlined_call_operand.vmem [shape: bf16[32,128], index: 0, kind: input, shape index: {}]
  %s1 = inlined_call_operand.vmem [shape: f32[8,128], index: 1, kind: input, shape index: {}]
  %s2 = inlined_call_operand.vmem [shape: f32[1,128], index: 2, kind: input, shape index: {}]
  %s3 = inlined_call_operand.vmem [shape: f32[1,128], index: 3, kind: input, shape index: {}]
  %s4 = inlined_call_operand.vmem [shape: bf16[32,128], index: 4, kind: input, shape index: {}]
  %s5 = inlined_call_operand.vmem [shape: bf16[32,128], index: 5, kind: output, shape index: {}]
  %s6 = sld [smem:[#allocation0]]
  $region30: #{resnet_generator_forward.56} parent=0
    _
  %s8 = ssub.s32 1, %s6
  %s9 = scalar_select 0, %s8, %s6
  // Predicated region
  $region2: #{resnet_generator_forward.56} parent=0 // pred_check
    _
  $region3: #{resnet_generator_forward.56} parent=0 // pred_check_branch
    %11 = sbr.rel (0) target = $region5
  $region4: #{resnet_generator_forward.56} parent=0 // pred_region
    _
  $region5: #{resnet_generator_forward.56} parent=0 // pred_fallthru
    _
  // Predicated region
  $region6: #{resnet_generator_forward.56} parent=0 // pred_check
    _
  $region7: #{resnet_generator_forward.56} parent=0 // pred_check_branch
    %13 = sbr.rel (0) target = $region9
  $region8: #{resnet_generator_forward.56} parent=0 // pred_region
    _
  $region9: #{resnet_generator_forward.56} parent=0 // pred_fallthru
    _
  // Predicated region
  $region10: #{resnet_generator_forward.56} parent=0 // pred_check
    _
  $region11: #{resnet_generator_forward.56} parent=0 // pred_check_branch
    %15 = sbr.rel (0) target = $region13
  $region12: #{resnet_generator_forward.56} parent=0 // pred_region
    _
  $region13: #{resnet_generator_forward.56} parent=0 // pred_fallthru
    _
  // Predicated region
  $region14: #{resnet_generator_forward.56} parent=0 // pred_check
    _
  $region15: #{resnet_generator_forward.56} parent=0 // pred_check_branch
    %17 = sbr.rel (0) target = $region17
  $region16: #{resnet_generator_forward.56} parent=0 // pred_region
    _
  $region17: #{resnet_generator_forward.56} parent=0 // pred_fallthru
    _
  // Predicated region
  $region18: #{resnet_generator_forward.56} parent=0 // pred_check
    _
  $region19: #{resnet_generator_forward.56} parent=0 // pred_check_branch
    %19 = sbr.rel (0) target = $region21
  $region20: #{resnet_generator_forward.56} parent=0 // pred_region
    _
  $region21: #{resnet_generator_forward.56} parent=0 // pred_fallthru
    _
  %v20 = vld [vmem:[%s1] sm:$0x1]
  %v21 = vmul.f32 %v20, 0.03125
  %v22 = vld [vmem:[%s1 + $0x1] sm:$0x1]
  %v23 = vmul.f32 %v22, 0.03125
  %v24 = vmul.f32 %v21, %v21
  %v25 = vsub.f32 %v23, %v24
  %v26 = vmax.f32 %v25, 0.0
  %v27 = vld [vmem:[%s2] sm:$0x1]
  %v28 = vadd.f32 %v26, 1e-05
  %v29 = vrsqrt.pop %v28
  %v30 = vmul.f32 %v29, %v28
  %v31 = vmul.f32 %v30, %v29
  %v32 = vmul.f32 0.5, %v31
  %v33 = vsub.f32 1.5, %v32
  %v34 = vmul.f32 %v29, %v33
  %vm35 = vweird.f32 %v28
  %vm36 = vweird.f32 %v29
  %vm37 = vmor %vm35, %vm36
  %v38 = vsel %vm37, %v29, %v34
  %v39 = vmul.f32 %v27, %v38
  %v40 = vld [vmem:[%s3] sm:$0x1]
  %v41 = vmul.f32 %v21, %v39
  %v42 = vsub.f32 %v40, %v41
  %v43 = vld [vmem:[%s0] sm:$0xf]
  %v44 = vld [vmem:[%s0 + $0x4] sm:$0xf]
  %v45 = vld [vmem:[%s0 + $0x8] sm:$0xf]
  %v46 = vld [vmem:[%s0 + $0xc] sm:$0xf]
  %v47 = vunpack.c.l.bf16 %v43
  %v48 = vunpack.c.l.bf16 %v44
  %v49 = vunpack.c.l.bf16 %v45
  %v50 = vunpack.c.l.bf16 %v46
  %v52 = vperm.slane %v39, 0
  %v54 = vmul.f32 %v47, %v52
  %v55 = vmul.f32 %v48, %v52
  %v56 = vmul.f32 %v49, %v52
  %v57 = vmul.f32 %v50, %v52
  %v59 = vperm.slane %v42, 0
  %v61 = vadd.f32 %v54, %v59
  %v62 = vadd.f32 %v55, %v59
  %v63 = vadd.f32 %v56, %v59
  %v64 = vadd.f32 %v57, %v59
  %v65 = vld [vmem:[%s4] sm:$0xf]
  %v66 = vld [vmem:[%s4 + $0x4] sm:$0xf]
  %v67 = vld [vmem:[%s4 + $0x8] sm:$0xf]
  %v68 = vld [vmem:[%s4 + $0xc] sm:$0xf]
  %v69 = vunpack.c.l.bf16 %v65
  %v70 = vunpack.c.l.bf16 %v66
  %v71 = vunpack.c.l.bf16 %v67
  %v72 = vunpack.c.l.bf16 %v68
  %v73 = vadd.f32 %v61, %v69
  %v74 = vadd.f32 %v62, %v70
  %v75 = vadd.f32 %v63, %v71
  %v76 = vadd.f32 %v64, %v72
  %v77 = vmax.f32 %v73, 0.0
  %v78 = vmax.f32 %v74, 0.0
  %v79 = vmax.f32 %v75, 0.0
  %v80 = vmax.f32 %v76, 0.0
  %v81 = vpack.c.bf16 %v77, %v77
  %v82 = vpack.c.bf16 %v78, %v78
  %v83 = vpack.c.bf16 %v79, %v79
  %v84 = vpack.c.bf16 %v80, %v80
  %85 = vst [vmem:[%s5] sm:$0xf] %v81
  %86 = vst [vmem:[%s5 + $0x4] sm:$0xf] %v82
  %87 = vst [vmem:[%s5 + $0x8] sm:$0xf] %v83
  %88 = vst [vmem:[%s5 + $0xc] sm:$0xf] %v84
  // Predicated region
  $region22: #{resnet_generator_forward.56} parent=0 // pred_check
    _
  $region23: #{resnet_generator_forward.56} parent=0 // pred_check_branch
    %90 = sbr.rel (0) target = $region25
  $region24: #{resnet_generator_forward.56} parent=0 // pred_region
    _
  $region25: #{resnet_generator_forward.56} parent=0 // pred_fallthru
    _
  // Predicated region
  $region26: #{resnet_generator_forward.56} parent=0 // pred_check
    _
  $region27: #{resnet_generator_forward.56} parent=0 // pred_check_branch
    %92 = sbr.rel (0) target = $region29
  $region28: #{resnet_generator_forward.56} parent=0 // pred_region
    _
  $region29: #{resnet_generator_forward.56} parent=0 // pred_fallthru
    _

// kernel: resnet_generator_forward.53
$region0: #{resnet_generator_forward.53}
  #allocation0 [shape = 'u32[]', space=smem, size = 0x4, offset = 0x4, fixed_abs, tag = 'smem constant byte address 0x4 - core index']
  #allocation1 [shape = 'u32[72,128]{1,0:T(1,128)}', space=vmem, size = 0x9000, scoped, tag = 'internal scratch']
  %s0 = inlined_call_operand.vmem [shape: bf16[32,384], index: 0, kind: input, shape index: {}]
  %s1 = inlined_call_operand.vmem [shape: bf16[384,128], index: 1, kind: input, shape index: {}]
  %s2 = inlined_call_operand.vmem [shape: bf16[32,128], index: 2, kind: output, shape index: {0}]
  %s3 = inlined_call_operand.vmem [shape: f32[1,8,128], index: 3, kind: output, shape index: {1}]
  %4 = xla_tuple %s2, %s3
  %s5 = sld [smem:[#allocation0]]
  $region26: #{resnet_generator_forward.53} parent=0
    _
  %s7 = ssub.s32 1, %s5
  %s8 = scalar_select 0, %s7, %s5
  // Predicated region
  $region2: #{resnet_generator_forward.53} parent=0 // pred_check
    _
  $region3: #{resnet_generator_forward.53} parent=0 // pred_check_branch
    %10 = sbr.rel (0) target = $region5
  $region4: #{resnet_generator_forward.53} parent=0 // pred_region
    _
  $region5: #{resnet_generator_forward.53} parent=0 // pred_fallthru
    _
  // Predicated region
  $region6: #{resnet_generator_forward.53} parent=0 // pred_check
    _
  $region7: #{resnet_generator_forward.53} parent=0 // pred_check_branch
    %12 = sbr.rel (0) target = $region9
  $region8: #{resnet_generator_forward.53} parent=0 // pred_region
    _
  $region9: #{resnet_generator_forward.53} parent=0 // pred_fallthru
    _
  %v13 = vld [vmem:[%s0] sm:$0xff]
  %v14 = vld [vmem:[%s0 + $0x8] sm:$0xf]
  %v15 = vld [vmem:[%s0 + $0xc] sm:$0xff]
  %v16 = vld [vmem:[%s0 + $0x14] sm:$0xf]
  %v17 = vld [vmem:[%s0 + $0x18] sm:$0xff]
  %v18 = vld [vmem:[%s0 + $0x20] sm:$0xf]
  %v19 = vld [vmem:[%s0 + $0x24] sm:$0xff]
  %v20 = vld [vmem:[%s0 + $0x2c] sm:$0xf]
  %v21 = vld [vmem:[%s1] sm:$0xf]
  %v22 = vld [vmem:[%s1 + $0x4] sm:$0xf]
  %v23 = vld [vmem:[%s1 + $0x8] sm:$0xf]
  %v24 = vld [vmem:[%s1 + $0xc] sm:$0xf]
  %v25 = vld [vmem:[%s1 + $0x10] sm:$0xf]
  %v26 = vld [vmem:[%s1 + $0x14] sm:$0xf]
  %v27 = vld [vmem:[%s1 + $0x18] sm:$0xf]
  %v28 = vld [vmem:[%s1 + $0x1c] sm:$0xf]
  %v29 = vld [vmem:[%s1 + $0x20] sm:$0xf]
  %v30 = vld [vmem:[%s1 + $0x24] sm:$0xf]
  %v31 = vld [vmem:[%s1 + $0x28] sm:$0xf]
  %v32 = vld [vmem:[%s1 + $0x2c] sm:$0xf]
  %v33 = vld [vmem:[%s1 + $0x30] sm:$0xf]
  %v34 = vld [vmem:[%s1 + $0x34] sm:$0xf]
  %v35 = vld [vmem:[%s1 + $0x38] sm:$0xf]
  %v36 = vld [vmem:[%s1 + $0x3c] sm:$0xf]
  %v37 = vld [vmem:[%s1 + $0x40] sm:$0xf]
  %v38 = vld [vmem:[%s1 + $0x44] sm:$0xf]
  %v39 = vld [vmem:[%s1 + $0x48] sm:$0xf]
  %v40 = vld [vmem:[%s1 + $0x4c] sm:$0xf]
  %v41 = vld [vmem:[%s1 + $0x50] sm:$0xf]
  %v42 = vld [vmem:[%s1 + $0x54] sm:$0xf]
  %v43 = vld [vmem:[%s1 + $0x58] sm:$0xf]
  %v44 = vld [vmem:[%s1 + $0x5c] sm:$0xf]
  %v45 = vld [vmem:[%s1 + $0x60] sm:$0xf]
  %v46 = vld [vmem:[%s1 + $0x64] sm:$0xf]
  %v47 = vld [vmem:[%s1 + $0x68] sm:$0xf]
  %v48 = vld [vmem:[%s1 + $0x6c] sm:$0xf]
  %v49 = vld [vmem:[%s1 + $0x70] sm:$0xf]
  %v50 = vld [vmem:[%s1 + $0x74] sm:$0xf]
  %v51 = vld [vmem:[%s1 + $0x78] sm:$0xf]
  %v52 = vld [vmem:[%s1 + $0x7c] sm:$0xf]
  %v53 = vld [vmem:[%s1 + $0x80] sm:$0xf]
  %v54 = vld [vmem:[%s1 + $0x84] sm:$0xf]
  %v55 = vld [vmem:[%s1 + $0x88] sm:$0xf]
  %v56 = vld [vmem:[%s1 + $0x8c] sm:$0xf]
  %v57 = vld [vmem:[%s1 + $0x90] sm:$0xf]
  %v58 = vld [vmem:[%s1 + $0x94] sm:$0xf]
  %v59 = vld [vmem:[%s1 + $0x98] sm:$0xf]
  %v60 = vld [vmem:[%s1 + $0x9c] sm:$0xf]
  %v61 = vld [vmem:[%s1 + $0xa0] sm:$0xf]
  %v62 = vld [vmem:[%s1 + $0xa4] sm:$0xf]
  %v63 = vld [vmem:[%s1 + $0xa8] sm:$0xf]
  %v64 = vld [vmem:[%s1 + $0xac] sm:$0xf]
  %v65 = vld [vmem:[%s1 + $0xb0] sm:$0xf]
  %v66 = vld [vmem:[%s1 + $0xb4] sm:$0xf]
  %v67 = vld [vmem:[%s1 + $0xb8] sm:$0xf]
  %v68 = vld [vmem:[%s1 + $0xbc] sm:$0xf]
  %v77 = vunpack.c.l.b16 %v13
  %v78 = vunpack.c.h.b16 %v13
  %v79 = vunpack.c.l.b16 %v14
  %v80 = vunpack.c.l.b16 %v15
  %v81 = vunpack.c.h.b16 %v15
  %v82 = vunpack.c.l.b16 %v16
  %v83 = vunpack.c.l.b16 %v17
  %v84 = vunpack.c.h.b16 %v17
  %v85 = vunpack.c.l.b16 %v18
  %v86 = vunpack.c.l.b16 %v19
  %v87 = vunpack.c.h.b16 %v19
  %v88 = vunpack.c.l.b16 %v20
  %v89 = vpack.c.b16 %v80, %v77
  %v90 = vpack.c.b16 %v81, %v78
  %v91 = vpack.c.b16 %v82, %v79
  %v92 = vpack.c.b16 %v86, %v83
  %v93 = vpack.c.b16 %v87, %v84
  %v94 = vpack.c.b16 %v88, %v85
  %v149 = vunpack.c.l.b16 %v21
  %v150 = vunpack.c.l.b16 %v22
  %v151 = vunpack.c.l.b16 %v23
  %v152 = vunpack.c.l.b16 %v24
  %v153 = vunpack.c.l.b16 %v25
  %v154 = vunpack.c.l.b16 %v26
  %v155 = vunpack.c.l.b16 %v27
  %v156 = vunpack.c.l.b16 %v28
  %v157 = vunpack.c.l.b16 %v29
  %v158 = vunpack.c.l.b16 %v30
  %v159 = vunpack.c.l.b16 %v31
  %v160 = vunpack.c.l.b16 %v32
  %v161 = vunpack.c.l.b16 %v33
  %v162 = vunpack.c.l.b16 %v34
  %v163 = vunpack.c.l.b16 %v35
  %v164 = vunpack.c.l.b16 %v36
  %v165 = vunpack.c.l.b16 %v37
  %v166 = vunpack.c.l.b16 %v38
  %v167 = vunpack.c.l.b16 %v39
  %v168 = vunpack.c.l.b16 %v40
  %v169 = vunpack.c.l.b16 %v41
  %v170 = vunpack.c.l.b16 %v42
  %v171 = vunpack.c.l.b16 %v43
  %v172 = vunpack.c.l.b16 %v44
  %v173 = vunpack.c.l.b16 %v45
  %v174 = vunpack.c.l.b16 %v46
  %v175 = vunpack.c.l.b16 %v47
  %v176 = vunpack.c.l.b16 %v48
  %v177 = vunpack.c.l.b16 %v49
  %v178 = vunpack.c.l.b16 %v50
  %v179 = vunpack.c.l.b16 %v51
  %v180 = vunpack.c.l.b16 %v52
  %v181 = vunpack.c.l.b16 %v53
  %v182 = vunpack.c.l.b16 %v54
  %v183 = vunpack.c.l.b16 %v55
  %v184 = vunpack.c.l.b16 %v56
  %v185 = vunpack.c.l.b16 %v57
  %v186 = vunpack.c.l.b16 %v58
  %v187 = vunpack.c.l.b16 %v59
  %v188 = vunpack.c.l.b16 %v60
  %v189 = vunpack.c.l.b16 %v61
  %v190 = vunpack.c.l.b16 %v62
  %v191 = vunpack.c.l.b16 %v63
  %v192 = vunpack.c.l.b16 %v64
  %v193 = vunpack.c.l.b16 %v65
  %v194 = vunpack.c.l.b16 %v66
  %v195 = vunpack.c.l.b16 %v67
  %v196 = vunpack.c.l.b16 %v68
  %v197 = vpack.c.b16 %v150, %v149
  %v198 = vpack.c.b16 %v152, %v151
  %v199 = vpack.c.b16 %v154, %v153
  %v200 = vpack.c.b16 %v156, %v155
  %v201 = vpack.c.b16 %v158, %v157
  %v202 = vpack.c.b16 %v160, %v159
  %v203 = vpack.c.b16 %v162, %v161
  %v204 = vpack.c.b16 %v164, %v163
  %v205 = vpack.c.b16 %v166, %v165
  %v206 = vpack.c.b16 %v168, %v167
  %v207 = vpack.c.b16 %v170, %v169
  %v208 = vpack.c.b16 %v172, %v171
  %v209 = vpack.c.b16 %v174, %v173
  %v210 = vpack.c.b16 %v176, %v175
  %v211 = vpack.c.b16 %v178, %v177
  %v212 = vpack.c.b16 %v180, %v179
  %v213 = vpack.c.b16 %v182, %v181
  %v214 = vpack.c.b16 %v184, %v183
  %v215 = vpack.c.b16 %v186, %v185
  %v216 = vpack.c.b16 %v188, %v187
  %v217 = vpack.c.b16 %v190, %v189
  %v218 = vpack.c.b16 %v192, %v191
  %v219 = vpack.c.b16 %v194, %v193
  %v220 = vpack.c.b16 %v196, %v195
  %245 = vmatpush.bf16.msra.mxu0 %v204
  %246 = vmatpush.bf16.msra.mxu0 %v203
  %247 = vmatpush.bf16.msra.mxu0 %v202
  %248 = vmatpush.bf16.msra.mxu0 %v201
  %249 = vmatpush.bf16.msra.mxu0 %v200
  %250 = vmatpush.bf16.msra.mxu0 %v199
  %251 = vmatpush.bf16.msra.mxu0 %v198
  %252 = vmatpush.bf16.msra.mxu0 %v197
  %253 = vmatmul.bf16.gmra.mxu0 %v89
  %v254 = vpop.f32.mrf.mxu0
  %v255 = vadd.f32 0.0, %v254
  %v256 = vpop.f32.mrf.mxu0
  %v257 = vadd.f32 0.0, %v256
  %258 = vmatmul.bf16.gmra.mxu0 %v92
  %v259 = vpop.f32.mrf.mxu0
  %v260 = vadd.f32 0.0, %v259
  %v261 = vpop.f32.mrf.mxu0
  %v262 = vadd.f32 0.0, %v261
  %263 = vdwg.mxu0
  %264 = vmatpush.bf16.msra.mxu0 %v212
  %265 = vmatpush.bf16.msra.mxu0 %v211
  %266 = vmatpush.bf16.msra.mxu0 %v210
  %267 = vmatpush.bf16.msra.mxu0 %v209
  %268 = vmatpush.bf16.msra.mxu0 %v208
  %269 = vmatpush.bf16.msra.mxu0 %v207
  %270 = vmatpush.bf16.msra.mxu0 %v206
  %271 = vmatpush.bf16.msra.mxu0 %v205
  %272 = vmatmul.bf16.gmra.mxu0 %v90
  %v273 = vpop.f32.mrf.mxu0
  %v274 = vadd.f32 %v255, %v273
  %v275 = vpop.f32.mrf.mxu0
  %v276 = vadd.f32 %v257, %v275
  %277 = vmatmul.bf16.gmra.mxu0 %v93
  %v278 = vpop.f32.mrf.mxu0
  %v279 = vadd.f32 %v260, %v278
  %v280 = vpop.f32.mrf.mxu0
  %v281 = vadd.f32 %v262, %v280
  %282 = vdwg.mxu0
  %283 = vmatpush.bf16.msra.mxu0 %v220
  %284 = vmatpush.bf16.msra.mxu0 %v219
  %285 = vmatpush.bf16.msra.mxu0 %v218
  %286 = vmatpush.bf16.msra.mxu0 %v217
  %287 = vmatpush.bf16.msra.mxu0 %v216
  %288 = vmatpush.bf16.msra.mxu0 %v215
  %289 = vmatpush.bf16.msra.mxu0 %v214
  %290 = vmatpush.bf16.msra.mxu0 %v213
  %291 = vmatmul.bf16.gmra.mxu0 %v91
  %v292 = vpop.f32.mrf.mxu0
  %v293 = vadd.f32 %v274, %v292
  %v294 = vpop.f32.mrf.mxu0
  %v295 = vadd.f32 %v276, %v294
  %296 = vmatmul.bf16.gmra.mxu0 %v94
  %v297 = vpop.f32.mrf.mxu0
  %v298 = vadd.f32 %v279, %v297
  %v299 = vpop.f32.mrf.mxu0
  %v300 = vadd.f32 %v281, %v299
  %301 = vdwg.mxu0
  %v302 = vpack.c.bf16 %v293, %v293
  %v303 = vpack.c.bf16 %v295, %v295
  %v304 = vpack.c.bf16 %v298, %v298
  %v305 = vpack.c.bf16 %v300, %v300
  %306 = vst [vmem:[%s2] sm:$0xf] %v302
  %307 = vst [vmem:[%s2 + $0x4] sm:$0xf] %v303
  %308 = vst [vmem:[%s2 + $0x8] sm:$0xf] %v304
  %309 = vst [vmem:[%s2 + $0xc] sm:$0xf] %v305
  %v310 = vadd.f32 %v293, %v295
  %v311 = vadd.f32 %v310, %v298
  %v312 = vadd.f32 %v311, %v300
  %v313 = vrot.slane %v312, 4
  %v314 = vadd.f32 %v312, %v313
  %v315 = vrot.slane %v314, 2
  %v316 = vadd.f32 %v314, %v315
  %v317 = vrot.slane %v316, 1
  %v318 = vadd.f32 %v316, %v317
  %v319 = vmul.f32 %v293, %v293
  %v320 = vmul.f32 %v295, %v295
  %v321 = vmul.f32 %v298, %v298
  %v322 = vmul.f32 %v300, %v300
  %v323 = vadd.f32 %v319, %v320
  %v324 = vadd.f32 %v323, %v321
  %v325 = vadd.f32 %v324, %v322
  %v326 = vrot.slane %v325, 4
  %v327 = vadd.f32 %v325, %v326
  %v328 = vrot.slane %v327, 2
  %v329 = vadd.f32 %v327, %v328
  %v330 = vrot.slane %v329, 1
  %v331 = vadd.f32 %v329, %v330
  %vm332 = vcmask 1040384
  %v333 = vsel %vm332, %v318, %v331
  %vm334 = vcmask 1041408
  %v335 = vsel %vm334, %v333, 0.0
  %336 = vst [vmem:[%s3] sm:$0xff] %v335
  // Predicated region
  $region10: #{resnet_generator_forward.53} parent=0 // pred_check
    _
  $region11: #{resnet_generator_forward.53} parent=0 // pred_check_branch
    %338 = sbr.rel (0) target = $region13
  $region12: #{resnet_generator_forward.53} parent=0 // pred_region
    _
  $region13: #{resnet_generator_forward.53} parent=0 // pred_fallthru
    _
  // Predicated region
  $region14: #{resnet_generator_forward.53} parent=0 // pred_check
    _
  $region15: #{resnet_generator_forward.53} parent=0 // pred_check_branch
    %340 = sbr.rel (0) target = $region17
  $region16: #{resnet_generator_forward.53} parent=0 // pred_region
    _
  $region17: #{resnet_generator_forward.53} parent=0 // pred_fallthru
    _
  // Predicated region
  $region18: #{resnet_generator_forward.53} parent=0 // pred_check
    _
  $region19: #{resnet_generator_forward.53} parent=0 // pred_check_branch
    %342 = sbr.rel (0) target = $region21
  $region20: #{resnet_generator_forward.53} parent=0 // pred_region
    _
  $region21: #{resnet_generator_forward.53} parent=0 // pred_fallthru
    _
  // Predicated region
  $region22: #{resnet_generator_forward.53} parent=0 // pred_check
    _
  $region23: #{resnet_generator_forward.53} parent=0 // pred_check_branch
    %344 = sbr.rel (0) target = $region25
  $region24: #{resnet_generator_forward.53} parent=0 // pred_region
    _
  $region25: #{resnet_generator_forward.53} parent=0 // pred_fallthru
    _

// kernel: tile.34
$region0: #{tile.34}
  %s0 = inlined_call_operand.vmem [shape: f32[2,4,16], index: 0, kind: input, shape index: {}]
  %s1 = inlined_call_operand.vmem [shape: f32[2,64], index: 1, kind: output, shape index: {}]
  $region1: #{tile.34} parent=0
    #allocation0 [shape = 'u8[4096]{0}', space=vmem, size = 0x1000, scoped, tag = 'scoped mem for output reshape']
    #allocation1 [shape = 'u8[8192]{0}', space=vmem, size = 0x2000, scoped, tag = 'scoped mem for input reshape']
    %s3 = ssub.s32 16, 1
    %s4 = scalar_lea.vmem %s0, 4
    %v5 = vld [vmem:[%s4] sm:%s3]
    %s6 = scalar_lea.vmem [#allocation1], 8
    %7 = vst [vmem:[%s6] sm:%s3] %v5
    %v8 = vld [vmem:[%s0] sm:%s3]
    %9 = vst [vmem:[#allocation1] sm:%s3] %v8
    %s10 = smov 3
    %v11 = vld [vmem:[#allocation1] ss:$8 sm:%s10]
    %vm12 = vcmask 130048
    %13 = vst.msk [vmem:[#allocation0] sm:$0x3] %vm12, %v11
    %s14 = scalar_lea.vmem [#allocation1], 3
    %s15 = smov 3
    %v16 = vld [vmem:[%s14] ss:$8 sm:%s15]
    %17 = vrot.lane.b32.xlu0 %v16, 48
    %v18 = vpop.permute.xlu0 %17
    %vm19 = vcmask 523648
    %20 = vst.msk [vmem:[#allocation0] sm:$0x3] %vm19, %v18
    %s21 = scalar_lea.vmem [#allocation1], 2
    %s22 = smov 3
    %v23 = vld [vmem:[%s21] ss:$8 sm:%s22]
    %24 = vrot.lane.b32.xlu0 %v23, 32
    %v25 = vpop.permute.xlu0 %24
    %vm26 = vcmask 392448
    %27 = vst.msk [vmem:[#allocation0] sm:$0x3] %vm26, %v25
    %s28 = scalar_lea.vmem [#allocation1], 1
    %s29 = smov 3
    %v30 = vld [vmem:[%s28] ss:$8 sm:%s29]
    %31 = vrot.lane.b32.xlu0 %v30, 16
    %v32 = vpop.permute.xlu0 %31
    %vm33 = vcmask 261248
    %34 = vst.msk [vmem:[#allocation0] sm:$0x3] %vm33, %v32
    %s36 = ssub.s32 4, 1
    %v37 = vld [vmem:[#allocation0] sm:%s36]
    %s39 = ssub.s32 4, 1
    %40 = vst [vmem:[%s1] sm:%s39] %v37

// kernel: tile.38
$region0: #{tile.38}
  #allocation0 [shape = 's32[1]{0}', space=sflag, size = 0x4, scoped, tag = 'scoped memory for tile.38']
  %s0 = inlined_call_operand.vmem [shape: f32[16], index: 0, kind: input, shape index: {}]
  %s1 = inlined_call_operand.vmem [shape: f32[4,16], index: 1, kind: output, shape index: {}]
  // Predicated region
  $region2: #{tile.38} parent=0 // pred_check
    _
  $region3: #{tile.38} parent=0 // pred_check_branch
    %3 = sbr.rel (0) target = $region5
  $region4: #{tile.38} parent=0 // pred_region
    _
  $region5: #{tile.38} parent=0 // pred_fallthru
    _
  %v4 = vld [vmem:[%s0] ss:$0 sm:$0xff]
  %5 = vst [vmem:[%s1] sm:$0xf] %v4

// kernel: tile.43
$region0: #{tile.43}
  %s0 = inlined_call_operand.vmem [shape: f32[4,16], index: 0, kind: input, shape index: {}]
  %s1 = inlined_call_operand.vmem [shape: f32[1,64], index: 1, kind: output, shape index: {}]
  $region1: #{tile.43} parent=0
    #allocation0 [shape = 'u8[4096]{0}', space=vmem, size = 0x1000, scoped, tag = 'scoped mem for output reshape']
    #allocation1 [shape = 'u8[4096]{0}', space=vmem, size = 0x1000, scoped, tag = 'scoped mem for input reshape']
    %s3 = ssub.s32 16, 1
    %v4 = vld [vmem:[%s0] sm:%s3]
    %5 = vst [vmem:[#allocation1] sm:%s3] %v4
    %v6 = vld [vmem:[#allocation1] sm:$0x1]
    %vm7 = vcmask 130048
    %8 = vst.msk [vmem:[#allocation0] sm:$0x1] %vm7, %v6
    %s9 = scalar_lea.vmem [#allocation1], 3
    %v10 = vld [vmem:[%s9] sm:$0x1]
    %11 = vrot.lane.b32.xlu0 %v10, 48
    %v12 = vpop.permute.xlu0 %11
    %vm13 = vcmask 523648
    %14 = vst.msk [vmem:[#allocation0] sm:$0x1] %vm13, %v12
    %s15 = scalar_lea.vmem [#allocation1], 2
    %v16 = vld [vmem:[%s15] sm:$0x1]
    %17 = vrot.lane.b32.xlu0 %v16, 32
    %v18 = vpop.permute.xlu0 %17
    %vm19 = vcmask 392448
    %20 = vst.msk [vmem:[#allocation0] sm:$0x1] %vm19, %v18
    %s21 = scalar_lea.vmem [#allocation1], 1
    %v22 = vld [vmem:[%s21] sm:$0x1]
    %23 = vrot.lane.b32.xlu0 %v22, 16
    %v24 = vpop.permute.xlu0 %23
    %vm25 = vcmask 261248
    %26 = vst.msk [vmem:[#allocation0] sm:$0x1] %vm25, %v24
    %s28 = ssub.s32 2, 1
    %v29 = vld [vmem:[#allocation0] sm:%s28]
    %s31 = ssub.s32 2, 1
    %32 = vst [vmem:[%s1] sm:%s31] %v29

// kernel: resnet_generator_forward.89
$region0: #{resnet_generator_forward.89}
  #allocation0 [shape = 'u32[]', space=smem, size = 0x4, offset = 0x4, fixed_abs, tag = 'smem constant byte address 0x4 - core index']
  #allocation1 [shape = 'u32[72,128]{1,0:T(1,128)}', space=vmem, size = 0x9000, scoped, tag = 'internal scratch']
  %s0 = inlined_call_operand.vmem [shape: bf16[32,128], index: 0, kind: input, shape index: {}]
  %s1 = inlined_call_operand.vmem [shape: bf16[128,128], index: 1, kind: input, shape index: {}]
  %s2 = inlined_call_operand.vmem [shape: bf16[32,128], index: 2, kind: output, shape index: {0}]
  %s3 = inlined_call_operand.vmem [shape: f32[1,8,128], index: 3, kind: output, shape index: {1}]
  %4 = xla_tuple %s2, %s3
  %s5 = sld [smem:[#allocation0]]
  $region26: #{resnet_generator_forward.89} parent=0
    _
  %s7 = ssub.s32 1, %s5
  %s8 = scalar_select 0, %s7, %s5
  // Predicated region
  $region2: #{resnet_generator_forward.89} parent=0 // pred_check
    _
  $region3: #{resnet_generator_forward.89} parent=0 // pred_check_branch
    %10 = sbr.rel (0) target = $region5
  $region4: #{resnet_generator_forward.89} parent=0 // pred_region
    _
  $region5: #{resnet_generator_forward.89} parent=0 // pred_fallthru
    _
  // Predicated region
  $region6: #{resnet_generator_forward.89} parent=0 // pred_check
    _
  $region7: #{resnet_generator_forward.89} parent=0 // pred_check_branch
    %12 = sbr.rel (0) target = $region9
  $region8: #{resnet_generator_forward.89} parent=0 // pred_region
    _
  $region9: #{resnet_generator_forward.89} parent=0 // pred_fallthru
    _
  %v13 = vld [vmem:[%s0] sm:$0xf]
  %v14 = vld [vmem:[%s0 + $0x4] sm:$0xf]
  %v15 = vld [vmem:[%s0 + $0x8] sm:$0xf]
  %v16 = vld [vmem:[%s0 + $0xc] sm:$0xf]
  %v17 = vld [vmem:[%s1] sm:$0xf]
  %v18 = vld [vmem:[%s1 + $0x4] sm:$0xf]
  %v19 = vld [vmem:[%s1 + $0x8] sm:$0xf]
  %v20 = vld [vmem:[%s1 + $0xc] sm:$0xf]
  %v21 = vld [vmem:[%s1 + $0x10] sm:$0xf]
  %v22 = vld [vmem:[%s1 + $0x14] sm:$0xf]
  %v23 = vld [vmem:[%s1 + $0x18] sm:$0xf]
  %v24 = vld [vmem:[%s1 + $0x1c] sm:$0xf]
  %v25 = vld [vmem:[%s1 + $0x20] sm:$0xf]
  %v26 = vld [vmem:[%s1 + $0x24] sm:$0xf]
  %v27 = vld [vmem:[%s1 + $0x28] sm:$0xf]
  %v28 = vld [vmem:[%s1 + $0x2c] sm:$0xf]
  %v29 = vld [vmem:[%s1 + $0x30] sm:$0xf]
  %v30 = vld [vmem:[%s1 + $0x34] sm:$0xf]
  %v31 = vld [vmem:[%s1 + $0x38] sm:$0xf]
  %v32 = vld [vmem:[%s1 + $0x3c] sm:$0xf]
  %v37 = vunpack.c.l.b16 %v13
  %v38 = vunpack.c.l.b16 %v14
  %v39 = vunpack.c.l.b16 %v15
  %v40 = vunpack.c.l.b16 %v16
  %v41 = vpack.c.b16 %v38, %v37
  %v42 = vpack.c.b16 %v40, %v39
  %v61 = vunpack.c.l.b16 %v17
  %v62 = vunpack.c.l.b16 %v18
  %v63 = vunpack.c.l.b16 %v19
  %v64 = vunpack.c.l.b16 %v20
  %v65 = vunpack.c.l.b16 %v21
  %v66 = vunpack.c.l.b16 %v22
  %v67 = vunpack.c.l.b16 %v23
  %v68 = vunpack.c.l.b16 %v24
  %v69 = vunpack.c.l.b16 %v25
  %v70 = vunpack.c.l.b16 %v26
  %v71 = vunpack.c.l.b16 %v27
  %v72 = vunpack.c.l.b16 %v28
  %v73 = vunpack.c.l.b16 %v29
  %v74 = vunpack.c.l.b16 %v30
  %v75 = vunpack.c.l.b16 %v31
  %v76 = vunpack.c.l.b16 %v32
  %v77 = vpack.c.b16 %v62, %v61
  %v78 = vpack.c.b16 %v64, %v63
  %v79 = vpack.c.b16 %v66, %v65
  %v80 = vpack.c.b16 %v68, %v67
  %v81 = vpack.c.b16 %v70, %v69
  %v82 = vpack.c.b16 %v72, %v71
  %v83 = vpack.c.b16 %v74, %v73
  %v84 = vpack.c.b16 %v76, %v75
  %93 = vmatpush.bf16.msra.mxu0 %v84
  %94 = vmatpush.bf16.msra.mxu0 %v83
  %95 = vmatpush.bf16.msra.mxu0 %v82
  %96 = vmatpush.bf16.msra.mxu0 %v81
  %97 = vmatpush.bf16.msra.mxu0 %v80
  %98 = vmatpush.bf16.msra.mxu0 %v79
  %99 = vmatpush.bf16.msra.mxu0 %v78
  %100 = vmatpush.bf16.msra.mxu0 %v77
  %101 = vmatmul.bf16.gmra.mxu0 %v41
  %v102 = vpop.f32.mrf.mxu0
  %v103 = vadd.f32 0.0, %v102
  %v104 = vpop.f32.mrf.mxu0
  %v105 = vadd.f32 0.0, %v104
  %106 = vmatmul.bf16.gmra.mxu0 %v42
  %v107 = vpop.f32.mrf.mxu0
  %v108 = vadd.f32 0.0, %v107
  %v109 = vpop.f32.mrf.mxu0
  %v110 = vadd.f32 0.0, %v109
  %111 = vdwg.mxu0
  %v112 = vpack.c.bf16 %v103, %v103
  %v113 = vpack.c.bf16 %v105, %v105
  %v114 = vpack.c.bf16 %v108, %v108
  %v115 = vpack.c.bf16 %v110, %v110
  %116 = vst [vmem:[%s2] sm:$0xf] %v112
  %117 = vst [vmem:[%s2 + $0x4] sm:$0xf] %v113
  %118 = vst [vmem:[%s2 + $0x8] sm:$0xf] %v114
  %119 = vst [vmem:[%s2 + $0xc] sm:$0xf] %v115
  %v120 = vadd.f32 %v103, %v105
  %v121 = vadd.f32 %v120, %v108
  %v122 = vadd.f32 %v121, %v110
  %v123 = vrot.slane %v122, 4
  %v124 = vadd.f32 %v122, %v123
  %v125 = vrot.slane %v124, 2
  %v126 = vadd.f32 %v124, %v125
  %v127 = vrot.slane %v126, 1
  %v128 = vadd.f32 %v126, %v127
  %v129 = vmul.f32 %v103, %v103
  %v130 = vmul.f32 %v105, %v105
  %v131 = vmul.f32 %v108, %v108
  %v132 = vmul.f32 %v110, %v110
  %v133 = vadd.f32 %v129, %v130
  %v134 = vadd.f32 %v133, %v131
  %v135 = vadd.f32 %v134, %v132
  %v136 = vrot.slane %v135, 4
  %v137 = vadd.f32 %v135, %v136
  %v138 = vrot.slane %v137, 2
  %v139 = vadd.f32 %v137, %v138
  %v140 = vrot.slane %v139, 1
  %v141 = vadd.f32 %v139, %v140
  %vm142 = vcmask 1040384
  %v143 = vsel %vm142, %v128, %v141
  %vm144 = vcmask 1041408
  %v145 = vsel %vm144, %v143, 0.0
  %146 = vst [vmem:[%s3] sm:$0xff] %v145
  // Predicated region
  $region10: #{resnet_generator_forward.89} parent=0 // pred_check
    _
  $region11: #{resnet_generator_forward.89} parent=0 // pred_check_branch
    %148 = sbr.rel (0) target = $region13
  $region12: #{resnet_generator_forward.89} parent=0 // pred_region
    _
  $region13: #{resnet_generator_forward.89} parent=0 // pred_fallthru
    _
  // Predicated region
  $region14: #{resnet_generator_forward.89} parent=0 // pred_check
    _
  $region15: #{resnet_generator_forward.89} parent=0 // pred_check_branch
    %150 = sbr.rel (0) target = $region17
  $region16: #{resnet_generator_forward.89} parent=0 // pred_region
    _
  $region17: #{resnet_generator_forward.89} parent=0 // pred_fallthru
    _
  // Predicated region
  $region18: #{resnet_generator_forward.89} parent=0 // pred_check
    _
  $region19: #{resnet_generator_forward.89} parent=0 // pred_check_branch
    %152 = sbr.rel (0) target = $region21
  $region20: #{resnet_generator_forward.89} parent=0 // pred_region
    _
  $region21: #{resnet_generator_forward.89} parent=0 // pred_fallthru
    _
  // Predicated region
  $region22: #{resnet_generator_forward.89} parent=0 // pred_check
    _
  $region23: #{resnet_generator_forward.89} parent=0 // pred_check_branch
    %154 = sbr.rel (0) target = $region25
  $region24: #{resnet_generator_forward.89} parent=0 // pred_region
    _
  $region25: #{resnet_generator_forward.89} parent=0 // pred_fallthru
    _

// kernel: resnet_generator_forward.90
$region0: #{resnet_generator_forward.90}
  #allocation0 [shape = 'u32[]', space=smem, size = 0x4, offset = 0x4, fixed_abs, tag = 'smem constant byte address 0x4 - core index']
  #allocation1 [shape = 'u32[72,128]{1,0:T(1,128)}', space=vmem, size = 0x9000, scoped, tag = 'internal scratch']
  %s0 = inlined_call_operand.vmem [shape: bf16[32,128], index: 0, kind: input, shape index: {}]
  %s1 = inlined_call_operand.vmem [shape: f32[8,128], index: 1, kind: input, shape index: {}]
  %s2 = inlined_call_operand.vmem [shape: f32[1,128], index: 2, kind: input, shape index: {}]
  %s3 = inlined_call_operand.vmem [shape: f32[1,128], index: 3, kind: input, shape index: {}]
  %s4 = inlined_call_operand.vmem [shape: bf16[32,128], index: 4, kind: output, shape index: {}]
  %s5 = sld [smem:[#allocation0]]
  $region26: #{resnet_generator_forward.90} parent=0
    _
  %s7 = ssub.s32 1, %s5
  %s8 = scalar_select 0, %s7, %s5
  // Predicated region
  $region2: #{resnet_generator_forward.90} parent=0 // pred_check
    _
  $region3: #{resnet_generator_forward.90} parent=0 // pred_check_branch
    %10 = sbr.rel (0) target = $region5
  $region4: #{resnet_generator_forward.90} parent=0 // pred_region
    _
  $region5: #{resnet_generator_forward.90} parent=0 // pred_fallthru
    _
  // Predicated region
  $region6: #{resnet_generator_forward.90} parent=0 // pred_check
    _
  $region7: #{resnet_generator_forward.90} parent=0 // pred_check_branch
    %12 = sbr.rel (0) target = $region9
  $region8: #{resnet_generator_forward.90} parent=0 // pred_region
    _
  $region9: #{resnet_generator_forward.90} parent=0 // pred_fallthru
    _
  // Predicated region
  $region10: #{resnet_generator_forward.90} parent=0 // pred_check
    _
  $region11: #{resnet_generator_forward.90} parent=0 // pred_check_branch
    %14 = sbr.rel (0) target = $region13
  $region12: #{resnet_generator_forward.90} parent=0 // pred_region
    _
  $region13: #{resnet_generator_forward.90} parent=0 // pred_fallthru
    _
  // Predicated region
  $region14: #{resnet_generator_forward.90} parent=0 // pred_check
    _
  $region15: #{resnet_generator_forward.90} parent=0 // pred_check_branch
    %16 = sbr.rel (0) target = $region17
  $region16: #{resnet_generator_forward.90} parent=0 // pred_region
    _
  $region17: #{resnet_generator_forward.90} parent=0 // pred_fallthru
    _
  %v17 = vld [vmem:[%s1] sm:$0x1]
  %v18 = vmul.f32 %v17, 0.0078125
  %v19 = vld [vmem:[%s1 + $0x1] sm:$0x1]
  %v20 = vmul.f32 %v19, 0.0078125
  %v21 = vmul.f32 %v18, %v18
  %v22 = vsub.f32 %v20, %v21
  %v23 = vmax.f32 %v22, 0.0
  %v24 = vld [vmem:[%s2] sm:$0x1]
  %v25 = vadd.f32 %v23, 1e-05
  %v26 = vrsqrt.pop %v25
  %v27 = vmul.f32 %v26, %v25
  %v28 = vmul.f32 %v27, %v26
  %v29 = vmul.f32 0.5, %v28
  %v30 = vsub.f32 1.5, %v29
  %v31 = vmul.f32 %v26, %v30
  %vm32 = vweird.f32 %v25
  %vm33 = vweird.f32 %v26
  %vm34 = vmor %vm32, %vm33
  %v35 = vsel %vm34, %v26, %v31
  %v36 = vmul.f32 %v24, %v35
  %v37 = vld [vmem:[%s3] sm:$0x1]
  %v38 = vmul.f32 %v18, %v36
  %v39 = vsub.f32 %v37, %v38
  %v40 = vld [vmem:[%s0] sm:$0xf]
  %v41 = vld [vmem:[%s0 + $0x4] sm:$0xf]
  %v42 = vld [vmem:[%s0 + $0x8] sm:$0xf]
  %v43 = vld [vmem:[%s0 + $0xc] sm:$0xf]
  %v44 = vunpack.c.l.bf16 %v40
  %v45 = vunpack.c.l.bf16 %v41
  %v46 = vunpack.c.l.bf16 %v42
  %v47 = vunpack.c.l.bf16 %v43
  %v49 = vperm.slane %v36, 0
  %v51 = vmul.f32 %v44, %v49
  %v52 = vmul.f32 %v45, %v49
  %v53 = vmul.f32 %v46, %v49
  %v54 = vmul.f32 %v47, %v49
  %v56 = vperm.slane %v39, 0
  %v58 = vadd.f32 %v51, %v56
  %v59 = vadd.f32 %v52, %v56
  %v60 = vadd.f32 %v53, %v56
  %v61 = vadd.f32 %v54, %v56
  %v62 = vmax.f32 %v58, 0.0
  %v63 = vmax.f32 %v59, 0.0
  %v64 = vmax.f32 %v60, 0.0
  %v65 = vmax.f32 %v61, 0.0
  %v66 = vpack.c.bf16 %v62, %v62
  %v67 = vpack.c.bf16 %v63, %v63
  %v68 = vpack.c.bf16 %v64, %v64
  %v69 = vpack.c.bf16 %v65, %v65
  %70 = vst [vmem:[%s4] sm:$0xf] %v66
  %71 = vst [vmem:[%s4 + $0x4] sm:$0xf] %v67
  %72 = vst [vmem:[%s4 + $0x8] sm:$0xf] %v68
  %73 = vst [vmem:[%s4 + $0xc] sm:$0xf] %v69
  // Predicated region
  $region18: #{resnet_generator_forward.90} parent=0 // pred_check
    _
  $region19: #{resnet_generator_forward.90} parent=0 // pred_check_branch
    %75 = sbr.rel (0) target = $region21
  $region20: #{resnet_generator_forward.90} parent=0 // pred_region
    _
  $region21: #{resnet_generator_forward.90} parent=0 // pred_fallthru
    _
  // Predicated region
  $region22: #{resnet_generator_forward.90} parent=0 // pred_check
    _
  $region23: #{resnet_generator_forward.90} parent=0 // pred_check_branch
    %77 = sbr.rel (0) target = $region25
  $region24: #{resnet_generator_forward.90} parent=0 // pred_region
    _
  $region25: #{resnet_generator_forward.90} parent=0 // pred_fallthru
    _

// kernel: tile.49
$region0: #{tile.49}
  %s0 = inlined_call_operand.vmem [shape: f32[2,4,8], index: 0, kind: input, shape index: {}]
  %s1 = inlined_call_operand.vmem [shape: f32[2,32], index: 1, kind: output, shape index: {}]
  $region1: #{tile.49} parent=0
    #allocation0 [shape = 'u8[4096]{0}', space=vmem, size = 0x1000, scoped, tag = 'scoped mem for output reshape']
    #allocation1 [shape = 'u8[8192]{0}', space=vmem, size = 0x2000, scoped, tag = 'scoped mem for input reshape']
    %s3 = ssub.s32 16, 1
    %s4 = scalar_lea.vmem %s0, 4
    %v5 = vld [vmem:[%s4] sm:%s3]
    %s6 = scalar_lea.vmem [#allocation1], 8
    %7 = vst [vmem:[%s6] sm:%s3] %v5
    %v8 = vld [vmem:[%s0] sm:%s3]
    %9 = vst [vmem:[#allocation1] sm:%s3] %v8
    %s10 = smov 3
    %v11 = vld [vmem:[#allocation1] ss:$8 sm:%s10]
    %vm12 = vcmask 64512
    %13 = vst.msk [vmem:[#allocation0] sm:$0x3] %vm12, %v11
    %s14 = scalar_lea.vmem [#allocation1], 3
    %s15 = smov 3
    %v16 = vld [vmem:[%s14] ss:$8 sm:%s15]
    %17 = vrot.lane.b32.xlu0 %v16, 24
    %v18 = vpop.permute.xlu0 %17
    %vm19 = vcmask 261312
    %20 = vst.msk [vmem:[#allocation0] sm:$0x3] %vm19, %v18
    %s21 = scalar_lea.vmem [#allocation1], 2
    %s22 = smov 3
    %v23 = vld [vmem:[%s21] ss:$8 sm:%s22]
    %24 = vrot.lane.b32.xlu0 %v23, 16
    %v25 = vpop.permute.xlu0 %24
    %vm26 = vcmask 195712
    %27 = vst.msk [vmem:[#allocation0] sm:$0x3] %vm26, %v25
    %s28 = scalar_lea.vmem [#allocation1], 1
    %s29 = smov 3
    %v30 = vld [vmem:[%s28] ss:$8 sm:%s29]
    %31 = vrot.lane.b32.xlu0 %v30, 8
    %v32 = vpop.permute.xlu0 %31
    %vm33 = vcmask 130112
    %34 = vst.msk [vmem:[#allocation0] sm:$0x3] %vm33, %v32
    %s36 = ssub.s32 4, 1
    %v37 = vld [vmem:[#allocation0] sm:%s36]
    %s39 = ssub.s32 4, 1
    %40 = vst [vmem:[%s1] sm:%s39] %v37

// kernel: tile.53
$region0: #{tile.53}
  #allocation0 [shape = 's32[1]{0}', space=sflag, size = 0x4, scoped, tag = 'scoped memory for tile.53']
  %s0 = inlined_call_operand.vmem [shape: f32[8], index: 0, kind: input, shape index: {}]
  %s1 = inlined_call_operand.vmem [shape: f32[4,8], index: 1, kind: output, shape index: {}]
  // Predicated region
  $region2: #{tile.53} parent=0 // pred_check
    _
  $region3: #{tile.53} parent=0 // pred_check_branch
    %3 = sbr.rel (0) target = $region5
  $region4: #{tile.53} parent=0 // pred_region
    _
  $region5: #{tile.53} parent=0 // pred_fallthru
    _
  %v4 = vld [vmem:[%s0] ss:$0 sm:$0xff]
  %5 = vst [vmem:[%s1] sm:$0xf] %v4

// kernel: tile.58
$region0: #{tile.58}
  %s0 = inlined_call_operand.vmem [shape: f32[4,8], index: 0, kind: input, shape index: {}]
  %s1 = inlined_call_operand.vmem [shape: f32[1,32], index: 1, kind: output, shape index: {}]
  $region1: #{tile.58} parent=0
    #allocation0 [shape = 'u8[4096]{0}', space=vmem, size = 0x1000, scoped, tag = 'scoped mem for output reshape']
    #allocation1 [shape = 'u8[4096]{0}', space=vmem, size = 0x1000, scoped, tag = 'scoped mem for input reshape']
    %s3 = ssub.s32 16, 1
    %v4 = vld [vmem:[%s0] sm:%s3]
    %5 = vst [vmem:[#allocation1] sm:%s3] %v4
    %v6 = vld [vmem:[#allocation1] sm:$0x1]
    %vm7 = vcmask 64512
    %8 = vst.msk [vmem:[#allocation0] sm:$0x1] %vm7, %v6
    %s9 = scalar_lea.vmem [#allocation1], 3
    %v10 = vld [vmem:[%s9] sm:$0x1]
    %11 = vrot.lane.b32.xlu0 %v10, 24
    %v12 = vpop.permute.xlu0 %11
    %vm13 = vcmask 261312
    %14 = vst.msk [vmem:[#allocation0] sm:$0x1] %vm13, %v12
    %s15 = scalar_lea.vmem [#allocation1], 2
    %v16 = vld [vmem:[%s15] sm:$0x1]
    %17 = vrot.lane.b32.xlu0 %v16, 16
    %v18 = vpop.permute.xlu0 %17
    %vm19 = vcmask 195712
    %20 = vst.msk [vmem:[#allocation0] sm:$0x1] %vm19, %v18
    %s21 = scalar_lea.vmem [#allocation1], 1
    %v22 = vld [vmem:[%s21] sm:$0x1]
    %23 = vrot.lane.b32.xlu0 %v22, 8
    %v24 = vpop.permute.xlu0 %23
    %vm25 = vcmask 130112
    %26 = vst.msk [vmem:[#allocation0] sm:$0x1] %vm25, %v24
    %s28 = ssub.s32 2, 1
    %v29 = vld [vmem:[#allocation0] sm:%s28]
    %s31 = ssub.s32 2, 1
    %32 = vst [vmem:[%s1] sm:%s31] %v29

// kernel: resnet_generator_forward.92
$region0: #{resnet_generator_forward.92}
  #allocation0 [shape = 'u32[]', space=smem, size = 0x4, offset = 0x4, fixed_abs, tag = 'smem constant byte address 0x4 - core index']
  #allocation1 [shape = 'u32[72,128]{1,0:T(1,128)}', space=vmem, size = 0x9000, scoped, tag = 'internal scratch']
  %s0 = inlined_call_operand.vmem [shape: bf16[128,128], index: 0, kind: input, shape index: {}]
  %s1 = inlined_call_operand.vmem [shape: f32[8,128], index: 1, kind: input, shape index: {}]
  %s2 = inlined_call_operand.vmem [shape: f32[1,128], index: 2, kind: input, shape index: {}]
  %s3 = inlined_call_operand.vmem [shape: f32[1,128], index: 3, kind: input, shape index: {}]
  %s4 = inlined_call_operand.vmem [shape: bf16[128,128], index: 4, kind: output, shape index: {}]
  %s5 = sld [smem:[#allocation0]]
  $region26: #{resnet_generator_forward.92} parent=0
    _
  %s7 = ssub.s32 1, %s5
  %s8 = scalar_select 0, %s7, %s5
  // Predicated region
  $region2: #{resnet_generator_forward.92} parent=0 // pred_check
    _
  $region3: #{resnet_generator_forward.92} parent=0 // pred_check_branch
    %10 = sbr.rel (0) target = $region5
  $region4: #{resnet_generator_forward.92} parent=0 // pred_region
    _
  $region5: #{resnet_generator_forward.92} parent=0 // pred_fallthru
    _
  // Predicated region
  $region6: #{resnet_generator_forward.92} parent=0 // pred_check
    _
  $region7: #{resnet_generator_forward.92} parent=0 // pred_check_branch
    %12 = sbr.rel (0) target = $region9
  $region8: #{resnet_generator_forward.92} parent=0 // pred_region
    _
  $region9: #{resnet_generator_forward.92} parent=0 // pred_fallthru
    _
  // Predicated region
  $region10: #{resnet_generator_forward.92} parent=0 // pred_check
    _
  $region11: #{resnet_generator_forward.92} parent=0 // pred_check_branch
    %14 = sbr.rel (0) target = $region13
  $region12: #{resnet_generator_forward.92} parent=0 // pred_region
    _
  $region13: #{resnet_generator_forward.92} parent=0 // pred_fallthru
    _
  // Predicated region
  $region14: #{resnet_generator_forward.92} parent=0 // pred_check
    _
  $region15: #{resnet_generator_forward.92} parent=0 // pred_check_branch
    %16 = sbr.rel (0) target = $region17
  $region16: #{resnet_generator_forward.92} parent=0 // pred_region
    _
  $region17: #{resnet_generator_forward.92} parent=0 // pred_fallthru
    _
  %v17 = vld [vmem:[%s1] sm:$0x1]
  %v18 = vmul.f32 %v17, 0.001953125
  %v19 = vld [vmem:[%s1 + $0x1] sm:$0x1]
  %v20 = vmul.f32 %v19, 0.001953125
  %v21 = vmul.f32 %v18, %v18
  %v22 = vsub.f32 %v20, %v21
  %v23 = vmax.f32 %v22, 0.0
  %v24 = vld [vmem:[%s2] sm:$0x1]
  %v25 = vadd.f32 %v23, 1e-05
  %v26 = vrsqrt.pop %v25
  %v27 = vmul.f32 %v26, %v25
  %v28 = vmul.f32 %v27, %v26
  %v29 = vmul.f32 0.5, %v28
  %v30 = vsub.f32 1.5, %v29
  %v31 = vmul.f32 %v26, %v30
  %vm32 = vweird.f32 %v25
  %vm33 = vweird.f32 %v26
  %vm34 = vmor %vm32, %vm33
  %v35 = vsel %vm34, %v26, %v31
  %v36 = vmul.f32 %v24, %v35
  %v37 = vld [vmem:[%s3] sm:$0x1]
  %v38 = vmul.f32 %v18, %v36
  %v39 = vsub.f32 %v37, %v38
  %v40 = vld [vmem:[%s0] sm:$0xf]
  %v41 = vld [vmem:[%s0 + $0x4] sm:$0xf]
  %v42 = vld [vmem:[%s0 + $0x8] sm:$0xf]
  %v43 = vld [vmem:[%s0 + $0xc] sm:$0xf]
  %v44 = vld [vmem:[%s0 + $0x10] sm:$0xf]
  %v45 = vld [vmem:[%s0 + $0x14] sm:$0xf]
  %v46 = vld [vmem:[%s0 + $0x18] sm:$0xf]
  %v47 = vld [vmem:[%s0 + $0x1c] sm:$0xf]
  %v48 = vld [vmem:[%s0 + $0x20] sm:$0xf]
  %v49 = vld [vmem:[%s0 + $0x24] sm:$0xf]
  %v50 = vld [vmem:[%s0 + $0x28] sm:$0xf]
  %v51 = vld [vmem:[%s0 + $0x2c] sm:$0xf]
  %v52 = vld [vmem:[%s0 + $0x30] sm:$0xf]
  %v53 = vld [vmem:[%s0 + $0x34] sm:$0xf]
  %v54 = vld [vmem:[%s0 + $0x38] sm:$0xf]
  %v55 = vld [vmem:[%s0 + $0x3c] sm:$0xf]
  %v56 = vunpack.c.l.bf16 %v40
  %v57 = vunpack.c.l.bf16 %v41
  %v58 = vunpack.c.l.bf16 %v42
  %v59 = vunpack.c.l.bf16 %v43
  %v60 = vunpack.c.l.bf16 %v44
  %v61 = vunpack.c.l.bf16 %v45
  %v62 = vunpack.c.l.bf16 %v46
  %v63 = vunpack.c.l.bf16 %v47
  %v64 = vunpack.c.l.bf16 %v48
  %v65 = vunpack.c.l.bf16 %v49
  %v66 = vunpack.c.l.bf16 %v50
  %v67 = vunpack.c.l.bf16 %v51
  %v68 = vunpack.c.l.bf16 %v52
  %v69 = vunpack.c.l.bf16 %v53
  %v70 = vunpack.c.l.bf16 %v54
  %v71 = vunpack.c.l.bf16 %v55
  %v73 = vperm.slane %v36, 0
  %v75 = vmul.f32 %v56, %v73
  %v76 = vmul.f32 %v57, %v73
  %v77 = vmul.f32 %v58, %v73
  %v78 = vmul.f32 %v59, %v73
  %v79 = vmul.f32 %v60, %v73
  %v80 = vmul.f32 %v61, %v73
  %v81 = vmul.f32 %v62, %v73
  %v82 = vmul.f32 %v63, %v73
  %v83 = vmul.f32 %v64, %v73
  %v84 = vmul.f32 %v65, %v73
  %v85 = vmul.f32 %v66, %v73
  %v86 = vmul.f32 %v67, %v73
  %v87 = vmul.f32 %v68, %v73
  %v88 = vmul.f32 %v69, %v73
  %v89 = vmul.f32 %v70, %v73
  %v90 = vmul.f32 %v71, %v73
  %v92 = vperm.slane %v39, 0
  %v94 = vadd.f32 %v75, %v92
  %v95 = vadd.f32 %v76, %v92
  %v96 = vadd.f32 %v77, %v92
  %v97 = vadd.f32 %v78, %v92
  %v98 = vadd.f32 %v79, %v92
  %v99 = vadd.f32 %v80, %v92
  %v100 = vadd.f32 %v81, %v92
  %v101 = vadd.f32 %v82, %v92
  %v102 = vadd.f32 %v83, %v92
  %v103 = vadd.f32 %v84, %v92
  %v104 = vadd.f32 %v85, %v92
  %v105 = vadd.f32 %v86, %v92
  %v106 = vadd.f32 %v87, %v92
  %v107 = vadd.f32 %v88, %v92
  %v108 = vadd.f32 %v89, %v92
  %v109 = vadd.f32 %v90, %v92
  %v110 = vmax.f32 %v94, 0.0
  %v111 = vmax.f32 %v95, 0.0
  %v112 = vmax.f32 %v96, 0.0
  %v113 = vmax.f32 %v97, 0.0
  %v114 = vmax.f32 %v98, 0.0
  %v115 = vmax.f32 %v99, 0.0
  %v116 = vmax.f32 %v100, 0.0
  %v117 = vmax.f32 %v101, 0.0
  %v118 = vmax.f32 %v102, 0.0
  %v119 = vmax.f32 %v103, 0.0
  %v120 = vmax.f32 %v104, 0.0
  %v121 = vmax.f32 %v105, 0.0
  %v122 = vmax.f32 %v106, 0.0
  %v123 = vmax.f32 %v107, 0.0
  %v124 = vmax.f32 %v108, 0.0
  %v125 = vmax.f32 %v109, 0.0
  %v126 = vpack.c.bf16 %v110, %v110
  %v127 = vpack.c.bf16 %v111, %v111
  %v128 = vpack.c.bf16 %v112, %v112
  %v129 = vpack.c.bf16 %v113, %v113
  %v130 = vpack.c.bf16 %v114, %v114
  %v131 = vpack.c.bf16 %v115, %v115
  %v132 = vpack.c.bf16 %v116, %v116
  %v133 = vpack.c.bf16 %v117, %v117
  %v134 = vpack.c.bf16 %v118, %v118
  %v135 = vpack.c.bf16 %v119, %v119
  %v136 = vpack.c.bf16 %v120, %v120
  %v137 = vpack.c.bf16 %v121, %v121
  %v138 = vpack.c.bf16 %v122, %v122
  %v139 = vpack.c.bf16 %v123, %v123
  %v140 = vpack.c.bf16 %v124, %v124
  %v141 = vpack.c.bf16 %v125, %v125
  %142 = vst [vmem:[%s4] sm:$0xf] %v126
  %143 = vst [vmem:[%s4 + $0x4] sm:$0xf] %v127
  %144 = vst [vmem:[%s4 + $0x8] sm:$0xf] %v128
  %145 = vst [vmem:[%s4 + $0xc] sm:$0xf] %v129
  %146 = vst [vmem:[%s4 + $0x10] sm:$0xf] %v130
  %147 = vst [vmem:[%s4 + $0x14] sm:$0xf] %v131
  %148 = vst [vmem:[%s4 + $0x18] sm:$0xf] %v132
  %149 = vst [vmem:[%s4 + $0x1c] sm:$0xf] %v133
  %150 = vst [vmem:[%s4 + $0x20] sm:$0xf] %v134
  %151 = vst [vmem:[%s4 + $0x24] sm:$0xf] %v135
  %152 = vst [vmem:[%s4 + $0x28] sm:$0xf] %v136
  %153 = vst [vmem:[%s4 + $0x2c] sm:$0xf] %v137
  %154 = vst [vmem:[%s4 + $0x30] sm:$0xf] %v138
  %155 = vst [vmem:[%s4 + $0x34] sm:$0xf] %v139
  %156 = vst [vmem:[%s4 + $0x38] sm:$0xf] %v140
  %157 = vst [vmem:[%s4 + $0x3c] sm:$0xf] %v141
  // Predicated region
  $region18: #{resnet_generator_forward.92} parent=0 // pred_check
    _
  $region19: #{resnet_generator_forward.92} parent=0 // pred_check_branch
    %159 = sbr.rel (0) target = $region21
  $region20: #{resnet_generator_forward.92} parent=0 // pred_region
    _
  $region21: #{resnet_generator_forward.92} parent=0 // pred_fallthru
    _
  // Predicated region
  $region22: #{resnet_generator_forward.92} parent=0 // pred_check
    _
  $region23: #{resnet_generator_forward.92} parent=0 // pred_check_branch
    %161 = sbr.rel (0) target = $region25
  $region24: #{resnet_generator_forward.92} parent=0 // pred_region
    _
  $region25: #{resnet_generator_forward.92} parent=0 // pred_fallthru
    _

// kernel: resnet_generator_forward.93
$region0: #{resnet_generator_forward.93}
  #allocation0 [shape = 'u32[]', space=smem, size = 0x4, offset = 0x4, fixed_abs, tag = 'smem constant byte address 0x4 - core index']
  #allocation1 [shape = 'u32[72,128]{1,0:T(1,128)}', space=vmem, size = 0x9000, scoped, tag = 'internal scratch']
  %s0 = inlined_call_operand.vmem [shape: bf16[512,512], index: 0, kind: input, shape index: {}]
  %s1 = inlined_call_operand.vmem [shape: bf16[512,128], index: 1, kind: input, shape index: {}]
  %s2 = inlined_call_operand.vmem [shape: f32[1,128], index: 2, kind: input, shape index: {}]
  %s3 = inlined_call_operand.vmem [shape: f32[512,128], index: 3, kind: output, shape index: {}]
  %s4 = sld [smem:[#allocation0]]
  $region22: #{resnet_generator_forward.93} parent=0
    _
  %s6 = ssub.s32 1, %s4
  %s7 = scalar_select 0, %s6, %s4
  // Predicated region
  $region2: #{resnet_generator_forward.93} parent=0 // pred_check
    _
  $region3: #{resnet_generator_forward.93} parent=0 // pred_check_branch
    %9 = sbr.rel (0) target = $region5
  $region4: #{resnet_generator_forward.93} parent=0 // pred_region
    _
  $region5: #{resnet_generator_forward.93} parent=0 // pred_fallthru
    _
  // Predicated region
  $region6: #{resnet_generator_forward.93} parent=0 // pred_check
    _
  $region7: #{resnet_generator_forward.93} parent=0 // pred_check_branch
    %11 = sbr.rel (0) target = $region9
  $region8: #{resnet_generator_forward.93} parent=0 // pred_region
    _
  $region9: #{resnet_generator_forward.93} parent=0 // pred_fallthru
    _
  // Predicated region
  $region10: #{resnet_generator_forward.93} parent=0 // pred_check
    _
  $region11: #{resnet_generator_forward.93} parent=0 // pred_check_branch
    %13 = sbr.rel (0) target = $region13
  $region12: #{resnet_generator_forward.93} parent=0 // pred_region
    _
  $region13: #{resnet_generator_forward.93} parent=0 // pred_fallthru
    _
  %v14 = vld [vmem:[%s0] sm:$0xff]
  %v15 = vld [vmem:[%s0 + $0x8] sm:$0xff]
  %v16 = vld [vmem:[%s0 + $0x10] sm:$0xff]
  %v17 = vld [vmem:[%s0 + $0x18] sm:$0xff]
  %v18 = vld [vmem:[%s0 + $0x20] sm:$0xff]
  %v19 = vld [vmem:[%s0 + $0x28] sm:$0xff]
  %v20 = vld [vmem:[%s0 + $0x30] sm:$0xff]
  %v21 = vld [vmem:[%s0 + $0x38] sm:$0xff]
  %v22 = vld [vmem:[%s0 + $0x40] sm:$0xff]
  %v23 = vld [vmem:[%s0 + $0x48] sm:$0xff]
  %v24 = vld [vmem:[%s0 + $0x50] sm:$0xff]
  %v25 = vld [vmem:[%s0 + $0x58] sm:$0xff]
  %v26 = vld [vmem:[%s0 + $0x60] sm:$0xff]
  %v27 = vld [vmem:[%s0 + $0x68] sm:$0xff]
  %v28 = vld [vmem:[%s0 + $0x70] sm:$0xff]
  %v29 = vld [vmem:[%s0 + $0x78] sm:$0xff]
  %v30 = vld [vmem:[%s0 + $0x80] sm:$0xff]
  %v31 = vld [vmem:[%s0 + $0x88] sm:$0xff]
  %v32 = vld [vmem:[%s0 + $0x90] sm:$0xff]
  %v33 = vld [vmem:[%s0 + $0x98] sm:$0xff]
  %v34 = vld [vmem:[%s0 + $0xa0] sm:$0xff]
  %v35 = vld [vmem:[%s0 + $0xa8] sm:$0xff]
  %v36 = vld [vmem:[%s0 + $0xb0] sm:$0xff]
  %v37 = vld [vmem:[%s0 + $0xb8] sm:$0xff]
  %v38 = vld [vmem:[%s0 + $0xc0] sm:$0xff]
  %v39 = vld [vmem:[%s0 + $0xc8] sm:$0xff]
  %v40 = vld [vmem:[%s0 + $0xd0] sm:$0xff]
  %v41 = vld [vmem:[%s0 + $0xd8] sm:$0xff]
  %v42 = vld [vmem:[%s0 + $0xe0] sm:$0xff]
  %v43 = vld [vmem:[%s0 + $0xe8] sm:$0xff]
  %v44 = vld [vmem:[%s0 + $0xf0] sm:$0xff]
  %v45 = vld [vmem:[%s0 + $0xf8] sm:$0xff]
  %v46 = vld [vmem:[%s0 + $0x100] sm:$0xff]
  %v47 = vld [vmem:[%s0 + $0x108] sm:$0xff]
  %v48 = vld [vmem:[%s0 + $0x110] sm:$0xff]
  %v49 = vld [vmem:[%s0 + $0x118] sm:$0xff]
  %v50 = vld [vmem:[%s0 + $0x120] sm:$0xff]
  %v51 = vld [vmem:[%s0 + $0x128] sm:$0xff]
  %v52 = vld [vmem:[%s0 + $0x130] sm:$0xff]
  %v53 = vld [vmem:[%s0 + $0x138] sm:$0xff]
  %v54 = vld [vmem:[%s0 + $0x140] sm:$0xff]
  %v55 = vld [vmem:[%s0 + $0x148] sm:$0xff]
  %v56 = vld [vmem:[%s0 + $0x150] sm:$0xff]
  %v57 = vld [vmem:[%s0 + $0x158] sm:$0xff]
  %v58 = vld [vmem:[%s0 + $0x160] sm:$0xff]
  %v59 = vld [vmem:[%s0 + $0x168] sm:$0xff]
  %v60 = vld [vmem:[%s0 + $0x170] sm:$0xff]
  %v61 = vld [vmem:[%s0 + $0x178] sm:$0xff]
  %v62 = vld [vmem:[%s0 + $0x180] sm:$0xff]
  %v63 = vld [vmem:[%s0 + $0x188] sm:$0xff]
  %v64 = vld [vmem:[%s0 + $0x190] sm:$0xff]
  %v65 = vld [vmem:[%s0 + $0x198] sm:$0xff]
  %v66 = vld [vmem:[%s0 + $0x1a0] sm:$0xff]
  %v67 = vld [vmem:[%s0 + $0x1a8] sm:$0xff]
  %v68 = vld [vmem:[%s0 + $0x1b0] sm:$0xff]
  %v69 = vld [vmem:[%s0 + $0x1b8] sm:$0xff]
  %v70 = vld [vmem:[%s0 + $0x1c0] sm:$0xff]
  %v71 = vld [vmem:[%s0 + $0x1c8] sm:$0xff]
  %v72 = vld [vmem:[%s0 + $0x1d0] sm:$0xff]
  %v73 = vld [vmem:[%s0 + $0x1d8] sm:$0xff]
  %v74 = vld [vmem:[%s0 + $0x1e0] sm:$0xff]
  %v75 = vld [vmem:[%s0 + $0x1e8] sm:$0xff]
  %v76 = vld [vmem:[%s0 + $0x1f0] sm:$0xff]
  %v77 = vld [vmem:[%s0 + $0x1f8] sm:$0xff]
  %v78 = vld [vmem:[%s0 + $0x200] sm:$0xff]
  %v79 = vld [vmem:[%s0 + $0x208] sm:$0xff]
  %v80 = vld [vmem:[%s0 + $0x210] sm:$0xff]
  %v81 = vld [vmem:[%s0 + $0x218] sm:$0xff]
  %v82 = vld [vmem:[%s0 + $0x220] sm:$0xff]
  %v83 = vld [vmem:[%s0 + $0x228] sm:$0xff]
  %v84 = vld [vmem:[%s0 + $0x230] sm:$0xff]
  %v85 = vld [vmem:[%s0 + $0x238] sm:$0xff]
  %v86 = vld [vmem:[%s0 + $0x240] sm:$0xff]
  %v87 = vld [vmem:[%s0 + $0x248] sm:$0xff]
  %v88 = vld [vmem:[%s0 + $0x250] sm:$0xff]
  %v89 = vld [vmem:[%s0 + $0x258] sm:$0xff]
  %v90 = vld [vmem:[%s0 + $0x260] sm:$0xff]
  %v91 = vld [vmem:[%s0 + $0x268] sm:$0xff]
  %v92 = vld [vmem:[%s0 + $0x270] sm:$0xff]
  %v93 = vld [vmem:[%s0 + $0x278] sm:$0xff]
  %v94 = vld [vmem:[%s0 + $0x280] sm:$0xff]
  %v95 = vld [vmem:[%s0 + $0x288] sm:$0xff]
  %v96 = vld [vmem:[%s0 + $0x290] sm:$0xff]
  %v97 = vld [vmem:[%s0 + $0x298] sm:$0xff]
  %v98 = vld [vmem:[%s0 + $0x2a0] sm:$0xff]
  %v99 = vld [vmem:[%s0 + $0x2a8] sm:$0xff]
  %v100 = vld [vmem:[%s0 + $0x2b0] sm:$0xff]
  %v101 = vld [vmem:[%s0 + $0x2b8] sm:$0xff]
  %v102 = vld [vmem:[%s0 + $0x2c0] sm:$0xff]
  %v103 = vld [vmem:[%s0 + $0x2c8] sm:$0xff]
  %v104 = vld [vmem:[%s0 + $0x2d0] sm:$0xff]
  %v105 = vld [vmem:[%s0 + $0x2d8] sm:$0xff]
  %v106 = vld [vmem:[%s0 + $0x2e0] sm:$0xff]
  %v107 = vld [vmem:[%s0 + $0x2e8] sm:$0xff]
  %v108 = vld [vmem:[%s0 + $0x2f0] sm:$0xff]
  %v109 = vld [vmem:[%s0 + $0x2f8] sm:$0xff]
  %v110 = vld [vmem:[%s0 + $0x300] sm:$0xff]
  %v111 = vld [vmem:[%s0 + $0x308] sm:$0xff]
  %v112 = vld [vmem:[%s0 + $0x310] sm:$0xff]
  %v113 = vld [vmem:[%s0 + $0x318] sm:$0xff]
  %v114 = vld [vmem:[%s0 + $0x320] sm:$0xff]
  %v115 = vld [vmem:[%s0 + $0x328] sm:$0xff]
  %v116 = vld [vmem:[%s0 + $0x330] sm:$0xff]
  %v117 = vld [vmem:[%s0 + $0x338] sm:$0xff]
  %v118 = vld [vmem:[%s0 + $0x340] sm:$0xff]
  %v119 = vld [vmem:[%s0 + $0x348] sm:$0xff]
  %v120 = vld [vmem:[%s0 + $0x350] sm:$0xff]
  %v121 = vld [vmem:[%s0 + $0x358] sm:$0xff]
  %v122 = vld [vmem:[%s0 + $0x360] sm:$0xff]
  %v123 = vld [vmem:[%s0 + $0x368] sm:$0xff]
  %v124 = vld [vmem:[%s0 + $0x370] sm:$0xff]
  %v125 = vld [vmem:[%s0 + $0x378] sm:$0xff]
  %v126 = vld [vmem:[%s0 + $0x380] sm:$0xff]
  %v127 = vld [vmem:[%s0 + $0x388] sm:$0xff]
  %v128 = vld [vmem:[%s0 + $0x390] sm:$0xff]
  %v129 = vld [vmem:[%s0 + $0x398] sm:$0xff]
  %v130 = vld [vmem:[%s0 + $0x3a0] sm:$0xff]
  %v131 = vld [vmem:[%s0 + $0x3a8] sm:$0xff]
  %v132 = vld [vmem:[%s0 + $0x3b0] sm:$0xff]
  %v133 = vld [vmem:[%s0 + $0x3b8] sm:$0xff]
  %v134 = vld [vmem:[%s0 + $0x3c0] sm:$0xff]
  %v135 = vld [vmem:[%s0 + $0x3c8] sm:$0xff]
  %v136 = vld [vmem:[%s0 + $0x3d0] sm:$0xff]
  %v137 = vld [vmem:[%s0 + $0x3d8] sm:$0xff]
  %v138 = vld [vmem:[%s0 + $0x3e0] sm:$0xff]
  %v139 = vld [vmem:[%s0 + $0x3e8] sm:$0xff]
  %v140 = vld [vmem:[%s0 + $0x3f0] sm:$0xff]
  %v141 = vld [vmem:[%s0 + $0x3f8] sm:$0xff]
  %v142 = vld [vmem:[%s1] sm:$0xf]
  %v143 = vld [vmem:[%s1 + $0x4] sm:$0xf]
  %v144 = vld [vmem:[%s1 + $0x8] sm:$0xf]
  %v145 = vld [vmem:[%s1 + $0xc] sm:$0xf]
  %v146 = vld [vmem:[%s1 + $0x10] sm:$0xf]
  %v147 = vld [vmem:[%s1 + $0x14] sm:$0xf]
  %v148 = vld [vmem:[%s1 + $0x18] sm:$0xf]
  %v149 = vld [vmem:[%s1 + $0x1c] sm:$0xf]
  %v150 = vld [vmem:[%s1 + $0x20] sm:$0xf]
  %v151 = vld [vmem:[%s1 + $0x24] sm:$0xf]
  %v152 = vld [vmem:[%s1 + $0x28] sm:$0xf]
  %v153 = vld [vmem:[%s1 + $0x2c] sm:$0xf]
  %v154 = vld [vmem:[%s1 + $0x30] sm:$0xf]
  %v155 = vld [vmem:[%s1 + $0x34] sm:$0xf]
  %v156 = vld [vmem:[%s1 + $0x38] sm:$0xf]
  %v157 = vld [vmem:[%s1 + $0x3c] sm:$0xf]
  %v158 = vld [vmem:[%s1 + $0x40] sm:$0xf]
  %v159 = vld [vmem:[%s1 + $0x44] sm:$0xf]
  %v160 = vld [vmem:[%s1 + $0x48] sm:$0xf]
  %v161 = vld [vmem:[%s1 + $0x4c] sm:$0xf]
  %v162 = vld [vmem:[%s1 + $0x50] sm:$0xf]
  %v163 = vld [vmem:[%s1 + $0x54] sm:$0xf]
  %v164 = vld [vmem:[%s1 + $0x58] sm:$0xf]
  %v165 = vld [vmem:[%s1 + $0x5c] sm:$0xf]
  %v166 = vld [vmem:[%s1 + $0x60] sm:$0xf]
  %v167 = vld [vmem:[%s1 + $0x64] sm:$0xf]
  %v168 = vld [vmem:[%s1 + $0x68] sm:$0xf]
  %v169 = vld [vmem:[%s1 + $0x6c] sm:$0xf]
  %v170 = vld [vmem:[%s1 + $0x70] sm:$0xf]
  %v171 = vld [vmem:[%s1 + $0x74] sm:$0xf]
  %v172 = vld [vmem:[%s1 + $0x78] sm:$0xf]
  %v173 = vld [vmem:[%s1 + $0x7c] sm:$0xf]
  %v174 = vld [vmem:[%s1 + $0x80] sm:$0xf]
  %v175 = vld [vmem:[%s1 + $0x84] sm:$0xf]
  %v176 = vld [vmem:[%s1 + $0x88] sm:$0xf]
  %v177 = vld [vmem:[%s1 + $0x8c] sm:$0xf]
  %v178 = vld [vmem:[%s1 + $0x90] sm:$0xf]
  %v179 = vld [vmem:[%s1 + $0x94] sm:$0xf]
  %v180 = vld [vmem:[%s1 + $0x98] sm:$0xf]
  %v181 = vld [vmem:[%s1 + $0x9c] sm:$0xf]
  %v182 = vld [vmem:[%s1 + $0xa0] sm:$0xf]
  %v183 = vld [vmem:[%s1 + $0xa4] sm:$0xf]
  %v184 = vld [vmem:[%s1 + $0xa8] sm:$0xf]
  %v185 = vld [vmem:[%s1 + $0xac] sm:$0xf]
  %v186 = vld [vmem:[%s1 + $0xb0] sm:$0xf]
  %v187 = vld [vmem:[%s1 + $0xb4] sm:$0xf]
  %v188 = vld [vmem:[%s1 + $0xb8] sm:$0xf]
  %v189 = vld [vmem:[%s1 + $0xbc] sm:$0xf]
  %v190 = vld [vmem:[%s1 + $0xc0] sm:$0xf]
  %v191 = vld [vmem:[%s1 + $0xc4] sm:$0xf]
  %v192 = vld [vmem:[%s1 + $0xc8] sm:$0xf]
  %v193 = vld [vmem:[%s1 + $0xcc] sm:$0xf]
  %v194 = vld [vmem:[%s1 + $0xd0] sm:$0xf]
  %v195 = vld [vmem:[%s1 + $0xd4] sm:$0xf]
  %v196 = vld [vmem:[%s1 + $0xd8] sm:$0xf]
  %v197 = vld [vmem:[%s1 + $0xdc] sm:$0xf]
  %v198 = vld [vmem:[%s1 + $0xe0] sm:$0xf]
  %v199 = vld [vmem:[%s1 + $0xe4] sm:$0xf]
  %v200 = vld [vmem:[%s1 + $0xe8] sm:$0xf]
  %v201 = vld [vmem:[%s1 + $0xec] sm:$0xf]
  %v202 = vld [vmem:[%s1 + $0xf0] sm:$0xf]
  %v203 = vld [vmem:[%s1 + $0xf4] sm:$0xf]
  %v204 = vld [vmem:[%s1 + $0xf8] sm:$0xf]
  %v205 = vld [vmem:[%s1 + $0xfc] sm:$0xf]
  %v206 = vld [vmem:[%s2] sm:$0x1]
  %v208 = vperm.slane %v206, 0
  %v338 = vunpack.c.l.b16 %v14
  %v339 = vunpack.c.h.b16 %v14
  %v340 = vunpack.c.l.b16 %v15
  %v341 = vunpack.c.h.b16 %v15
  %v342 = vunpack.c.l.b16 %v16
  %v343 = vunpack.c.h.b16 %v16
  %v344 = vunpack.c.l.b16 %v17
  %v345 = vunpack.c.h.b16 %v17
  %v346 = vunpack.c.l.b16 %v18
  %v347 = vunpack.c.h.b16 %v18
  %v348 = vunpack.c.l.b16 %v19
  %v349 = vunpack.c.h.b16 %v19
  %v350 = vunpack.c.l.b16 %v20
  %v351 = vunpack.c.h.b16 %v20
  %v352 = vunpack.c.l.b16 %v21
  %v353 = vunpack.c.h.b16 %v21
  %v354 = vunpack.c.l.b16 %v22
  %v355 = vunpack.c.h.b16 %v22
  %v356 = vunpack.c.l.b16 %v23
  %v357 = vunpack.c.h.b16 %v23
  %v358 = vunpack.c.l.b16 %v24
  %v359 = vunpack.c.h.b16 %v24
  %v360 = vunpack.c.l.b16 %v25
  %v361 = vunpack.c.h.b16 %v25
  %v362 = vunpack.c.l.b16 %v26
  %v363 = vunpack.c.h.b16 %v26
  %v364 = vunpack.c.l.b16 %v27
  %v365 = vunpack.c.h.b16 %v27
  %v366 = vunpack.c.l.b16 %v28
  %v367 = vunpack.c.h.b16 %v28
  %v368 = vunpack.c.l.b16 %v29
  %v369 = vunpack.c.h.b16 %v29
  %v370 = vunpack.c.l.b16 %v30
  %v371 = vunpack.c.h.b16 %v30
  %v372 = vunpack.c.l.b16 %v31
  %v373 = vunpack.c.h.b16 %v31
  %v374 = vunpack.c.l.b16 %v32
  %v375 = vunpack.c.h.b16 %v32
  %v376 = vunpack.c.l.b16 %v33
  %v377 = vunpack.c.h.b16 %v33
  %v378 = vunpack.c.l.b16 %v34
  %v379 = vunpack.c.h.b16 %v34
  %v380 = vunpack.c.l.b16 %v35
  %v381 = vunpack.c.h.b16 %v35
  %v382 = vunpack.c.l.b16 %v36
  %v383 = vunpack.c.h.b16 %v36
  %v384 = vunpack.c.l.b16 %v37
  %v385 = vunpack.c.h.b16 %v37
  %v386 = vunpack.c.l.b16 %v38
  %v387 = vunpack.c.h.b16 %v38
  %v388 = vunpack.c.l.b16 %v39
  %v389 = vunpack.c.h.b16 %v39
  %v390 = vunpack.c.l.b16 %v40
  %v391 = vunpack.c.h.b16 %v40
  %v392 = vunpack.c.l.b16 %v41
  %v393 = vunpack.c.h.b16 %v41
  %v394 = vunpack.c.l.b16 %v42
  %v395 = vunpack.c.h.b16 %v42
  %v396 = vunpack.c.l.b16 %v43
  %v397 = vunpack.c.h.b16 %v43
  %v398 = vunpack.c.l.b16 %v44
  %v399 = vunpack.c.h.b16 %v44
  %v400 = vunpack.c.l.b16 %v45
  %v401 = vunpack.c.h.b16 %v45
  %v402 = vunpack.c.l.b16 %v46
  %v403 = vunpack.c.h.b16 %v46
  %v404 = vunpack.c.l.b16 %v47
  %v405 = vunpack.c.h.b16 %v47
  %v406 = vunpack.c.l.b16 %v48
  %v407 = vunpack.c.h.b16 %v48
  %v408 = vunpack.c.l.b16 %v49
  %v409 = vunpack.c.h.b16 %v49
  %v410 = vunpack.c.l.b16 %v50
  %v411 = vunpack.c.h.b16 %v50
  %v412 = vunpack.c.l.b16 %v51
  %v413 = vunpack.c.h.b16 %v51
  %v414 = vunpack.c.l.b16 %v52
  %v415 = vunpack.c.h.b16 %v52
  %v416 = vunpack.c.l.b16 %v53
  %v417 = vunpack.c.h.b16 %v53
  %v418 = vunpack.c.l.b16 %v54
  %v419 = vunpack.c.h.b16 %v54
  %v420 = vunpack.c.l.b16 %v55
  %v421 = vunpack.c.h.b16 %v55
  %v422 = vunpack.c.l.b16 %v56
  %v423 = vunpack.c.h.b16 %v56
  %v424 = vunpack.c.l.b16 %v57
  %v425 = vunpack.c.h.b16 %v57
  %v426 = vunpack.c.l.b16 %v58
  %v427 = vunpack.c.h.b16 %v58
  %v428 = vunpack.c.l.b16 %v59
  %v429 = vunpack.c.h.b16 %v59
  %v430 = vunpack.c.l.b16 %v60
  %v431 = vunpack.c.h.b16 %v60
  %v432 = vunpack.c.l.b16 %v61
  %v433 = vunpack.c.h.b16 %v61
  %v434 = vunpack.c.l.b16 %v62
  %v435 = vunpack.c.h.b16 %v62
  %v436 = vunpack.c.l.b16 %v63
  %v437 = vunpack.c.h.b16 %v63
  %v438 = vunpack.c.l.b16 %v64
  %v439 = vunpack.c.h.b16 %v64
  %v440 = vunpack.c.l.b16 %v65
  %v441 = vunpack.c.h.b16 %v65
  %v442 = vunpack.c.l.b16 %v66
  %v443 = vunpack.c.h.b16 %v66
  %v444 = vunpack.c.l.b16 %v67
  %v445 = vunpack.c.h.b16 %v67
  %v446 = vunpack.c.l.b16 %v68
  %v447 = vunpack.c.h.b16 %v68
  %v448 = vunpack.c.l.b16 %v69
  %v449 = vunpack.c.h.b16 %v69
  %v450 = vunpack.c.l.b16 %v70
  %v451 = vunpack.c.h.b16 %v70
  %v452 = vunpack.c.l.b16 %v71
  %v453 = vunpack.c.h.b16 %v71
  %v454 = vunpack.c.l.b16 %v72
  %v455 = vunpack.c.h.b16 %v72
  %v456 = vunpack.c.l.b16 %v73
  %v457 = vunpack.c.h.b16 %v73
  %v458 = vunpack.c.l.b16 %v74
  %v459 = vunpack.c.h.b16 %v74
  %v460 = vunpack.c.l.b16 %v75
  %v461 = vunpack.c.h.b16 %v75
  %v462 = vunpack.c.l.b16 %v76
  %v463 = vunpack.c.h.b16 %v76
  %v464 = vunpack.c.l.b16 %v77
  %v465 = vunpack.c.h.b16 %v77
  %v466 = vunpack.c.l.b16 %v78
  %v467 = vunpack.c.h.b16 %v78
  %v468 = vunpack.c.l.b16 %v79
  %v469 = vunpack.c.h.b16 %v79
  %v470 = vunpack.c.l.b16 %v80
  %v471 = vunpack.c.h.b16 %v80
  %v472 = vunpack.c.l.b16 %v81
  %v473 = vunpack.c.h.b16 %v81
  %v474 = vunpack.c.l.b16 %v82
  %v475 = vunpack.c.h.b16 %v82
  %v476 = vunpack.c.l.b16 %v83
  %v477 = vunpack.c.h.b16 %v83
  %v478 = vunpack.c.l.b16 %v84
  %v479 = vunpack.c.h.b16 %v84
  %v480 = vunpack.c.l.b16 %v85
  %v481 = vunpack.c.h.b16 %v85
  %v482 = vunpack.c.l.b16 %v86
  %v483 = vunpack.c.h.b16 %v86
  %v484 = vunpack.c.l.b16 %v87
  %v485 = vunpack.c.h.b16 %v87
  %v486 = vunpack.c.l.b16 %v88
  %v487 = vunpack.c.h.b16 %v88
  %v488 = vunpack.c.l.b16 %v89
  %v489 = vunpack.c.h.b16 %v89
  %v490 = vunpack.c.l.b16 %v90
  %v491 = vunpack.c.h.b16 %v90
  %v492 = vunpack.c.l.b16 %v91
  %v493 = vunpack.c.h.b16 %v91
  %v494 = vunpack.c.l.b16 %v92
  %v495 = vunpack.c.h.b16 %v92
  %v496 = vunpack.c.l.b16 %v93
  %v497 = vunpack.c.h.b16 %v93
  %v498 = vunpack.c.l.b16 %v94
  %v499 = vunpack.c.h.b16 %v94
  %v500 = vunpack.c.l.b16 %v95
  %v501 = vunpack.c.h.b16 %v95
  %v502 = vunpack.c.l.b16 %v96
  %v503 = vunpack.c.h.b16 %v96
  %v504 = vunpack.c.l.b16 %v97
  %v505 = vunpack.c.h.b16 %v97
  %v506 = vunpack.c.l.b16 %v98
  %v507 = vunpack.c.h.b16 %v98
  %v508 = vunpack.c.l.b16 %v99
  %v509 = vunpack.c.h.b16 %v99
  %v510 = vunpack.c.l.b16 %v100
  %v511 = vunpack.c.h.b16 %v100
  %v512 = vunpack.c.l.b16 %v101
  %v513 = vunpack.c.h.b16 %v101
  %v514 = vunpack.c.l.b16 %v102
  %v515 = vunpack.c.h.b16 %v102
  %v516 = vunpack.c.l.b16 %v103
  %v517 = vunpack.c.h.b16 %v103
  %v518 = vunpack.c.l.b16 %v104
  %v519 = vunpack.c.h.b16 %v104
  %v520 = vunpack.c.l.b16 %v105
  %v521 = vunpack.c.h.b16 %v105
  %v522 = vunpack.c.l.b16 %v106
  %v523 = vunpack.c.h.b16 %v106
  %v524 = vunpack.c.l.b16 %v107
  %v525 = vunpack.c.h.b16 %v107
  %v526 = vunpack.c.l.b16 %v108
  %v527 = vunpack.c.h.b16 %v108
  %v528 = vunpack.c.l.b16 %v109
  %v529 = vunpack.c.h.b16 %v109
  %v530 = vunpack.c.l.b16 %v110
  %v531 = vunpack.c.h.b16 %v110
  %v532 = vunpack.c.l.b16 %v111
  %v533 = vunpack.c.h.b16 %v111
  %v534 = vunpack.c.l.b16 %v112
  %v535 = vunpack.c.h.b16 %v112
  %v536 = vunpack.c.l.b16 %v113
  %v537 = vunpack.c.h.b16 %v113
  %v538 = vunpack.c.l.b16 %v114
  %v539 = vunpack.c.h.b16 %v114
  %v540 = vunpack.c.l.b16 %v115
  %v541 = vunpack.c.h.b16 %v115
  %v542 = vunpack.c.l.b16 %v116
  %v543 = vunpack.c.h.b16 %v116
  %v544 = vunpack.c.l.b16 %v117
  %v545 = vunpack.c.h.b16 %v117
  %v546 = vunpack.c.l.b16 %v118
  %v547 = vunpack.c.h.b16 %v118
  %v548 = vunpack.c.l.b16 %v119
  %v549 = vunpack.c.h.b16 %v119
  %v550 = vunpack.c.l.b16 %v120
  %v551 = vunpack.c.h.b16 %v120
  %v552 = vunpack.c.l.b16 %v121
  %v553 = vunpack.c.h.b16 %v121
  %v554 = vunpack.c.l.b16 %v122
  %v555 = vunpack.c.h.b16 %v122
  %v556 = vunpack.c.l.b16 %v123
  %v557 = vunpack.c.h.b16 %v123
  %v558 = vunpack.c.l.b16 %v124
  %v559 = vunpack.c.h.b16 %v124
  %v560 = vunpack.c.l.b16 %v125
  %v561 = vunpack.c.h.b16 %v125
  %v562 = vunpack.c.l.b16 %v126
  %v563 = vunpack.c.h.b16 %v126
  %v564 = vunpack.c.l.b16 %v127
  %v565 = vunpack.c.h.b16 %v127
  %v566 = vunpack.c.l.b16 %v128
  %v567 = vunpack.c.h.b16 %v128
  %v568 = vunpack.c.l.b16 %v129
  %v569 = vunpack.c.h.b16 %v129
  %v570 = vunpack.c.l.b16 %v130
  %v571 = vunpack.c.h.b16 %v130
  %v572 = vunpack.c.l.b16 %v131
  %v573 = vunpack.c.h.b16 %v131
  %v574 = vunpack.c.l.b16 %v132
  %v575 = vunpack.c.h.b16 %v132
  %v576 = vunpack.c.l.b16 %v133
  %v577 = vunpack.c.h.b16 %v133
  %v578 = vunpack.c.l.b16 %v134
  %v579 = vunpack.c.h.b16 %v134
  %v580 = vunpack.c.l.b16 %v135
  %v581 = vunpack.c.h.b16 %v135
  %v582 = vunpack.c.l.b16 %v136
  %v583 = vunpack.c.h.b16 %v136
  %v584 = vunpack.c.l.b16 %v137
  %v585 = vunpack.c.h.b16 %v137
  %v586 = vunpack.c.l.b16 %v138
  %v587 = vunpack.c.h.b16 %v138
  %v588 = vunpack.c.l.b16 %v139
  %v589 = vunpack.c.h.b16 %v139
  %v590 = vunpack.c.l.b16 %v140
  %v591 = vunpack.c.h.b16 %v140
  %v592 = vunpack.c.l.b16 %v141
  %v593 = vunpack.c.h.b16 %v141
  %v594 = vpack.c.b16 %v342, %v338
  %v595 = vpack.c.b16 %v343, %v339
  %v596 = vpack.c.b16 %v344, %v340
  %v597 = vpack.c.b16 %v345, %v341
  %v598 = vpack.c.b16 %v350, %v346
  %v599 = vpack.c.b16 %v351, %v347
  %v600 = vpack.c.b16 %v352, %v348
  %v601 = vpack.c.b16 %v353, %v349
  %v602 = vpack.c.b16 %v358, %v354
  %v603 = vpack.c.b16 %v359, %v355
  %v604 = vpack.c.b16 %v360, %v356
  %v605 = vpack.c.b16 %v361, %v357
  %v606 = vpack.c.b16 %v366, %v362
  %v607 = vpack.c.b16 %v367, %v363
  %v608 = vpack.c.b16 %v368, %v364
  %v609 = vpack.c.b16 %v369, %v365
  %v610 = vpack.c.b16 %v374, %v370
  %v611 = vpack.c.b16 %v375, %v371
  %v612 = vpack.c.b16 %v376, %v372
  %v613 = vpack.c.b16 %v377, %v373
  %v614 = vpack.c.b16 %v382, %v378
  %v615 = vpack.c.b16 %v383, %v379
  %v616 = vpack.c.b16 %v384, %v380
  %v617 = vpack.c.b16 %v385, %v381
  %v618 = vpack.c.b16 %v390, %v386
  %v619 = vpack.c.b16 %v391, %v387
  %v620 = vpack.c.b16 %v392, %v388
  %v621 = vpack.c.b16 %v393, %v389
  %v622 = vpack.c.b16 %v398, %v394
  %v623 = vpack.c.b16 %v399, %v395
  %v624 = vpack.c.b16 %v400, %v396
  %v625 = vpack.c.b16 %v401, %v397
  %v626 = vpack.c.b16 %v406, %v402
  %v627 = vpack.c.b16 %v407, %v403
  %v628 = vpack.c.b16 %v408, %v404
  %v629 = vpack.c.b16 %v409, %v405
  %v630 = vpack.c.b16 %v414, %v410
  %v631 = vpack.c.b16 %v415, %v411
  %v632 = vpack.c.b16 %v416, %v412
  %v633 = vpack.c.b16 %v417, %v413
  %v634 = vpack.c.b16 %v422, %v418
  %v635 = vpack.c.b16 %v423, %v419
  %v636 = vpack.c.b16 %v424, %v420
  %v637 = vpack.c.b16 %v425, %v421
  %v638 = vpack.c.b16 %v430, %v426
  %v639 = vpack.c.b16 %v431, %v427
  %v640 = vpack.c.b16 %v432, %v428
  %v641 = vpack.c.b16 %v433, %v429
  %v642 = vpack.c.b16 %v438, %v434
  %v643 = vpack.c.b16 %v439, %v435
  %v644 = vpack.c.b16 %v440, %v436
  %v645 = vpack.c.b16 %v441, %v437
  %v646 = vpack.c.b16 %v446, %v442
  %v647 = vpack.c.b16 %v447, %v443
  %v648 = vpack.c.b16 %v448, %v444
  %v649 = vpack.c.b16 %v449, %v445
  %v650 = vpack.c.b16 %v454, %v450
  %v651 = vpack.c.b16 %v455, %v451
  %v652 = vpack.c.b16 %v456, %v452
  %v653 = vpack.c.b16 %v457, %v453
  %v654 = vpack.c.b16 %v462, %v458
  %v655 = vpack.c.b16 %v463, %v459
  %v656 = vpack.c.b16 %v464, %v460
  %v657 = vpack.c.b16 %v465, %v461
  %v658 = vpack.c.b16 %v470, %v466
  %v659 = vpack.c.b16 %v471, %v467
  %v660 = vpack.c.b16 %v472, %v468
  %v661 = vpack.c.b16 %v473, %v469
  %v662 = vpack.c.b16 %v478, %v474
  %v663 = vpack.c.b16 %v479, %v475
  %v664 = vpack.c.b16 %v480, %v476
  %v665 = vpack.c.b16 %v481, %v477
  %v666 = vpack.c.b16 %v486, %v482
  %v667 = vpack.c.b16 %v487, %v483
  %v668 = vpack.c.b16 %v488, %v484
  %v669 = vpack.c.b16 %v489, %v485
  %v670 = vpack.c.b16 %v494, %v490
  %v671 = vpack.c.b16 %v495, %v491
  %v672 = vpack.c.b16 %v496, %v492
  %v673 = vpack.c.b16 %v497, %v493
  %v674 = vpack.c.b16 %v502, %v498
  %v675 = vpack.c.b16 %v503, %v499
  %v676 = vpack.c.b16 %v504, %v500
  %v677 = vpack.c.b16 %v505, %v501
  %v678 = vpack.c.b16 %v510, %v506
  %v679 = vpack.c.b16 %v511, %v507
  %v680 = vpack.c.b16 %v512, %v508
  %v681 = vpack.c.b16 %v513, %v509
  %v682 = vpack.c.b16 %v518, %v514
  %v683 = vpack.c.b16 %v519, %v515
  %v684 = vpack.c.b16 %v520, %v516
  %v685 = vpack.c.b16 %v521, %v517
  %v686 = vpack.c.b16 %v526, %v522
  %v687 = vpack.c.b16 %v527, %v523
  %v688 = vpack.c.b16 %v528, %v524
  %v689 = vpack.c.b16 %v529, %v525
  %v690 = vpack.c.b16 %v534, %v530
  %v691 = vpack.c.b16 %v535, %v531
  %v692 = vpack.c.b16 %v536, %v532
  %v693 = vpack.c.b16 %v537, %v533
  %v694 = vpack.c.b16 %v542, %v538
  %v695 = vpack.c.b16 %v543, %v539
  %v696 = vpack.c.b16 %v544, %v540
  %v697 = vpack.c.b16 %v545, %v541
  %v698 = vpack.c.b16 %v550, %v546
  %v699 = vpack.c.b16 %v551, %v547
  %v700 = vpack.c.b16 %v552, %v548
  %v701 = vpack.c.b16 %v553, %v549
  %v702 = vpack.c.b16 %v558, %v554
  %v703 = vpack.c.b16 %v559, %v555
  %v704 = vpack.c.b16 %v560, %v556
  %v705 = vpack.c.b16 %v561, %v557
  %v706 = vpack.c.b16 %v566, %v562
  %v707 = vpack.c.b16 %v567, %v563
  %v708 = vpack.c.b16 %v568, %v564
  %v709 = vpack.c.b16 %v569, %v565
  %v710 = vpack.c.b16 %v574, %v570
  %v711 = vpack.c.b16 %v575, %v571
  %v712 = vpack.c.b16 %v576, %v572
  %v713 = vpack.c.b16 %v577, %v573
  %v714 = vpack.c.b16 %v582, %v578
  %v715 = vpack.c.b16 %v583, %v579
  %v716 = vpack.c.b16 %v584, %v580
  %v717 = vpack.c.b16 %v585, %v581
  %v718 = vpack.c.b16 %v590, %v586
  %v719 = vpack.c.b16 %v591, %v587
  %v720 = vpack.c.b16 %v592, %v588
  %v721 = vpack.c.b16 %v593, %v589
  %v914 = vunpack.c.l.b16 %v142
  %v915 = vunpack.c.l.b16 %v143
  %v916 = vunpack.c.l.b16 %v144
  %v917 = vunpack.c.l.b16 %v145
  %v918 = vunpack.c.l.b16 %v146
  %v919 = vunpack.c.l.b16 %v147
  %v920 = vunpack.c.l.b16 %v148
  %v921 = vunpack.c.l.b16 %v149
  %v922 = vunpack.c.l.b16 %v150
  %v923 = vunpack.c.l.b16 %v151
  %v924 = vunpack.c.l.b16 %v152
  %v925 = vunpack.c.l.b16 %v153
  %v926 = vunpack.c.l.b16 %v154
  %v927 = vunpack.c.l.b16 %v155
  %v928 = vunpack.c.l.b16 %v156
  %v929 = vunpack.c.l.b16 %v157
  %v930 = vunpack.c.l.b16 %v158
  %v931 = vunpack.c.l.b16 %v159
  %v932 = vunpack.c.l.b16 %v160
  %v933 = vunpack.c.l.b16 %v161
  %v934 = vunpack.c.l.b16 %v162
  %v935 = vunpack.c.l.b16 %v163
  %v936 = vunpack.c.l.b16 %v164
  %v937 = vunpack.c.l.b16 %v165
  %v938 = vunpack.c.l.b16 %v166
  %v939 = vunpack.c.l.b16 %v167
  %v940 = vunpack.c.l.b16 %v168
  %v941 = vunpack.c.l.b16 %v169
  %v942 = vunpack.c.l.b16 %v170
  %v943 = vunpack.c.l.b16 %v171
  %v944 = vunpack.c.l.b16 %v172
  %v945 = vunpack.c.l.b16 %v173
  %v946 = vunpack.c.l.b16 %v174
  %v947 = vunpack.c.l.b16 %v175
  %v948 = vunpack.c.l.b16 %v176
  %v949 = vunpack.c.l.b16 %v177
  %v950 = vunpack.c.l.b16 %v178
  %v951 = vunpack.c.l.b16 %v179
  %v952 = vunpack.c.l.b16 %v180
  %v953 = vunpack.c.l.b16 %v181
  %v954 = vunpack.c.l.b16 %v182
  %v955 = vunpack.c.l.b16 %v183
  %v956 = vunpack.c.l.b16 %v184
  %v957 = vunpack.c.l.b16 %v185
  %v958 = vunpack.c.l.b16 %v186
  %v959 = vunpack.c.l.b16 %v187
  %v960 = vunpack.c.l.b16 %v188
  %v961 = vunpack.c.l.b16 %v189
  %v962 = vunpack.c.l.b16 %v190
  %v963 = vunpack.c.l.b16 %v191
  %v964 = vunpack.c.l.b16 %v192
  %v965 = vunpack.c.l.b16 %v193
  %v966 = vunpack.c.l.b16 %v194
  %v967 = vunpack.c.l.b16 %v195
  %v968 = vunpack.c.l.b16 %v196
  %v969 = vunpack.c.l.b16 %v197
  %v970 = vunpack.c.l.b16 %v198
  %v971 = vunpack.c.l.b16 %v199
  %v972 = vunpack.c.l.b16 %v200
  %v973 = vunpack.c.l.b16 %v201
  %v974 = vunpack.c.l.b16 %v202
  %v975 = vunpack.c.l.b16 %v203
  %v976 = vunpack.c.l.b16 %v204
  %v977 = vunpack.c.l.b16 %v205
  %v978 = vpack.c.b16 %v915, %v914
  %v979 = vpack.c.b16 %v917, %v916
  %v980 = vpack.c.b16 %v919, %v918
  %v981 = vpack.c.b16 %v921, %v920
  %v982 = vpack.c.b16 %v923, %v922
  %v983 = vpack.c.b16 %v925, %v924
  %v984 = vpack.c.b16 %v927, %v926
  %v985 = vpack.c.b16 %v929, %v928
  %v986 = vpack.c.b16 %v931, %v930
  %v987 = vpack.c.b16 %v933, %v932
  %v988 = vpack.c.b16 %v935, %v934
  %v989 = vpack.c.b16 %v937, %v936
  %v990 = vpack.c.b16 %v939, %v938
  %v991 = vpack.c.b16 %v941, %v940
  %v992 = vpack.c.b16 %v943, %v942
  %v993 = vpack.c.b16 %v945, %v944
  %v994 = vpack.c.b16 %v947, %v946
  %v995 = vpack.c.b16 %v949, %v948
  %v996 = vpack.c.b16 %v951, %v950
  %v997 = vpack.c.b16 %v953, %v952
  %v998 = vpack.c.b16 %v955, %v954
  %v999 = vpack.c.b16 %v957, %v956
  %v1000 = vpack.c.b16 %v959, %v958
  %v1001 = vpack.c.b16 %v961, %v960
  %v1002 = vpack.c.b16 %v963, %v962
  %v1003 = vpack.c.b16 %v965, %v964
  %v1004 = vpack.c.b16 %v967, %v966
  %v1005 = vpack.c.b16 %v969, %v968
  %v1006 = vpack.c.b16 %v971, %v970
  %v1007 = vpack.c.b16 %v973, %v972
  %v1008 = vpack.c.b16 %v975, %v974
  %v1009 = vpack.c.b16 %v977, %v976
  %1042 = vmatpush.bf16.msra.mxu0 %v985
  %1043 = vmatpush.bf16.msra.mxu0 %v984
  %1044 = vmatpush.bf16.msra.mxu0 %v983
  %1045 = vmatpush.bf16.msra.mxu0 %v982
  %1046 = vmatpush.bf16.msra.mxu0 %v981
  %1047 = vmatpush.bf16.msra.mxu0 %v980
  %1048 = vmatpush.bf16.msra.mxu0 %v979
  %1049 = vmatpush.bf16.msra.mxu0 %v978
  %1050 = vmatmul.bf16.gmra.mxu0 %v594
  %v1051 = vpop.f32.mrf.mxu0
  %v1052 = vadd.f32 %v208, %v1051
  %v1053 = vpop.f32.mrf.mxu0
  %v1054 = vadd.f32 %v208, %v1053
  %1055 = vmatmul.bf16.gmra.mxu0 %v598
  %v1056 = vpop.f32.mrf.mxu0
  %v1057 = vadd.f32 %v208, %v1056
  %v1058 = vpop.f32.mrf.mxu0
  %v1059 = vadd.f32 %v208, %v1058
  %1060 = vmatmul.bf16.gmra.mxu0 %v602
  %v1061 = vpop.f32.mrf.mxu0
  %v1062 = vadd.f32 %v208, %v1061
  %v1063 = vpop.f32.mrf.mxu0
  %v1064 = vadd.f32 %v208, %v1063
  %1065 = vmatmul.bf16.gmra.mxu0 %v606
  %v1066 = vpop.f32.mrf.mxu0
  %v1067 = vadd.f32 %v208, %v1066
  %v1068 = vpop.f32.mrf.mxu0
  %v1069 = vadd.f32 %v208, %v1068
  %1070 = vmatmul.bf16.gmra.mxu0 %v610
  %v1071 = vpop.f32.mrf.mxu0
  %v1072 = vadd.f32 %v208, %v1071
  %v1073 = vpop.f32.mrf.mxu0
  %v1074 = vadd.f32 %v208, %v1073
  %1075 = vmatmul.bf16.gmra.mxu0 %v614
  %v1076 = vpop.f32.mrf.mxu0
  %v1077 = vadd.f32 %v208, %v1076
  %v1078 = vpop.f32.mrf.mxu0
  %v1079 = vadd.f32 %v208, %v1078
  %1080 = vmatmul.bf16.gmra.mxu0 %v618
  %v1081 = vpop.f32.mrf.mxu0
  %v1082 = vadd.f32 %v208, %v1081
  %v1083 = vpop.f32.mrf.mxu0
  %v1084 = vadd.f32 %v208, %v1083
  %1085 = vmatmul.bf16.gmra.mxu0 %v622
  %v1086 = vpop.f32.mrf.mxu0
  %v1087 = vadd.f32 %v208, %v1086
  %v1088 = vpop.f32.mrf.mxu0
  %v1089 = vadd.f32 %v208, %v1088
  %1090 = vmatmul.bf16.gmra.mxu0 %v626
  %v1091 = vpop.f32.mrf.mxu0
  %v1092 = vadd.f32 %v208, %v1091
  %v1093 = vpop.f32.mrf.mxu0
  %v1094 = vadd.f32 %v208, %v1093
  %1095 = vmatmul.bf16.gmra.mxu0 %v630
  %v1096 = vpop.f32.mrf.mxu0
  %v1097 = vadd.f32 %v208, %v1096
  %v1098 = vpop.f32.mrf.mxu0
  %v1099 = vadd.f32 %v208, %v1098
  %1100 = vmatmul.bf16.gmra.mxu0 %v634
  %v1101 = vpop.f32.mrf.mxu0
  %v1102 = vadd.f32 %v208, %v1101
  %v1103 = vpop.f32.mrf.mxu0
  %v1104 = vadd.f32 %v208, %v1103
  %1105 = vmatmul.bf16.gmra.mxu0 %v638
  %v1106 = vpop.f32.mrf.mxu0
  %v1107 = vadd.f32 %v208, %v1106
  %v1108 = vpop.f32.mrf.mxu0
  %v1109 = vadd.f32 %v208, %v1108
  %1110 = vmatmul.bf16.gmra.mxu0 %v642
  %v1111 = vpop.f32.mrf.mxu0
  %v1112 = vadd.f32 %v208, %v1111
  %v1113 = vpop.f32.mrf.mxu0
  %v1114 = vadd.f32 %v208, %v1113
  %1115 = vmatmul.bf16.gmra.mxu0 %v646
  %v1116 = vpop.f32.mrf.mxu0
  %v1117 = vadd.f32 %v208, %v1116
  %v1118 = vpop.f32.mrf.mxu0
  %v1119 = vadd.f32 %v208, %v1118
  %1120 = vmatmul.bf16.gmra.mxu0 %v650
  %v1121 = vpop.f32.mrf.mxu0
  %v1122 = vadd.f32 %v208, %v1121
  %v1123 = vpop.f32.mrf.mxu0
  %v1124 = vadd.f32 %v208, %v1123
  %1125 = vmatmul.bf16.gmra.mxu0 %v654
  %v1126 = vpop.f32.mrf.mxu0
  %v1127 = vadd.f32 %v208, %v1126
  %v1128 = vpop.f32.mrf.mxu0
  %v1129 = vadd.f32 %v208, %v1128
  %1130 = vmatmul.bf16.gmra.mxu0 %v658
  %v1131 = vpop.f32.mrf.mxu0
  %v1132 = vadd.f32 %v208, %v1131
  %v1133 = vpop.f32.mrf.mxu0
  %v1134 = vadd.f32 %v208, %v1133
  %1135 = vmatmul.bf16.gmra.mxu0 %v662
  %v1136 = vpop.f32.mrf.mxu0
  %v1137 = vadd.f32 %v208, %v1136
  %v1138 = vpop.f32.mrf.mxu0
  %v1139 = vadd.f32 %v208, %v1138
  %1140 = vmatmul.bf16.gmra.mxu0 %v666
  %v1141 = vpop.f32.mrf.mxu0
  %v1142 = vadd.f32 %v208, %v1141
  %v1143 = vpop.f32.mrf.mxu0
  %v1144 = vadd.f32 %v208, %v1143
  %1145 = vmatmul.bf16.gmra.mxu0 %v670
  %v1146 = vpop.f32.mrf.mxu0
  %v1147 = vadd.f32 %v208, %v1146
  %v1148 = vpop.f32.mrf.mxu0
  %v1149 = vadd.f32 %v208, %v1148
  %1150 = vmatmul.bf16.gmra.mxu0 %v674
  %v1151 = vpop.f32.mrf.mxu0
  %v1152 = vadd.f32 %v208, %v1151
  %v1153 = vpop.f32.mrf.mxu0
  %v1154 = vadd.f32 %v208, %v1153
  %1155 = vmatmul.bf16.gmra.mxu0 %v678
  %v1156 = vpop.f32.mrf.mxu0
  %v1157 = vadd.f32 %v208, %v1156
  %v1158 = vpop.f32.mrf.mxu0
  %v1159 = vadd.f32 %v208, %v1158
  %1160 = vmatmul.bf16.gmra.mxu0 %v682
  %v1161 = vpop.f32.mrf.mxu0
  %v1162 = vadd.f32 %v208, %v1161
  %v1163 = vpop.f32.mrf.mxu0
  %v1164 = vadd.f32 %v208, %v1163
  %1165 = vmatmul.bf16.gmra.mxu0 %v686
  %v1166 = vpop.f32.mrf.mxu0
  %v1167 = vadd.f32 %v208, %v1166
  %v1168 = vpop.f32.mrf.mxu0
  %v1169 = vadd.f32 %v208, %v1168
  %1170 = vmatmul.bf16.gmra.mxu0 %v690
  %v1171 = vpop.f32.mrf.mxu0
  %v1172 = vadd.f32 %v208, %v1171
  %v1173 = vpop.f32.mrf.mxu0
  %v1174 = vadd.f32 %v208, %v1173
  %1175 = vmatmul.bf16.gmra.mxu0 %v694
  %v1176 = vpop.f32.mrf.mxu0
  %v1177 = vadd.f32 %v208, %v1176
  %v1178 = vpop.f32.mrf.mxu0
  %v1179 = vadd.f32 %v208, %v1178
  %1180 = vmatmul.bf16.gmra.mxu0 %v698
  %v1181 = vpop.f32.mrf.mxu0
  %v1182 = vadd.f32 %v208, %v1181
  %v1183 = vpop.f32.mrf.mxu0
  %v1184 = vadd.f32 %v208, %v1183
  %1185 = vmatmul.bf16.gmra.mxu0 %v702
  %v1186 = vpop.f32.mrf.mxu0
  %v1187 = vadd.f32 %v208, %v1186
  %v1188 = vpop.f32.mrf.mxu0
  %v1189 = vadd.f32 %v208, %v1188
  %1190 = vmatmul.bf16.gmra.mxu0 %v706
  %v1191 = vpop.f32.mrf.mxu0
  %v1192 = vadd.f32 %v208, %v1191
  %v1193 = vpop.f32.mrf.mxu0
  %v1194 = vadd.f32 %v208, %v1193
  %1195 = vmatmul.bf16.gmra.mxu0 %v710
  %v1196 = vpop.f32.mrf.mxu0
  %v1197 = vadd.f32 %v208, %v1196
  %v1198 = vpop.f32.mrf.mxu0
  %v1199 = vadd.f32 %v208, %v1198
  %1200 = vmatmul.bf16.gmra.mxu0 %v714
  %v1201 = vpop.f32.mrf.mxu0
  %v1202 = vadd.f32 %v208, %v1201
  %v1203 = vpop.f32.mrf.mxu0
  %v1204 = vadd.f32 %v208, %v1203
  %1205 = vmatmul.bf16.gmra.mxu0 %v718
  %v1206 = vpop.f32.mrf.mxu0
  %v1207 = vadd.f32 %v208, %v1206
  %v1208 = vpop.f32.mrf.mxu0
  %v1209 = vadd.f32 %v208, %v1208
  %1210 = vdwg.mxu0
  %1211 = vmatpush.bf16.msra.mxu0 %v993
  %1212 = vmatpush.bf16.msra.mxu0 %v992
  %1213 = vmatpush.bf16.msra.mxu0 %v991
  %1214 = vmatpush.bf16.msra.mxu0 %v990
  %1215 = vmatpush.bf16.msra.mxu0 %v989
  %1216 = vmatpush.bf16.msra.mxu0 %v988
  %1217 = vmatpush.bf16.msra.mxu0 %v987
  %1218 = vmatpush.bf16.msra.mxu0 %v986
  %1219 = vmatmul.bf16.gmra.mxu0 %v595
  %v1220 = vpop.f32.mrf.mxu0
  %v1221 = vadd.f32 %v1052, %v1220
  %v1222 = vpop.f32.mrf.mxu0
  %v1223 = vadd.f32 %v1054, %v1222
  %1224 = vmatmul.bf16.gmra.mxu0 %v599
  %v1225 = vpop.f32.mrf.mxu0
  %v1226 = vadd.f32 %v1057, %v1225
  %v1227 = vpop.f32.mrf.mxu0
  %v1228 = vadd.f32 %v1059, %v1227
  %1229 = vmatmul.bf16.gmra.mxu0 %v603
  %v1230 = vpop.f32.mrf.mxu0
  %v1231 = vadd.f32 %v1062, %v1230
  %v1232 = vpop.f32.mrf.mxu0
  %v1233 = vadd.f32 %v1064, %v1232
  %1234 = vmatmul.bf16.gmra.mxu0 %v607
  %v1235 = vpop.f32.mrf.mxu0
  %v1236 = vadd.f32 %v1067, %v1235
  %v1237 = vpop.f32.mrf.mxu0
  %v1238 = vadd.f32 %v1069, %v1237
  %1239 = vmatmul.bf16.gmra.mxu0 %v611
  %v1240 = vpop.f32.mrf.mxu0
  %v1241 = vadd.f32 %v1072, %v1240
  %v1242 = vpop.f32.mrf.mxu0
  %v1243 = vadd.f32 %v1074, %v1242
  %1244 = vmatmul.bf16.gmra.mxu0 %v615
  %v1245 = vpop.f32.mrf.mxu0
  %v1246 = vadd.f32 %v1077, %v1245
  %v1247 = vpop.f32.mrf.mxu0
  %v1248 = vadd.f32 %v1079, %v1247
  %1249 = vmatmul.bf16.gmra.mxu0 %v619
  %v1250 = vpop.f32.mrf.mxu0
  %v1251 = vadd.f32 %v1082, %v1250
  %v1252 = vpop.f32.mrf.mxu0
  %v1253 = vadd.f32 %v1084, %v1252
  %1254 = vmatmul.bf16.gmra.mxu0 %v623
  %v1255 = vpop.f32.mrf.mxu0
  %v1256 = vadd.f32 %v1087, %v1255
  %v1257 = vpop.f32.mrf.mxu0
  %v1258 = vadd.f32 %v1089, %v1257
  %1259 = vmatmul.bf16.gmra.mxu0 %v627
  %v1260 = vpop.f32.mrf.mxu0
  %v1261 = vadd.f32 %v1092, %v1260
  %v1262 = vpop.f32.mrf.mxu0
  %v1263 = vadd.f32 %v1094, %v1262
  %1264 = vmatmul.bf16.gmra.mxu0 %v631
  %v1265 = vpop.f32.mrf.mxu0
  %v1266 = vadd.f32 %v1097, %v1265
  %v1267 = vpop.f32.mrf.mxu0
  %v1268 = vadd.f32 %v1099, %v1267
  %1269 = vmatmul.bf16.gmra.mxu0 %v635
  %v1270 = vpop.f32.mrf.mxu0
  %v1271 = vadd.f32 %v1102, %v1270
  %v1272 = vpop.f32.mrf.mxu0
  %v1273 = vadd.f32 %v1104, %v1272
  %1274 = vmatmul.bf16.gmra.mxu0 %v639
  %v1275 = vpop.f32.mrf.mxu0
  %v1276 = vadd.f32 %v1107, %v1275
  %v1277 = vpop.f32.mrf.mxu0
  %v1278 = vadd.f32 %v1109, %v1277
  %1279 = vmatmul.bf16.gmra.mxu0 %v643
  %v1280 = vpop.f32.mrf.mxu0
  %v1281 = vadd.f32 %v1112, %v1280
  %v1282 = vpop.f32.mrf.mxu0
  %v1283 = vadd.f32 %v1114, %v1282
  %1284 = vmatmul.bf16.gmra.mxu0 %v647
  %v1285 = vpop.f32.mrf.mxu0
  %v1286 = vadd.f32 %v1117, %v1285
  %v1287 = vpop.f32.mrf.mxu0
  %v1288 = vadd.f32 %v1119, %v1287
  %1289 = vmatmul.bf16.gmra.mxu0 %v651
  %v1290 = vpop.f32.mrf.mxu0
  %v1291 = vadd.f32 %v1122, %v1290
  %v1292 = vpop.f32.mrf.mxu0
  %v1293 = vadd.f32 %v1124, %v1292
  %1294 = vmatmul.bf16.gmra.mxu0 %v655
  %v1295 = vpop.f32.mrf.mxu0
  %v1296 = vadd.f32 %v1127, %v1295
  %v1297 = vpop.f32.mrf.mxu0
  %v1298 = vadd.f32 %v1129, %v1297
  %1299 = vmatmul.bf16.gmra.mxu0 %v659
  %v1300 = vpop.f32.mrf.mxu0
  %v1301 = vadd.f32 %v1132, %v1300
  %v1302 = vpop.f32.mrf.mxu0
  %v1303 = vadd.f32 %v1134, %v1302
  %1304 = vmatmul.bf16.gmra.mxu0 %v663
  %v1305 = vpop.f32.mrf.mxu0
  %v1306 = vadd.f32 %v1137, %v1305
  %v1307 = vpop.f32.mrf.mxu0
  %v1308 = vadd.f32 %v1139, %v1307
  %1309 = vmatmul.bf16.gmra.mxu0 %v667
  %v1310 = vpop.f32.mrf.mxu0
  %v1311 = vadd.f32 %v1142, %v1310
  %v1312 = vpop.f32.mrf.mxu0
  %v1313 = vadd.f32 %v1144, %v1312
  %1314 = vmatmul.bf16.gmra.mxu0 %v671
  %v1315 = vpop.f32.mrf.mxu0
  %v1316 = vadd.f32 %v1147, %v1315
  %v1317 = vpop.f32.mrf.mxu0
  %v1318 = vadd.f32 %v1149, %v1317
  %1319 = vmatmul.bf16.gmra.mxu0 %v675
  %v1320 = vpop.f32.mrf.mxu0
  %v1321 = vadd.f32 %v1152, %v1320
  %v1322 = vpop.f32.mrf.mxu0
  %v1323 = vadd.f32 %v1154, %v1322
  %1324 = vmatmul.bf16.gmra.mxu0 %v679
  %v1325 = vpop.f32.mrf.mxu0
  %v1326 = vadd.f32 %v1157, %v1325
  %v1327 = vpop.f32.mrf.mxu0
  %v1328 = vadd.f32 %v1159, %v1327
  %1329 = vmatmul.bf16.gmra.mxu0 %v683
  %v1330 = vpop.f32.mrf.mxu0
  %v1331 = vadd.f32 %v1162, %v1330
  %v1332 = vpop.f32.mrf.mxu0
  %v1333 = vadd.f32 %v1164, %v1332
  %1334 = vmatmul.bf16.gmra.mxu0 %v687
  %v1335 = vpop.f32.mrf.mxu0
  %v1336 = vadd.f32 %v1167, %v1335
  %v1337 = vpop.f32.mrf.mxu0
  %v1338 = vadd.f32 %v1169, %v1337
  %1339 = vmatmul.bf16.gmra.mxu0 %v691
  %v1340 = vpop.f32.mrf.mxu0
  %v1341 = vadd.f32 %v1172, %v1340
  %v1342 = vpop.f32.mrf.mxu0
  %v1343 = vadd.f32 %v1174, %v1342
  %1344 = vmatmul.bf16.gmra.mxu0 %v695
  %v1345 = vpop.f32.mrf.mxu0
  %v1346 = vadd.f32 %v1177, %v1345
  %v1347 = vpop.f32.mrf.mxu0
  %v1348 = vadd.f32 %v1179, %v1347
  %1349 = vmatmul.bf16.gmra.mxu0 %v699
  %v1350 = vpop.f32.mrf.mxu0
  %v1351 = vadd.f32 %v1182, %v1350
  %v1352 = vpop.f32.mrf.mxu0
  %v1353 = vadd.f32 %v1184, %v1352
  %1354 = vmatmul.bf16.gmra.mxu0 %v703
  %v1355 = vpop.f32.mrf.mxu0
  %v1356 = vadd.f32 %v1187, %v1355
  %v1357 = vpop.f32.mrf.mxu0
  %v1358 = vadd.f32 %v1189, %v1357
  %1359 = vmatmul.bf16.gmra.mxu0 %v707
  %v1360 = vpop.f32.mrf.mxu0
  %v1361 = vadd.f32 %v1192, %v1360
  %v1362 = vpop.f32.mrf.mxu0
  %v1363 = vadd.f32 %v1194, %v1362
  %1364 = vmatmul.bf16.gmra.mxu0 %v711
  %v1365 = vpop.f32.mrf.mxu0
  %v1366 = vadd.f32 %v1197, %v1365
  %v1367 = vpop.f32.mrf.mxu0
  %v1368 = vadd.f32 %v1199, %v1367
  %1369 = vmatmul.bf16.gmra.mxu0 %v715
  %v1370 = vpop.f32.mrf.mxu0
  %v1371 = vadd.f32 %v1202, %v1370
  %v1372 = vpop.f32.mrf.mxu0
  %v1373 = vadd.f32 %v1204, %v1372
  %1374 = vmatmul.bf16.gmra.mxu0 %v719
  %v1375 = vpop.f32.mrf.mxu0
  %v1376 = vadd.f32 %v1207, %v1375
  %v1377 = vpop.f32.mrf.mxu0
  %v1378 = vadd.f32 %v1209, %v1377
  %1379 = vdwg.mxu0
  %1380 = vmatpush.bf16.msra.mxu0 %v1001
  %1381 = vmatpush.bf16.msra.mxu0 %v1000
  %1382 = vmatpush.bf16.msra.mxu0 %v999
  %1383 = vmatpush.bf16.msra.mxu0 %v998
  %1384 = vmatpush.bf16.msra.mxu0 %v997
  %1385 = vmatpush.bf16.msra.mxu0 %v996
  %1386 = vmatpush.bf16.msra.mxu0 %v995
  %1387 = vmatpush.bf16.msra.mxu0 %v994
  %1388 = vmatmul.bf16.gmra.mxu0 %v596
  %v1389 = vpop.f32.mrf.mxu0
  %v1390 = vadd.f32 %v1221, %v1389
  %v1391 = vpop.f32.mrf.mxu0
  %v1392 = vadd.f32 %v1223, %v1391
  %1393 = vmatmul.bf16.gmra.mxu0 %v600
  %v1394 = vpop.f32.mrf.mxu0
  %v1395 = vadd.f32 %v1226, %v1394
  %v1396 = vpop.f32.mrf.mxu0
  %v1397 = vadd.f32 %v1228, %v1396
  %1398 = vmatmul.bf16.gmra.mxu0 %v604
  %v1399 = vpop.f32.mrf.mxu0
  %v1400 = vadd.f32 %v1231, %v1399
  %v1401 = vpop.f32.mrf.mxu0
  %v1402 = vadd.f32 %v1233, %v1401
  %1403 = vmatmul.bf16.gmra.mxu0 %v608
  %v1404 = vpop.f32.mrf.mxu0
  %v1405 = vadd.f32 %v1236, %v1404
  %v1406 = vpop.f32.mrf.mxu0
  %v1407 = vadd.f32 %v1238, %v1406
  %1408 = vmatmul.bf16.gmra.mxu0 %v612
  %v1409 = vpop.f32.mrf.mxu0
  %v1410 = vadd.f32 %v1241, %v1409
  %v1411 = vpop.f32.mrf.mxu0
  %v1412 = vadd.f32 %v1243, %v1411
  %1413 = vmatmul.bf16.gmra.mxu0 %v616
  %v1414 = vpop.f32.mrf.mxu0
  %v1415 = vadd.f32 %v1246, %v1414
  %v1416 = vpop.f32.mrf.mxu0
  %v1417 = vadd.f32 %v1248, %v1416
  %1418 = vmatmul.bf16.gmra.mxu0 %v620
  %v1419 = vpop.f32.mrf.mxu0
  %v1420 = vadd.f32 %v1251, %v1419
  %v1421 = vpop.f32.mrf.mxu0
  %v1422 = vadd.f32 %v1253, %v1421
  %1423 = vmatmul.bf16.gmra.mxu0 %v624
  %v1424 = vpop.f32.mrf.mxu0
  %v1425 = vadd.f32 %v1256, %v1424
  %v1426 = vpop.f32.mrf.mxu0
  %v1427 = vadd.f32 %v1258, %v1426
  %1428 = vmatmul.bf16.gmra.mxu0 %v628
  %v1429 = vpop.f32.mrf.mxu0
  %v1430 = vadd.f32 %v1261, %v1429
  %v1431 = vpop.f32.mrf.mxu0
  %v1432 = vadd.f32 %v1263, %v1431
  %1433 = vmatmul.bf16.gmra.mxu0 %v632
  %v1434 = vpop.f32.mrf.mxu0
  %v1435 = vadd.f32 %v1266, %v1434
  %v1436 = vpop.f32.mrf.mxu0
  %v1437 = vadd.f32 %v1268, %v1436
  %1438 = vmatmul.bf16.gmra.mxu0 %v636
  %v1439 = vpop.f32.mrf.mxu0
  %v1440 = vadd.f32 %v1271, %v1439
  %v1441 = vpop.f32.mrf.mxu0
  %v1442 = vadd.f32 %v1273, %v1441
  %1443 = vmatmul.bf16.gmra.mxu0 %v640
  %v1444 = vpop.f32.mrf.mxu0
  %v1445 = vadd.f32 %v1276, %v1444
  %v1446 = vpop.f32.mrf.mxu0
  %v1447 = vadd.f32 %v1278, %v1446
  %1448 = vmatmul.bf16.gmra.mxu0 %v644
  %v1449 = vpop.f32.mrf.mxu0
  %v1450 = vadd.f32 %v1281, %v1449
  %v1451 = vpop.f32.mrf.mxu0
  %v1452 = vadd.f32 %v1283, %v1451
  %1453 = vmatmul.bf16.gmra.mxu0 %v648
  %v1454 = vpop.f32.mrf.mxu0
  %v1455 = vadd.f32 %v1286, %v1454
  %v1456 = vpop.f32.mrf.mxu0
  %v1457 = vadd.f32 %v1288, %v1456
  %1458 = vmatmul.bf16.gmra.mxu0 %v652
  %v1459 = vpop.f32.mrf.mxu0
  %v1460 = vadd.f32 %v1291, %v1459
  %v1461 = vpop.f32.mrf.mxu0
  %v1462 = vadd.f32 %v1293, %v1461
  %1463 = vmatmul.bf16.gmra.mxu0 %v656
  %v1464 = vpop.f32.mrf.mxu0
  %v1465 = vadd.f32 %v1296, %v1464
  %v1466 = vpop.f32.mrf.mxu0
  %v1467 = vadd.f32 %v1298, %v1466
  %1468 = vmatmul.bf16.gmra.mxu0 %v660
  %v1469 = vpop.f32.mrf.mxu0
  %v1470 = vadd.f32 %v1301, %v1469
  %v1471 = vpop.f32.mrf.mxu0
  %v1472 = vadd.f32 %v1303, %v1471
  %1473 = vmatmul.bf16.gmra.mxu0 %v664
  %v1474 = vpop.f32.mrf.mxu0
  %v1475 = vadd.f32 %v1306, %v1474
  %v1476 = vpop.f32.mrf.mxu0
  %v1477 = vadd.f32 %v1308, %v1476
  %1478 = vmatmul.bf16.gmra.mxu0 %v668
  %v1479 = vpop.f32.mrf.mxu0
  %v1480 = vadd.f32 %v1311, %v1479
  %v1481 = vpop.f32.mrf.mxu0
  %v1482 = vadd.f32 %v1313, %v1481
  %1483 = vmatmul.bf16.gmra.mxu0 %v672
  %v1484 = vpop.f32.mrf.mxu0
  %v1485 = vadd.f32 %v1316, %v1484
  %v1486 = vpop.f32.mrf.mxu0
  %v1487 = vadd.f32 %v1318, %v1486
  %1488 = vmatmul.bf16.gmra.mxu0 %v676
  %v1489 = vpop.f32.mrf.mxu0
  %v1490 = vadd.f32 %v1321, %v1489
  %v1491 = vpop.f32.mrf.mxu0
  %v1492 = vadd.f32 %v1323, %v1491
  %1493 = vmatmul.bf16.gmra.mxu0 %v680
  %v1494 = vpop.f32.mrf.mxu0
  %v1495 = vadd.f32 %v1326, %v1494
  %v1496 = vpop.f32.mrf.mxu0
  %v1497 = vadd.f32 %v1328, %v1496
  %1498 = vmatmul.bf16.gmra.mxu0 %v684
  %v1499 = vpop.f32.mrf.mxu0
  %v1500 = vadd.f32 %v1331, %v1499
  %v1501 = vpop.f32.mrf.mxu0
  %v1502 = vadd.f32 %v1333, %v1501
  %1503 = vmatmul.bf16.gmra.mxu0 %v688
  %v1504 = vpop.f32.mrf.mxu0
  %v1505 = vadd.f32 %v1336, %v1504
  %v1506 = vpop.f32.mrf.mxu0
  %v1507 = vadd.f32 %v1338, %v1506
  %1508 = vmatmul.bf16.gmra.mxu0 %v692
  %v1509 = vpop.f32.mrf.mxu0
  %v1510 = vadd.f32 %v1341, %v1509
  %v1511 = vpop.f32.mrf.mxu0
  %v1512 = vadd.f32 %v1343, %v1511
  %1513 = vmatmul.bf16.gmra.mxu0 %v696
  %v1514 = vpop.f32.mrf.mxu0
  %v1515 = vadd.f32 %v1346, %v1514
  %v1516 = vpop.f32.mrf.mxu0
  %v1517 = vadd.f32 %v1348, %v1516
  %1518 = vmatmul.bf16.gmra.mxu0 %v700
  %v1519 = vpop.f32.mrf.mxu0
  %v1520 = vadd.f32 %v1351, %v1519
  %v1521 = vpop.f32.mrf.mxu0
  %v1522 = vadd.f32 %v1353, %v1521
  %1523 = vmatmul.bf16.gmra.mxu0 %v704
  %v1524 = vpop.f32.mrf.mxu0
  %v1525 = vadd.f32 %v1356, %v1524
  %v1526 = vpop.f32.mrf.mxu0
  %v1527 = vadd.f32 %v1358, %v1526
  %1528 = vmatmul.bf16.gmra.mxu0 %v708
  %v1529 = vpop.f32.mrf.mxu0
  %v1530 = vadd.f32 %v1361, %v1529
  %v1531 = vpop.f32.mrf.mxu0
  %v1532 = vadd.f32 %v1363, %v1531
  %1533 = vmatmul.bf16.gmra.mxu0 %v712
  %v1534 = vpop.f32.mrf.mxu0
  %v1535 = vadd.f32 %v1366, %v1534
  %v1536 = vpop.f32.mrf.mxu0
  %v1537 = vadd.f32 %v1368, %v1536
  %1538 = vmatmul.bf16.gmra.mxu0 %v716
  %v1539 = vpop.f32.mrf.mxu0
  %v1540 = vadd.f32 %v1371, %v1539
  %v1541 = vpop.f32.mrf.mxu0
  %v1542 = vadd.f32 %v1373, %v1541
  %1543 = vmatmul.bf16.gmra.mxu0 %v720
  %v1544 = vpop.f32.mrf.mxu0
  %v1545 = vadd.f32 %v1376, %v1544
  %v1546 = vpop.f32.mrf.mxu0
  %v1547 = vadd.f32 %v1378, %v1546
  %1548 = vdwg.mxu0
  %1549 = vmatpush.bf16.msra.mxu0 %v1009
  %1550 = vmatpush.bf16.msra.mxu0 %v1008
  %1551 = vmatpush.bf16.msra.mxu0 %v1007
  %1552 = vmatpush.bf16.msra.mxu0 %v1006
  %1553 = vmatpush.bf16.msra.mxu0 %v1005
  %1554 = vmatpush.bf16.msra.mxu0 %v1004
  %1555 = vmatpush.bf16.msra.mxu0 %v1003
  %1556 = vmatpush.bf16.msra.mxu0 %v1002
  %1557 = vmatmul.bf16.gmra.mxu0 %v597
  %v1558 = vpop.f32.mrf.mxu0
  %v1559 = vadd.f32 %v1390, %v1558
  %v1560 = vpop.f32.mrf.mxu0
  %v1561 = vadd.f32 %v1392, %v1560
  %1562 = vmatmul.bf16.gmra.mxu0 %v601
  %v1563 = vpop.f32.mrf.mxu0
  %v1564 = vadd.f32 %v1395, %v1563
  %v1565 = vpop.f32.mrf.mxu0
  %v1566 = vadd.f32 %v1397, %v1565
  %1567 = vmatmul.bf16.gmra.mxu0 %v605
  %v1568 = vpop.f32.mrf.mxu0
  %v1569 = vadd.f32 %v1400, %v1568
  %v1570 = vpop.f32.mrf.mxu0
  %v1571 = vadd.f32 %v1402, %v1570
  %1572 = vmatmul.bf16.gmra.mxu0 %v609
  %v1573 = vpop.f32.mrf.mxu0
  %v1574 = vadd.f32 %v1405, %v1573
  %v1575 = vpop.f32.mrf.mxu0
  %v1576 = vadd.f32 %v1407, %v1575
  %1577 = vmatmul.bf16.gmra.mxu0 %v613
  %v1578 = vpop.f32.mrf.mxu0
  %v1579 = vadd.f32 %v1410, %v1578
  %v1580 = vpop.f32.mrf.mxu0
  %v1581 = vadd.f32 %v1412, %v1580
  %1582 = vmatmul.bf16.gmra.mxu0 %v617
  %v1583 = vpop.f32.mrf.mxu0
  %v1584 = vadd.f32 %v1415, %v1583
  %v1585 = vpop.f32.mrf.mxu0
  %v1586 = vadd.f32 %v1417, %v1585
  %1587 = vmatmul.bf16.gmra.mxu0 %v621
  %v1588 = vpop.f32.mrf.mxu0
  %v1589 = vadd.f32 %v1420, %v1588
  %v1590 = vpop.f32.mrf.mxu0
  %v1591 = vadd.f32 %v1422, %v1590
  %1592 = vmatmul.bf16.gmra.mxu0 %v625
  %v1593 = vpop.f32.mrf.mxu0
  %v1594 = vadd.f32 %v1425, %v1593
  %v1595 = vpop.f32.mrf.mxu0
  %v1596 = vadd.f32 %v1427, %v1595
  %1597 = vmatmul.bf16.gmra.mxu0 %v629
  %v1598 = vpop.f32.mrf.mxu0
  %v1599 = vadd.f32 %v1430, %v1598
  %v1600 = vpop.f32.mrf.mxu0
  %v1601 = vadd.f32 %v1432, %v1600
  %1602 = vmatmul.bf16.gmra.mxu0 %v633
  %v1603 = vpop.f32.mrf.mxu0
  %v1604 = vadd.f32 %v1435, %v1603
  %v1605 = vpop.f32.mrf.mxu0
  %v1606 = vadd.f32 %v1437, %v1605
  %1607 = vmatmul.bf16.gmra.mxu0 %v637
  %v1608 = vpop.f32.mrf.mxu0
  %v1609 = vadd.f32 %v1440, %v1608
  %v1610 = vpop.f32.mrf.mxu0
  %v1611 = vadd.f32 %v1442, %v1610
  %1612 = vmatmul.bf16.gmra.mxu0 %v641
  %v1613 = vpop.f32.mrf.mxu0
  %v1614 = vadd.f32 %v1445, %v1613
  %v1615 = vpop.f32.mrf.mxu0
  %v1616 = vadd.f32 %v1447, %v1615
  %1617 = vmatmul.bf16.gmra.mxu0 %v645
  %v1618 = vpop.f32.mrf.mxu0
  %v1619 = vadd.f32 %v1450, %v1618
  %v1620 = vpop.f32.mrf.mxu0
  %v1621 = vadd.f32 %v1452, %v1620
  %1622 = vmatmul.bf16.gmra.mxu0 %v649
  %v1623 = vpop.f32.mrf.mxu0
  %v1624 = vadd.f32 %v1455, %v1623
  %v1625 = vpop.f32.mrf.mxu0
  %v1626 = vadd.f32 %v1457, %v1625
  %1627 = vmatmul.bf16.gmra.mxu0 %v653
  %v1628 = vpop.f32.mrf.mxu0
  %v1629 = vadd.f32 %v1460, %v1628
  %v1630 = vpop.f32.mrf.mxu0
  %v1631 = vadd.f32 %v1462, %v1630
  %1632 = vmatmul.bf16.gmra.mxu0 %v657
  %v1633 = vpop.f32.mrf.mxu0
  %v1634 = vadd.f32 %v1465, %v1633
  %v1635 = vpop.f32.mrf.mxu0
  %v1636 = vadd.f32 %v1467, %v1635
  %1637 = vmatmul.bf16.gmra.mxu0 %v661
  %v1638 = vpop.f32.mrf.mxu0
  %v1639 = vadd.f32 %v1470, %v1638
  %v1640 = vpop.f32.mrf.mxu0
  %v1641 = vadd.f32 %v1472, %v1640
  %1642 = vmatmul.bf16.gmra.mxu0 %v665
  %v1643 = vpop.f32.mrf.mxu0
  %v1644 = vadd.f32 %v1475, %v1643
  %v1645 = vpop.f32.mrf.mxu0
  %v1646 = vadd.f32 %v1477, %v1645
  %1647 = vmatmul.bf16.gmra.mxu0 %v669
  %v1648 = vpop.f32.mrf.mxu0
  %v1649 = vadd.f32 %v1480, %v1648
  %v1650 = vpop.f32.mrf.mxu0
  %v1651 = vadd.f32 %v1482, %v1650
  %1652 = vmatmul.bf16.gmra.mxu0 %v673
  %v1653 = vpop.f32.mrf.mxu0
  %v1654 = vadd.f32 %v1485, %v1653
  %v1655 = vpop.f32.mrf.mxu0
  %v1656 = vadd.f32 %v1487, %v1655
  %1657 = vmatmul.bf16.gmra.mxu0 %v677
  %v1658 = vpop.f32.mrf.mxu0
  %v1659 = vadd.f32 %v1490, %v1658
  %v1660 = vpop.f32.mrf.mxu0
  %v1661 = vadd.f32 %v1492, %v1660
  %1662 = vmatmul.bf16.gmra.mxu0 %v681
  %v1663 = vpop.f32.mrf.mxu0
  %v1664 = vadd.f32 %v1495, %v1663
  %v1665 = vpop.f32.mrf.mxu0
  %v1666 = vadd.f32 %v1497, %v1665
  %1667 = vmatmul.bf16.gmra.mxu0 %v685
  %v1668 = vpop.f32.mrf.mxu0
  %v1669 = vadd.f32 %v1500, %v1668
  %v1670 = vpop.f32.mrf.mxu0
  %v1671 = vadd.f32 %v1502, %v1670
  %1672 = vmatmul.bf16.gmra.mxu0 %v689
  %v1673 = vpop.f32.mrf.mxu0
  %v1674 = vadd.f32 %v1505, %v1673
  %v1675 = vpop.f32.mrf.mxu0
  %v1676 = vadd.f32 %v1507, %v1675
  %1677 = vmatmul.bf16.gmra.mxu0 %v693
  %v1678 = vpop.f32.mrf.mxu0
  %v1679 = vadd.f32 %v1510, %v1678
  %v1680 = vpop.f32.mrf.mxu0
  %v1681 = vadd.f32 %v1512, %v1680
  %1682 = vmatmul.bf16.gmra.mxu0 %v697
  %v1683 = vpop.f32.mrf.mxu0
  %v1684 = vadd.f32 %v1515, %v1683
  %v1685 = vpop.f32.mrf.mxu0
  %v1686 = vadd.f32 %v1517, %v1685
  %1687 = vmatmul.bf16.gmra.mxu0 %v701
  %v1688 = vpop.f32.mrf.mxu0
  %v1689 = vadd.f32 %v1520, %v1688
  %v1690 = vpop.f32.mrf.mxu0
  %v1691 = vadd.f32 %v1522, %v1690
  %1692 = vmatmul.bf16.gmra.mxu0 %v705
  %v1693 = vpop.f32.mrf.mxu0
  %v1694 = vadd.f32 %v1525, %v1693
  %v1695 = vpop.f32.mrf.mxu0
  %v1696 = vadd.f32 %v1527, %v1695
  %1697 = vmatmul.bf16.gmra.mxu0 %v709
  %v1698 = vpop.f32.mrf.mxu0
  %v1699 = vadd.f32 %v1530, %v1698
  %v1700 = vpop.f32.mrf.mxu0
  %v1701 = vadd.f32 %v1532, %v1700
  %1702 = vmatmul.bf16.gmra.mxu0 %v713
  %v1703 = vpop.f32.mrf.mxu0
  %v1704 = vadd.f32 %v1535, %v1703
  %v1705 = vpop.f32.mrf.mxu0
  %v1706 = vadd.f32 %v1537, %v1705
  %1707 = vmatmul.bf16.gmra.mxu0 %v717
  %v1708 = vpop.f32.mrf.mxu0
  %v1709 = vadd.f32 %v1540, %v1708
  %v1710 = vpop.f32.mrf.mxu0
  %v1711 = vadd.f32 %v1542, %v1710
  %1712 = vmatmul.bf16.gmra.mxu0 %v721
  %v1713 = vpop.f32.mrf.mxu0
  %v1714 = vadd.f32 %v1545, %v1713
  %v1715 = vpop.f32.mrf.mxu0
  %v1716 = vadd.f32 %v1547, %v1715
  %1717 = vdwg.mxu0
  %v1718 = vtanh.pop %v1559
  %v1719 = vtanh.pop %v1561
  %v1720 = vtanh.pop %v1564
  %v1721 = vtanh.pop %v1566
  %v1722 = vtanh.pop %v1569
  %v1723 = vtanh.pop %v1571
  %v1724 = vtanh.pop %v1574
  %v1725 = vtanh.pop %v1576
  %v1726 = vtanh.pop %v1579
  %v1727 = vtanh.pop %v1581
  %v1728 = vtanh.pop %v1584
  %v1729 = vtanh.pop %v1586
  %v1730 = vtanh.pop %v1589
  %v1731 = vtanh.pop %v1591
  %v1732 = vtanh.pop %v1594
  %v1733 = vtanh.pop %v1596
  %v1734 = vtanh.pop %v1599
  %v1735 = vtanh.pop %v1601
  %v1736 = vtanh.pop %v1604
  %v1737 = vtanh.pop %v1606
  %v1738 = vtanh.pop %v1609
  %v1739 = vtanh.pop %v1611
  %v1740 = vtanh.pop %v1614
  %v1741 = vtanh.pop %v1616
  %v1742 = vtanh.pop %v1619
  %v1743 = vtanh.pop %v1621
  %v1744 = vtanh.pop %v1624
  %v1745 = vtanh.pop %v1626
  %v1746 = vtanh.pop %v1629
  %v1747 = vtanh.pop %v1631
  %v1748 = vtanh.pop %v1634
  %v1749 = vtanh.pop %v1636
  %v1750 = vtanh.pop %v1639
  %v1751 = vtanh.pop %v1641
  %v1752 = vtanh.pop %v1644
  %v1753 = vtanh.pop %v1646
  %v1754 = vtanh.pop %v1649
  %v1755 = vtanh.pop %v1651
  %v1756 = vtanh.pop %v1654
  %v1757 = vtanh.pop %v1656
  %v1758 = vtanh.pop %v1659
  %v1759 = vtanh.pop %v1661
  %v1760 = vtanh.pop %v1664
  %v1761 = vtanh.pop %v1666
  %v1762 = vtanh.pop %v1669
  %v1763 = vtanh.pop %v1671
  %v1764 = vtanh.pop %v1674
  %v1765 = vtanh.pop %v1676
  %v1766 = vtanh.pop %v1679
  %v1767 = vtanh.pop %v1681
  %v1768 = vtanh.pop %v1684
  %v1769 = vtanh.pop %v1686
  %v1770 = vtanh.pop %v1689
  %v1771 = vtanh.pop %v1691
  %v1772 = vtanh.pop %v1694
  %v1773 = vtanh.pop %v1696
  %v1774 = vtanh.pop %v1699
  %v1775 = vtanh.pop %v1701
  %v1776 = vtanh.pop %v1704
  %v1777 = vtanh.pop %v1706
  %v1778 = vtanh.pop %v1709
  %v1779 = vtanh.pop %v1711
  %v1780 = vtanh.pop %v1714
  %v1781 = vtanh.pop %v1716
  %1782 = vst [vmem:[%s3] sm:$0xff] %v1718
  %1783 = vst [vmem:[%s3 + $0x8] sm:$0xff] %v1719
  %1784 = vst [vmem:[%s3 + $0x10] sm:$0xff] %v1720
  %1785 = vst [vmem:[%s3 + $0x18] sm:$0xff] %v1721
  %1786 = vst [vmem:[%s3 + $0x20] sm:$0xff] %v1722
  %1787 = vst [vmem:[%s3 + $0x28] sm:$0xff] %v1723
  %1788 = vst [vmem:[%s3 + $0x30] sm:$0xff] %v1724
  %1789 = vst [vmem:[%s3 + $0x38] sm:$0xff] %v1725
  %1790 = vst [vmem:[%s3 + $0x40] sm:$0xff] %v1726
  %1791 = vst [vmem:[%s3 + $0x48] sm:$0xff] %v1727
  %1792 = vst [vmem:[%s3 + $0x50] sm:$0xff] %v1728
  %1793 = vst [vmem:[%s3 + $0x58] sm:$0xff] %v1729
  %1794 = vst [vmem:[%s3 + $0x60] sm:$0xff] %v1730
  %1795 = vst [vmem:[%s3 + $0x68] sm:$0xff] %v1731
  %1796 = vst [vmem:[%s3 + $0x70] sm:$0xff] %v1732
  %1797 = vst [vmem:[%s3 + $0x78] sm:$0xff] %v1733
  %1798 = vst [vmem:[%s3 + $0x80] sm:$0xff] %v1734
  %1799 = vst [vmem:[%s3 + $0x88] sm:$0xff] %v1735
  %1800 = vst [vmem:[%s3 + $0x90] sm:$0xff] %v1736
  %1801 = vst [vmem:[%s3 + $0x98] sm:$0xff] %v1737
  %1802 = vst [vmem:[%s3 + $0xa0] sm:$0xff] %v1738
  %1803 = vst [vmem:[%s3 + $0xa8] sm:$0xff] %v1739
  %1804 = vst [vmem:[%s3 + $0xb0] sm:$0xff] %v1740
  %1805 = vst [vmem:[%s3 + $0xb8] sm:$0xff] %v1741
  %1806 = vst [vmem:[%s3 + $0xc0] sm:$0xff] %v1742
  %1807 = vst [vmem:[%s3 + $0xc8] sm:$0xff] %v1743
  %1808 = vst [vmem:[%s3 + $0xd0] sm:$0xff] %v1744
  %1809 = vst [vmem:[%s3 + $0xd8] sm:$0xff] %v1745
  %1810 = vst [vmem:[%s3 + $0xe0] sm:$0xff] %v1746
  %1811 = vst [vmem:[%s3 + $0xe8] sm:$0xff] %v1747
  %1812 = vst [vmem:[%s3 + $0xf0] sm:$0xff] %v1748
  %1813 = vst [vmem:[%s3 + $0xf8] sm:$0xff] %v1749
  %1814 = vst [vmem:[%s3 + $0x100] sm:$0xff] %v1750
  %1815 = vst [vmem:[%s3 + $0x108] sm:$0xff] %v1751
  %1816 = vst [vmem:[%s3 + $0x110] sm:$0xff] %v1752
  %1817 = vst [vmem:[%s3 + $0x118] sm:$0xff] %v1753
  %1818 = vst [vmem:[%s3 + $0x120] sm:$0xff] %v1754
  %1819 = vst [vmem:[%s3 + $0x128] sm:$0xff] %v1755
  %1820 = vst [vmem:[%s3 + $0x130] sm:$0xff] %v1756
  %1821 = vst [vmem:[%s3 + $0x138] sm:$0xff] %v1757
  %1822 = vst [vmem:[%s3 + $0x140] sm:$0xff] %v1758
  %1823 = vst [vmem:[%s3 + $0x148] sm:$0xff] %v1759
  %1824 = vst [vmem:[%s3 + $0x150] sm:$0xff] %v1760
  %1825 = vst [vmem:[%s3 + $0x158] sm:$0xff] %v1761
  %1826 = vst [vmem:[%s3 + $0x160] sm:$0xff] %v1762
  %1827 = vst [vmem:[%s3 + $0x168] sm:$0xff] %v1763
  %1828 = vst [vmem:[%s3 + $0x170] sm:$0xff] %v1764
  %1829 = vst [vmem:[%s3 + $0x178] sm:$0xff] %v1765
  %1830 = vst [vmem:[%s3 + $0x180] sm:$0xff] %v1766
  %1831 = vst [vmem:[%s3 + $0x188] sm:$0xff] %v1767
  %1832 = vst [vmem:[%s3 + $0x190] sm:$0xff] %v1768
  %1833 = vst [vmem:[%s3 + $0x198] sm:$0xff] %v1769
  %1834 = vst [vmem:[%s3 + $0x1a0] sm:$0xff] %v1770
  %1835 = vst [vmem:[%s3 + $0x1a8] sm:$0xff] %v1771
  %1836 = vst [vmem:[%s3 + $0x1b0] sm:$0xff] %v1772
  %1837 = vst [vmem:[%s3 + $0x1b8] sm:$0xff] %v1773
  %1838 = vst [vmem:[%s3 + $0x1c0] sm:$0xff] %v1774
  %1839 = vst [vmem:[%s3 + $0x1c8] sm:$0xff] %v1775
  %1840 = vst [vmem:[%s3 + $0x1d0] sm:$0xff] %v1776
  %1841 = vst [vmem:[%s3 + $0x1d8] sm:$0xff] %v1777
  %1842 = vst [vmem:[%s3 + $0x1e0] sm:$0xff] %v1778
  %1843 = vst [vmem:[%s3 + $0x1e8] sm:$0xff] %v1779
  %1844 = vst [vmem:[%s3 + $0x1f0] sm:$0xff] %v1780
  %1845 = vst [vmem:[%s3 + $0x1f8] sm:$0xff] %v1781
  // Predicated region
  $region14: #{resnet_generator_forward.93} parent=0 // pred_check
    _
  $region15: #{resnet_generator_forward.93} parent=0 // pred_check_branch
    %1847 = sbr.rel (0) target = $region17
  $region16: #{resnet_generator_forward.93} parent=0 // pred_region
    _
  $region17: #{resnet_generator_forward.93} parent=0 // pred_fallthru
    _
  // Predicated region
  $region18: #{resnet_generator_forward.93} parent=0 // pred_check
    _
  $region19: #{resnet_generator_forward.93} parent=0 // pred_check_branch
    %1849 = sbr.rel (0) target = $region21
  $region20: #{resnet_generator_forward.93} parent=0 // pred_region
    _
  $region21: #{resnet_generator_forward.93} parent=0 // pred_fallthru
    _

</llo_original>
